<compile_context>
chip_gen: v6e
topology: v6e:2x2x1
jax: 0.10.0
libtpu: 0.0.40
codegen_flags: <defaults>
</compile_context>

<pallas_src>
import functools
import math

import numpy as np
import jax
import jax.numpy as jnp
from jax import lax
from jax.experimental import pallas as pl
from jax.experimental.pallas import tpu as pltpu


# ----------------------------------------------------------------------------
# Fused block kernel: [concat ->] conv (+bias,+ReLU) [-> conv ...] [-> avgpool]
# ----------------------------------------------------------------------------
def _block_kernel(*refs, n_in, n_conv, N, D, H, W, Cins, relus, pool, G):
    """Ref order: x_0..x_{n_in-1}, masks, w_1..w_{n_conv}, b_1..b_{n_conv},
                  [P, Q if pool], out, xp_1..xp_{n_conv}, acc_1..acc_{n_conv}

      x_i   : (N, D*H, W*Cin_i)      bf16, (D,H) merged into rows, (W,C) into lanes
      masks : (3, Mspan, 1)          bf16 {0,1}; kh-validity & item-interior mask
      w_j   : (9, Kj, Nj)            bf16 band-packed taps (kw + W-boundary baked in)
      b_j   : (1, Nj)                f32 bias tiled over W
      P     : (N*(D//2)*(H//2), Mspan) f32 row-pooling matrix (D,H avg, drops gaps)
      Q     : (W*Cout, (W//2)*Cout)    f32 lane-pooling matrix (W avg)
      xp_j  : (R, Kj)                bf16 flat padded activation scratch
      acc_j : (Mspan, Nj)            f32 accumulator scratch
    """
    M = D * H
    Mspan = N * M + (N - 1) * G

    idx = 0
    x_refs = refs[idx:idx + n_in]; idx += n_in
    mask_ref = refs[idx]; idx += 1
    w_refs = refs[idx:idx + n_conv]; idx += n_conv
    b_refs = refs[idx:idx + n_conv]; idx += n_conv
    if pool:
        p_ref = refs[idx]; q_ref = refs[idx + 1]; idx += 2
    o_ref = refs[idx]; idx += 1
    xp_refs = refs[idx:idx + n_conv]; idx += n_conv
    acc_refs = refs[idx:idx + n_conv]; idx += n_conv

    # Zero the padded scratches once per call (only the halo/gap rows need to
    # stay zero; the interiors are overwritten below / by the conv-1 epilogue).
    for xp in xp_refs:
        xp[...] = jnp.zeros_like(xp)

    # Fused channel-concat: scatter each input piece into its lane slice of the
    # single conv-1 scratch; batch item n occupies rows [G + n*(M+G), +M).
    lane_off = 0
    for i in range(n_in):
        ci = W * Cins[i]
        for n in range(N):
            row = G + n * (M + G)
            xp_refs[0][pl.ds(row, M), pl.ds(lane_off, ci)] = x_refs[i][n]
        lane_off += ci

    masks = mask_ref[...]                      # (3, Mspan, 1) bf16

    res = None
    for j in range(n_conv):
        acc = acc_refs[j]
        acc[...] = jnp.zeros_like(acc)
        xp = xp_refs[j]
        for kd in range(3):
            for kh in range(3):
                t = kd * 3 + kh
                s = (kd - 1) * H + (kh - 1)
                # Contiguous 2-D row window of the flat scratch: no reshape,
                # no (D,H)-window relayout.  D halo = zero gap rows, H halo =
                # static row mask, W halo = baked into the band weights.
                slab = xp[pl.ds(G + s, Mspan), :] * masks[kh]
                acc[...] += jnp.dot(slab, w_refs[j][t],
                                    preferred_element_type=jnp.float32)
        res = acc[...] + b_refs[j][...]        # f32 bias, broadcast over rows
        if relus[j]:
            res = jnp.maximum(res, 0.0)
        if j + 1 < n_conv:
            # conv-2 consumes conv-1 straight from VMEM; re-zero the inter-item
            # gap rows so they keep acting as the D halo.
            xp_refs[j + 1][pl.ds(G, Mspan), :] = (
                res.astype(xp_refs[j + 1].dtype) * masks[1])

    if pool:
        # Fused AvgPool3d(2): (D,H) pooling as a left matmul (also drops the
        # gap rows), W pooling as a right matmul on the merged (W,C) lanes.
        pooled = jnp.dot(p_ref[...], res, preferred_element_type=jnp.float32)
        pooled = jnp.dot(pooled, q_ref[...], preferred_element_type=jnp.float32)
        o_ref[...] = pooled.astype(o_ref.dtype)
    else:
        for n in range(N):
            row = n * (M + G)
            o_ref[n] = res[row:row + M].astype(o_ref.dtype)


# ----------------------------------------------------------------------------
# Host-side constant builders.
# ----------------------------------------------------------------------------
def _pack_band_weights(w, W):
    """PyTorch Conv3d weight (Cout, Cin, 3, 3, 3) -> (9, W*Cin, W*Cout) bf16.

    Tap t = kd*3 + kh; the three kw taps and the W-boundary zero padding are
    baked into the (W*Cin, W*Cout) band so each tap is one fat MXU matmul.
    """
    Cout, Cin = w.shape[0], w.shape[1]
    wt = jnp.transpose(w, (2, 3, 4, 1, 0)).astype(jnp.float32)  # (kd,kh,kw,ci,co)
    win = jnp.arange(W)[:, None]
    wout = jnp.arange(W)[None, :]
    kw = win - wout + 1                                         # (W, W)
    valid = ((kw >= 0) & (kw < 3)).astype(jnp.float32)
    kw_safe = jnp.clip(kw, 0, 2)
    band = wt[:, :, kw_safe]                                    # (3,3,W,W,Cin,Cout)
    band = band * valid[None, None, :, :, None, None]
    band = jnp.transpose(band, (0, 1, 2, 4, 3, 5))              # (kd,kh,win,ci,wout,co)
    return band.reshape(9, W * Cin, W * Cout).astype(jnp.bfloat16)


def _build_masks(N, M, H, G):
    """(3, Mspan, 1) bf16 {0,1}: per-kh H-boundary validity AND item-interior."""
    Mspan = N * M + (N - 1) * G
    q = np.arange(Mspan)
    rel = q % (M + G)
    h = rel % H
    interior = rel < M
    m = np.stack([interior & (h >= 1), interior, interior & (h <= H - 2)])
    return jnp.asarray(m[..., None].astype(np.float32)).astype(jnp.bfloat16)


def _build_pool_rows(N, D, H, G):
    """(N*(D//2)*(H//2), Mspan) f32: averages 2x2 (d,h) blocks, drops gap rows."""
    M = D * H
    Mspan = N * M + (N - 1) * G
    Hq = H // 2
    Mq = (D // 2) * Hq
    P = np.zeros((N * Mq, Mspan), np.float32)
    for n in range(N):
        base = n * (M + G)
        for d2 in range(D // 2):
            for h2 in range(Hq):
                r2 = n * Mq + d2 * Hq + h2
                for dd in range(2):
                    for hh in range(2):
                        P[r2, base + (2 * d2 + dd) * H + (2 * h2 + hh)] = 0.25
    return jnp.asarray(P)


def _build_pool_lanes(W, C):
    """(W*C, (W//2)*C) f32: averages w pairs on the merged (W,C) lane axis."""
    Q = np.zeros((W * C, (W // 2) * C), np.float32)
    for w in range(W):
        for c in range(C):
            Q[w * C + c, (w // 2) * C + c] = 0.5
    return jnp.asarray(Q)


# ----------------------------------------------------------------------------
# Wrapper: one fused pallas_call per U-Net block.
# ----------------------------------------------------------------------------
def unet_block(xs, convs, *, pool=False, out_dtype=jnp.bfloat16):
    """[concat ->] conv3x3x3 (+bias,+ReLU) [-> conv ...] [-> AvgPool3d(2)].

    xs    : list of (N, D, H, W, Cin_i) arrays, treated as channel-concatenated.
    convs : list of (w, b, relu); w in PyTorch (Cout, Cin, 3, 3, 3) layout.
    """
    if not isinstance(xs, (list, tuple)):
        xs = [xs]
    N, D, H, W, _ = xs[0].shape
    Cins = tuple(int(x.shape[-1]) for x in xs)
    n_in = len(xs)
    n_conv = len(convs)
    assert sum(Cins) == convs[0][0].shape[1], (Cins, convs[0][0].shape)
    if pool:
        assert D % 2 == 0 and H % 2 == 0 and W % 2 == 0

    M = D * H
    G = ((H + 1 + 7) // 8) * 8            # zero gap between batch items (>= H+1)
    R = N * M + (N + 1) * G               # flat padded-scratch rows
    Mspan = R - 2 * G                     # matmul M: all items + inter-item gaps

    # bf16 activations: (D,H) merged into rows, (W,C) merged into lanes (free reshape).
    x2s = [x.astype(jnp.bfloat16).reshape(N, M, W * c) for x, c in zip(xs, Cins)]
    masks = _build_masks(N, M, H, G)

    w_ops, b_ops, relus, couts = [], [], [], []
    cin_pieces = Cins
    for (w, b, relu) in convs:
        cout = int(w.shape[0])
        packs, off = [], 0
        for ci in cin_pieces:
            packs.append(_pack_band_weights(w[:, off:off + ci], W))
            off += ci
        # Concat fusion: stack per-piece band weights along K so each tap is a
        # single matmul with K = W * sum(Cin_i).
        w_ops.append(jnp.concatenate(packs, axis=1) if len(packs) > 1 else packs[0])
        b_ops.append(jnp.tile(b.astype(jnp.float32), W).reshape(1, W * cout))
        relus.append(bool(relu))
        couts.append(cout)
        cin_pieces = (cout,)              # next conv reads the previous output

    extra = []
    if pool:
        extra = [_build_pool_rows(N, D, H, G), _build_pool_lanes(W, couts[-1])]
        out_shape = jax.ShapeDtypeStruct((N * (M // 4), (W // 2) * couts[-1]), out_dtype)
    else:
        out_shape = jax.ShapeDtypeStruct((N, M, W * couts[-1]), out_dtype)

    k_dims = [W * sum(Cins)] + [W * c for c in couts[:-1]]
    scratch = ([pltpu.VMEM((R, k), jnp.bfloat16) for k in k_dims]
               + [pltpu.VMEM((Mspan, W * c), jnp.float32) for c in couts])

    kern = functools.partial(_block_kernel, n_in=n_in, n_conv=n_conv, N=N, D=D,
                             H=H, W=W, Cins=Cins, relus=tuple(relus),
                             pool=pool, G=G)

    out = pl.pallas_call(
        kern,
        out_shape=out_shape,
        scratch_shapes=scratch,
        compiler_params=pltpu.CompilerParams(vmem_limit_bytes=32 * 1024 * 1024),
        # TODO(synk): at realistic volumes use a 2-axis 'parallel' grid over
        # (N, D-tiles), pl.Buffered(1) for the constant band weights, and a
        # v7x-specific (64 MiB VMEM) tile budget.
    )(*x2s, masks, *w_ops, *b_ops, *extra)

    if pool:
        return out.reshape(N, D // 2, H // 2, W // 2, couts[-1])
    return out.reshape(N, D, H, W, couts[-1])


# ----------------------------------------------------------------------------
# Upsample glue (nearest-neighbour 2x == conv_transpose3d with replicated eye).
# ----------------------------------------------------------------------------
def upsample2(x):
    N, D, H, W, C = x.shape
    x = jnp.broadcast_to(x[:, :, None, :, None, :, None, :], (N, D, 2, H, 2, W, 2, C))
    return x.reshape(N, 2 * D, 2 * H, 2 * W, C)
    # TODO(synk): fuse the expansion into the consumer conv's scatter instead.


# ----------------------------------------------------------------------------
# Parameter construction (deterministic, mirrors UNetArch.__init__ shapes).
# ----------------------------------------------------------------------------
def _conv_params(key, cin, cout):
    k1, k2 = jax.random.split(key)
    scale = 1.0 / math.sqrt(cin * 27)
    w = jax.random.uniform(k1, (cout, cin, 3, 3, 3), jnp.float32, -scale, scale)
    b = jax.random.uniform(k2, (cout,), jnp.float32, -scale, scale)
    return {"w": w, "b": b}


def init_unet_params(key, input_n_chan, output_n_chan,
                     down_layer_sizes, up_layer_sizes, skip_layer_sizes):
    n_down = len(down_layer_sizes) - 1
    keys = iter(jax.random.split(key, 64))
    params = {"down": [], "up": [], "skip": []}
    for i in range(n_down):
        down_in = input_n_chan if i == 0 else down_layer_sizes[i]
        if i + 1 == n_down:
            up_in = skip_layer_sizes[i + 1]
            params["skip"].append(None)  # pass_thru skip block
        else:
            up_in = skip_layer_sizes[i + 1] + up_layer_sizes[i + 1]
            params["skip"].append(
                _conv_params(next(keys), skip_layer_sizes[i + 1], skip_layer_sizes[i + 1]))
        params["down"].append({
            "c1": _conv_params(next(keys), down_in, down_layer_sizes[i + 1]),
            "c2": _conv_params(next(keys), down_layer_sizes[i + 1], down_layer_sizes[i + 1]),
        })
        params["up"].append({
            "c1": _conv_params(next(keys), up_in, up_layer_sizes[i]),
            "c2": _conv_params(next(keys), up_layer_sizes[i], up_layer_sizes[i]),
        })
    params["zeroth"] = _conv_params(next(keys), input_n_chan, skip_layer_sizes[0])
    params["out"] = _conv_params(next(keys),
                                 skip_layer_sizes[0] + up_layer_sizes[0], output_n_chan)
    return params


# ----------------------------------------------------------------------------
# Forward pass (matches UNetArch.forward).
# ----------------------------------------------------------------------------
def unet_forward(x_nchw, params):
    x = jnp.transpose(x_nchw, (0, 2, 3, 4, 1))           # NCDHW -> NDHWC
    n_down = len(params["down"])

    zp = params["zeroth"]
    s0 = unet_block([x], [(zp["w"], zp["b"], True)])

    u = x
    skips = []
    for i in range(n_down):
        dp = params["down"][i]
        u = unet_block([u], [(dp["c1"]["w"], dp["c1"]["b"], True),
                             (dp["c2"]["w"], dp["c2"]["b"], True)], pool=True)
        sp = params["skip"][i]
        skips.append(u if sp is None else unet_block([u], [(sp["w"], sp["b"], True)]))

    d = None
    for i in reversed(range(n_down)):
        up = params["up"][i]
        cat = [skips[i]] if d is None else [skips[i], d]   # concat fused into the conv
        d = unet_block(cat, [(up["c1"]["w"], up["c1"]["b"], True),
                             (up["c2"]["w"], up["c2"]["b"], True)])
        d = upsample2(d)

    op = params["out"]
    out = unet_block([s0, d], [(op["w"], op["b"], False)], out_dtype=jnp.float32)
    return jnp.transpose(out, (0, 4, 1, 2, 3))             # NDHWC -> NCDHW


# ----------------------------------------------------------------------------
# Pure-JAX references for correctness checks.
# ----------------------------------------------------------------------------
def _ref_conv3d(x, w, b, relu):
    xb = x.astype(jnp.bfloat16).astype(jnp.float32)
    wb = w.astype(jnp.bfloat16).astype(jnp.float32)
    out = lax.conv_general_dilated(
        xb, jnp.transpose(wb, (2, 3, 4, 1, 0)),
        window_strides=(1, 1, 1), padding="SAME",
        dimension_numbers=("NDHWC", "DHWIO", "NDHWC"),
        precision=lax.Precision.HIGHEST)
    out = out + b.astype(jnp.float32)
    return jnp.maximum(out, 0.0) if relu else out


def _ref_block(xs, convs, pool=False):
    x = xs[0] if len(xs) == 1 else jnp.concatenate(xs, axis=-1)
    for (w, b, relu) in convs:
        x = _ref_conv3d(x, w, b, relu)
    if pool:
        N, D, H, W, C = x.shape
        x = x.reshape(N, D // 2, 2, H // 2, 2, W // 2, 2, C).mean(axis=(2, 4, 6))
    return x


# ----------------------------------------------------------------------------
if __name__ == "__main__":
    key = jax.random.PRNGKey(0)
    kp, kx, ka, kb = jax.random.split(key, 4)

    # Small, consistent configuration: 2 down levels, spatial 8 -> 4 -> 2.
    input_n_chan, output_n_chan = 4, 3
    down_layer_sizes = [4, 8, 16]
    up_layer_sizes = [8, 8]
    skip_layer_sizes = [8, 8, 16]

    params = init_unet_params(kp, input_n_chan, output_n_chan,
                              down_layer_sizes, up_layer_sizes, skip_layer_sizes)

    # PyTorch-style NCDHW input.
    x = jax.random.normal(kx, (2, input_n_chan, 8, 8, 8), jnp.float32)
    x_ndhwc = jnp.transpose(x, (0, 2, 3, 4, 1))

    # Sanity check 1: single fused conv vs. lax.conv reference.
    zp = params["zeroth"]
    got = unet_block([x_ndhwc], [(zp["w"], zp["b"], True)], out_dtype=jnp.float32)
    want = _ref_block([x_ndhwc], [(zp["w"], zp["b"], True)])
    assert bool(jnp.allclose(got, want, atol=2e-2, rtol=2e-2)), "single conv mismatch"

    # Sanity check 2: fused channel-concat conv (final-layer weights).
    a = jax.random.normal(ka, (2, 8, 8, 8, skip_layer_sizes[0]), jnp.float32)
    c = jax.random.normal(kb, (2, 8, 8, 8, up_layer_sizes[0]), jnp.float32)
    op = params["out"]
    got2 = unet_block([a, c], [(op["w"], op["b"], False)], out_dtype=jnp.float32)
    want2 = _ref_block([a, c], [(op["w"], op["b"], False)])
    assert bool(jnp.allclose(got2, want2, atol=2e-2, rtol=2e-2)), "fused-concat conv mismatch"

    # Sanity check 3: fully fused down block (conv + conv + avgpool).
    dp = params["down"][0]
    got3 = unet_block([x_ndhwc],
                      [(dp["c1"]["w"], dp["c1"]["b"], True),
                       (dp["c2"]["w"], dp["c2"]["b"], True)],
                      pool=True, out_dtype=jnp.float32)
    want3 = _ref_block([x_ndhwc],
                       [(dp["c1"]["w"], dp["c1"]["b"], True),
                        (dp["c2"]["w"], dp["c2"]["b"], True)], pool=True)
    assert bool(jnp.allclose(got3, want3, atol=3e-2, rtol=3e-2)), "fused down-block mismatch"

    fwd = jax.jit(unet_forward)
    out = jax.block_until_ready(fwd(x, params))
    assert out.shape == (2, output_n_chan, 8, 8, 8), out.shape
    assert out.dtype == jnp.float32
    print("KERNEL_OK")
</pallas_src>

<mosaic_0001>
module attributes {stable_mosaic.version = 11 : i64} {
  func.func @_block_kernel(%arg0: memref<2x64x32xbf16, #tpu.memory_space<vmem>>, %arg1: memref<3x144x1xbf16, #tpu.memory_space<vmem>>, %arg2: memref<9x32x64xbf16, #tpu.memory_space<vmem>>, %arg3: memref<1x64xf32, #tpu.memory_space<vmem>>, %arg4: memref<2x64x64xf32, #tpu.memory_space<vmem>>, %arg5: memref<176x32xbf16, #tpu.memory_space<vmem>>, %arg6: memref<144x64xf32, #tpu.memory_space<vmem>>) attributes {dimension_semantics = [], scalar_prefetch = 0 : i64, scratch_operands = 2 : i64, tpu.core_type = #tpu.core_type<tc>} {
    %cst = arith.constant 0.000000e+00 : bf16
    %0 = vector.broadcast %cst : bf16 to vector<176x32xbf16>
    %c0 = arith.constant 0 : index
    %c0_0 = arith.constant 0 : index
    %1 = vector.load %arg5[%c0, %c0_0] : memref<176x32xbf16, #tpu.memory_space<vmem>>, vector<176x32xbf16>
    tpu.vector_store %arg5[%c0, %c0_0], %0 {strides = array<i32>} : memref<176x32xbf16, #tpu.memory_space<vmem>>, vector<176x32xbf16>,
    %c0_1 = arith.constant 0 : index
    %c0_2 = arith.constant 0 : index
    %c0_3 = arith.constant 0 : index
    %2 = vector.load %arg0[%c0_1, %c0_2, %c0_3] : memref<2x64x32xbf16, #tpu.memory_space<vmem>>, vector<1x64x32xbf16>
    %3 = vector.shape_cast %2 : vector<1x64x32xbf16> to vector<64x32xbf16>
    %c16 = arith.constant 16 : index
    %c0_4 = arith.constant 0 : index
    %4 = vector.load %arg5[%c16, %c0_4] : memref<176x32xbf16, #tpu.memory_space<vmem>>, vector<64x32xbf16>
    tpu.vector_store %arg5[%c16, %c0_4], %3 {strides = array<i32>} : memref<176x32xbf16, #tpu.memory_space<vmem>>, vector<64x32xbf16>,
    %c1 = arith.constant 1 : index
    %c0_5 = arith.constant 0 : index
    %c0_6 = arith.constant 0 : index
    %5 = vector.load %arg0[%c1, %c0_5, %c0_6] : memref<2x64x32xbf16, #tpu.memory_space<vmem>>, vector<1x64x32xbf16>
    %6 = vector.shape_cast %5 : vector<1x64x32xbf16> to vector<64x32xbf16>
    %c96 = arith.constant 96 : index
    %c0_7 = arith.constant 0 : index
    %7 = vector.load %arg5[%c96, %c0_7] : memref<176x32xbf16, #tpu.memory_space<vmem>>, vector<64x32xbf16>
    tpu.vector_store %arg5[%c96, %c0_7], %6 {strides = array<i32>} : memref<176x32xbf16, #tpu.memory_space<vmem>>, vector<64x32xbf16>,
    %c0_8 = arith.constant 0 : index
    %c0_9 = arith.constant 0 : index
    %c0_10 = arith.constant 0 : index
    %8 = vector.load %arg1[%c0_8, %c0_9, %c0_10] : memref<3x144x1xbf16, #tpu.memory_space<vmem>>, vector<3x144x1xbf16>
    %cst_11 = arith.constant 0.000000e+00 : f32
    %9 = vector.broadcast %cst_11 : f32 to vector<144x64xf32>
    %c0_12 = arith.constant 0 : index
    %c0_13 = arith.constant 0 : index
    %10 = vector.load %arg6[%c0_12, %c0_13] : memref<144x64xf32, #tpu.memory_space<vmem>>, vector<144x64xf32>
    tpu.vector_store %arg6[%c0_12, %c0_13], %9 {strides = array<i32>} : memref<144x64xf32, #tpu.memory_space<vmem>>, vector<144x64xf32>,
    %c7 = arith.constant 7 : index
    %c0_14 = arith.constant 0 : index
    %11 = vector.load %arg5[%c7, %c0_14] : memref<176x32xbf16, #tpu.memory_space<vmem>>, vector<144x32xbf16>
    %12 = vector.extract_strided_slice %8 {offsets = [0, 0, 0], sizes = [1, 144, 1], strides = [1, 1, 1]} : vector<3x144x1xbf16> to vector<1x144x1xbf16>
    %13 = vector.shape_cast %12 : vector<1x144x1xbf16> to vector<144x1xbf16>
    %14 = vector.broadcast %13 : vector<144x1xbf16> to vector<144x32xbf16>
    %15 = arith.mulf %11, %14 : vector<144x32xbf16>
    %c0_15 = arith.constant 0 : index
    %c0_16 = arith.constant 0 : index
    %16 = vector.load %arg6[%c0_15, %c0_16] : memref<144x64xf32, #tpu.memory_space<vmem>>, vector<144x64xf32>
    %c0_17 = arith.constant 0 : index
    %c0_18 = arith.constant 0 : index
    %c0_19 = arith.constant 0 : index
    %17 = vector.load %arg2[%c0_17, %c0_18, %c0_19] : memref<9x32x64xbf16, #tpu.memory_space<vmem>>, vector<1x32x64xbf16>
    %18 = vector.shape_cast %17 : vector<1x32x64xbf16> to vector<32x64xbf16>
    %cst_20 = arith.constant dense<0.000000e+00> : vector<144x64xf32>
    %19 = tpu.matmul %15, %18, %cst_20 {dimension_numbers = #tpu.dot_dimension_numbers<[1], [0], [0], [1], [0, 0, 1, 1], [], []>} : vector<144x32xbf16>, vector<32x64xbf16>, vector<144x64xf32> -> vector<144x64xf32>
    %20 = arith.addf %16, %19 : vector<144x64xf32>
    %c0_21 = arith.constant 0 : index
    %c0_22 = arith.constant 0 : index
    %21 = vector.load %arg6[%c0_21, %c0_22] : memref<144x64xf32, #tpu.memory_space<vmem>>, vector<144x64xf32>
    tpu.vector_store %arg6[%c0_21, %c0_22], %20 {strides = array<i32>} : memref<144x64xf32, #tpu.memory_space<vmem>>, vector<144x64xf32>,
    %c8 = arith.constant 8 : index
    %c0_23 = arith.constant 0 : index
    %22 = vector.load %arg5[%c8, %c0_23] : memref<176x32xbf16, #tpu.memory_space<vmem>>, vector<144x32xbf16>
    %23 = vector.extract_strided_slice %8 {offsets = [1, 0, 0], sizes = [1, 144, 1], strides = [1, 1, 1]} : vector<3x144x1xbf16> to vector<1x144x1xbf16>
    %24 = vector.shape_cast %23 : vector<1x144x1xbf16> to vector<144x1xbf16>
    %25 = vector.broadcast %24 : vector<144x1xbf16> to vector<144x32xbf16>
    %26 = arith.mulf %22, %25 : vector<144x32xbf16>
    %c0_24 = arith.constant 0 : index
    %c0_25 = arith.constant 0 : index
    %27 = vector.load %arg6[%c0_24, %c0_25] : memref<144x64xf32, #tpu.memory_space<vmem>>, vector<144x64xf32>
    %c1_26 = arith.constant 1 : index
    %c0_27 = arith.constant 0 : index
    %c0_28 = arith.constant 0 : index
    %28 = vector.load %arg2[%c1_26, %c0_27, %c0_28] : memref<9x32x64xbf16, #tpu.memory_space<vmem>>, vector<1x32x64xbf16>
    %29 = vector.shape_cast %28 : vector<1x32x64xbf16> to vector<32x64xbf16>
    %cst_29 = arith.constant dense<0.000000e+00> : vector<144x64xf32>
    %30 = tpu.matmul %26, %29, %cst_29 {dimension_numbers = #tpu.dot_dimension_numbers<[1], [0], [0], [1], [0, 0, 1, 1], [], []>} : vector<144x32xbf16>, vector<32x64xbf16>, vector<144x64xf32> -> vector<144x64xf32>
    %31 = arith.addf %27, %30 : vector<144x64xf32>
    %c0_30 = arith.constant 0 : index
    %c0_31 = arith.constant 0 : index
    %32 = vector.load %arg6[%c0_30, %c0_31] : memref<144x64xf32, #tpu.memory_space<vmem>>, vector<144x64xf32>
    tpu.vector_store %arg6[%c0_30, %c0_31], %31 {strides = array<i32>} : memref<144x64xf32, #tpu.memory_space<vmem>>, vector<144x64xf32>,
    %c9 = arith.constant 9 : index
    %c0_32 = arith.constant 0 : index
    %33 = vector.load %arg5[%c9, %c0_32] : memref<176x32xbf16, #tpu.memory_space<vmem>>, vector<144x32xbf16>
    %34 = vector.extract_strided_slice %8 {offsets = [2, 0, 0], sizes = [1, 144, 1], strides = [1, 1, 1]} : vector<3x144x1xbf16> to vector<1x144x1xbf16>
    %35 = vector.shape_cast %34 : vector<1x144x1xbf16> to vector<144x1xbf16>
    %36 = vector.broadcast %35 : vector<144x1xbf16> to vector<144x32xbf16>
    %37 = arith.mulf %33, %36 : vector<144x32xbf16>
    %c0_33 = arith.constant 0 : index
    %c0_34 = arith.constant 0 : index
    %38 = vector.load %arg6[%c0_33, %c0_34] : memref<144x64xf32, #tpu.memory_space<vmem>>, vector<144x64xf32>
    %c2 = arith.constant 2 : index
    %c0_35 = arith.constant 0 : index
    %c0_36 = arith.constant 0 : index
    %39 = vector.load %arg2[%c2, %c0_35, %c0_36] : memref<9x32x64xbf16, #tpu.memory_space<vmem>>, vector<1x32x64xbf16>
    %40 = vector.shape_cast %39 : vector<1x32x64xbf16> to vector<32x64xbf16>
    %cst_37 = arith.constant dense<0.000000e+00> : vector<144x64xf32>
    %41 = tpu.matmul %37, %40, %cst_37 {dimension_numbers = #tpu.dot_dimension_numbers<[1], [0], [0], [1], [0, 0, 1, 1], [], []>} : vector<144x32xbf16>, vector<32x64xbf16>, vector<144x64xf32> -> vector<144x64xf32>
    %42 = arith.addf %38, %41 : vector<144x64xf32>
    %c0_38 = arith.constant 0 : index
    %c0_39 = arith.constant 0 : index
    %43 = vector.load %arg6[%c0_38, %c0_39] : memref<144x64xf32, #tpu.memory_space<vmem>>, vector<144x64xf32>
    tpu.vector_store %arg6[%c0_38, %c0_39], %42 {strides = array<i32>} : memref<144x64xf32, #tpu.memory_space<vmem>>, vector<144x64xf32>,
    %c15 = arith.constant 15 : index
    %c0_40 = arith.constant 0 : index
    %44 = vector.load %arg5[%c15, %c0_40] : memref<176x32xbf16, #tpu.memory_space<vmem>>, vector<144x32xbf16>
    %45 = vector.extract_strided_slice %8 {offsets = [0, 0, 0], sizes = [1, 144, 1], strides = [1, 1, 1]} : vector<3x144x1xbf16> to vector<1x144x1xbf16>
    %46 = vector.shape_cast %45 : vector<1x144x1xbf16> to vector<144x1xbf16>
    %47 = vector.broadcast %46 : vector<144x1xbf16> to vector<144x32xbf16>
    %48 = arith.mulf %44, %47 : vector<144x32xbf16>
    %c0_41 = arith.constant 0 : index
    %c0_42 = arith.constant 0 : index
    %49 = vector.load %arg6[%c0_41, %c0_42] : memref<144x64xf32, #tpu.memory_space<vmem>>, vector<144x64xf32>
    %c3 = arith.constant 3 : index
    %c0_43 = arith.constant 0 : index
    %c0_44 = arith.constant 0 : index
    %50 = vector.load %arg2[%c3, %c0_43, %c0_44] : memref<9x32x64xbf16, #tpu.memory_space<vmem>>, vector<1x32x64xbf16>
    %51 = vector.shape_cast %50 : vector<1x32x64xbf16> to vector<32x64xbf16>
    %cst_45 = arith.constant dense<0.000000e+00> : vector<144x64xf32>
    %52 = tpu.matmul %48, %51, %cst_45 {dimension_numbers = #tpu.dot_dimension_numbers<[1], [0], [0], [1], [0, 0, 1, 1], [], []>} : vector<144x32xbf16>, vector<32x64xbf16>, vector<144x64xf32> -> vector<144x64xf32>
    %53 = arith.addf %49, %52 : vector<144x64xf32>
    %c0_46 = arith.constant 0 : index
    %c0_47 = arith.constant 0 : index
    %54 = vector.load %arg6[%c0_46, %c0_47] : memref<144x64xf32, #tpu.memory_space<vmem>>, vector<144x64xf32>
    tpu.vector_store %arg6[%c0_46, %c0_47], %53 {strides = array<i32>} : memref<144x64xf32, #tpu.memory_space<vmem>>, vector<144x64xf32>,
    %c16_48 = arith.constant 16 : index
    %c0_49 = arith.constant 0 : index
    %55 = vector.load %arg5[%c16_48, %c0_49] : memref<176x32xbf16, #tpu.memory_space<vmem>>, vector<144x32xbf16>
    %56 = vector.extract_strided_slice %8 {offsets = [1, 0, 0], sizes = [1, 144, 1], strides = [1, 1, 1]} : vector<3x144x1xbf16> to vector<1x144x1xbf16>
    %57 = vector.shape_cast %56 : vector<1x144x1xbf16> to vector<144x1xbf16>
    %58 = vector.broadcast %57 : vector<144x1xbf16> to vector<144x32xbf16>
    %59 = arith.mulf %55, %58 : vector<144x32xbf16>
    %c0_50 = arith.constant 0 : index
    %c0_51 = arith.constant 0 : index
    %60 = vector.load %arg6[%c0_50, %c0_51] : memref<144x64xf32, #tpu.memory_space<vmem>>, vector<144x64xf32>
    %c4 = arith.constant 4 : index
    %c0_52 = arith.constant 0 : index
    %c0_53 = arith.constant 0 : index
    %61 = vector.load %arg2[%c4, %c0_52, %c0_53] : memref<9x32x64xbf16, #tpu.memory_space<vmem>>, vector<1x32x64xbf16>
    %62 = vector.shape_cast %61 : vector<1x32x64xbf16> to vector<32x64xbf16>
    %cst_54 = arith.constant dense<0.000000e+00> : vector<144x64xf32>
    %63 = tpu.matmul %59, %62, %cst_54 {dimension_numbers = #tpu.dot_dimension_numbers<[1], [0], [0], [1], [0, 0, 1, 1], [], []>} : vector<144x32xbf16>, vector<32x64xbf16>, vector<144x64xf32> -> vector<144x64xf32>
    %64 = arith.addf %60, %63 : vector<144x64xf32>
    %c0_55 = arith.constant 0 : index
    %c0_56 = arith.constant 0 : index
    %65 = vector.load %arg6[%c0_55, %c0_56] : memref<144x64xf32, #tpu.memory_space<vmem>>, vector<144x64xf32>
    tpu.vector_store %arg6[%c0_55, %c0_56], %64 {strides = array<i32>} : memref<144x64xf32, #tpu.memory_space<vmem>>, vector<144x64xf32>,
    %c17 = arith.constant 17 : index
    %c0_57 = arith.constant 0 : index
    %66 = vector.load %arg5[%c17, %c0_57] : memref<176x32xbf16, #tpu.memory_space<vmem>>, vector<144x32xbf16>
    %67 = vector.extract_strided_slice %8 {offsets = [2, 0, 0], sizes = [1, 144, 1], strides = [1, 1, 1]} : vector<3x144x1xbf16> to vector<1x144x1xbf16>
    %68 = vector.shape_cast %67 : vector<1x144x1xbf16> to vector<144x1xbf16>
    %69 = vector.broadcast %68 : vector<144x1xbf16> to vector<144x32xbf16>
    %70 = arith.mulf %66, %69 : vector<144x32xbf16>
    %c0_58 = arith.constant 0 : index
    %c0_59 = arith.constant 0 : index
    %71 = vector.load %arg6[%c0_58, %c0_59] : memref<144x64xf32, #tpu.memory_space<vmem>>, vector<144x64xf32>
    %c5 = arith.constant 5 : index
    %c0_60 = arith.constant 0 : index
    %c0_61 = arith.constant 0 : index
    %72 = vector.load %arg2[%c5, %c0_60, %c0_61] : memref<9x32x64xbf16, #tpu.memory_space<vmem>>, vector<1x32x64xbf16>
    %73 = vector.shape_cast %72 : vector<1x32x64xbf16> to vector<32x64xbf16>
    %cst_62 = arith.constant dense<0.000000e+00> : vector<144x64xf32>
    %74 = tpu.matmul %70, %73, %cst_62 {dimension_numbers = #tpu.dot_dimension_numbers<[1], [0], [0], [1], [0, 0, 1, 1], [], []>} : vector<144x32xbf16>, vector<32x64xbf16>, vector<144x64xf32> -> vector<144x64xf32>
    %75 = arith.addf %71, %74 : vector<144x64xf32>
    %c0_63 = arith.constant 0 : index
    %c0_64 = arith.constant 0 : index
    %76 = vector.load %arg6[%c0_63, %c0_64] : memref<144x64xf32, #tpu.memory_space<vmem>>, vector<144x64xf32>
    tpu.vector_store %arg6[%c0_63, %c0_64], %75 {strides = array<i32>} : memref<144x64xf32, #tpu.memory_space<vmem>>, vector<144x64xf32>,
    %c23 = arith.constant 23 : index
    %c0_65 = arith.constant 0 : index
    %77 = vector.load %arg5[%c23, %c0_65] : memref<176x32xbf16, #tpu.memory_space<vmem>>, vector<144x32xbf16>
    %78 = vector.extract_strided_slice %8 {offsets = [0, 0, 0], sizes = [1, 144, 1], strides = [1, 1, 1]} : vector<3x144x1xbf16> to vector<1x144x1xbf16>
    %79 = vector.shape_cast %78 : vector<1x144x1xbf16> to vector<144x1xbf16>
    %80 = vector.broadcast %79 : vector<144x1xbf16> to vector<144x32xbf16>
    %81 = arith.mulf %77, %80 : vector<144x32xbf16>
    %c0_66 = arith.constant 0 : index
    %c0_67 = arith.constant 0 : index
    %82 = vector.load %arg6[%c0_66, %c0_67] : memref<144x64xf32, #tpu.memory_space<vmem>>, vector<144x64xf32>
    %c6 = arith.constant 6 : index
    %c0_68 = arith.constant 0 : index
    %c0_69 = arith.constant 0 : index
    %83 = vector.load %arg2[%c6, %c0_68, %c0_69] : memref<9x32x64xbf16, #tpu.memory_space<vmem>>, vector<1x32x64xbf16>
    %84 = vector.shape_cast %83 : vector<1x32x64xbf16> to vector<32x64xbf16>
    %cst_70 = arith.constant dense<0.000000e+00> : vector<144x64xf32>
    %85 = tpu.matmul %81, %84, %cst_70 {dimension_numbers = #tpu.dot_dimension_numbers<[1], [0], [0], [1], [0, 0, 1, 1], [], []>} : vector<144x32xbf16>, vector<32x64xbf16>, vector<144x64xf32> -> vector<144x64xf32>
    %86 = arith.addf %82, %85 : vector<144x64xf32>
    %c0_71 = arith.constant 0 : index
    %c0_72 = arith.constant 0 : index
    %87 = vector.load %arg6[%c0_71, %c0_72] : memref<144x64xf32, #tpu.memory_space<vmem>>, vector<144x64xf32>
    tpu.vector_store %arg6[%c0_71, %c0_72], %86 {strides = array<i32>} : memref<144x64xf32, #tpu.memory_space<vmem>>, vector<144x64xf32>,
    %c24 = arith.constant 24 : index
    %c0_73 = arith.constant 0 : index
    %88 = vector.load %arg5[%c24, %c0_73] : memref<176x32xbf16, #tpu.memory_space<vmem>>, vector<144x32xbf16>
    %89 = vector.extract_strided_slice %8 {offsets = [1, 0, 0], sizes = [1, 144, 1], strides = [1, 1, 1]} : vector<3x144x1xbf16> to vector<1x144x1xbf16>
    %90 = vector.shape_cast %89 : vector<1x144x1xbf16> to vector<144x1xbf16>
    %91 = vector.broadcast %90 : vector<144x1xbf16> to vector<144x32xbf16>
    %92 = arith.mulf %88, %91 : vector<144x32xbf16>
    %c0_74 = arith.constant 0 : index
    %c0_75 = arith.constant 0 : index
    %93 = vector.load %arg6[%c0_74, %c0_75] : memref<144x64xf32, #tpu.memory_space<vmem>>, vector<144x64xf32>
    %c7_76 = arith.constant 7 : index
    %c0_77 = arith.constant 0 : index
    %c0_78 = arith.constant 0 : index
    %94 = vector.load %arg2[%c7_76, %c0_77, %c0_78] : memref<9x32x64xbf16, #tpu.memory_space<vmem>>, vector<1x32x64xbf16>
    %95 = vector.shape_cast %94 : vector<1x32x64xbf16> to vector<32x64xbf16>
    %cst_79 = arith.constant dense<0.000000e+00> : vector<144x64xf32>
    %96 = tpu.matmul %92, %95, %cst_79 {dimension_numbers = #tpu.dot_dimension_numbers<[1], [0], [0], [1], [0, 0, 1, 1], [], []>} : vector<144x32xbf16>, vector<32x64xbf16>, vector<144x64xf32> -> vector<144x64xf32>
    %97 = arith.addf %93, %96 : vector<144x64xf32>
    %c0_80 = arith.constant 0 : index
    %c0_81 = arith.constant 0 : index
    %98 = vector.load %arg6[%c0_80, %c0_81] : memref<144x64xf32, #tpu.memory_space<vmem>>, vector<144x64xf32>
    tpu.vector_store %arg6[%c0_80, %c0_81], %97 {strides = array<i32>} : memref<144x64xf32, #tpu.memory_space<vmem>>, vector<144x64xf32>,
    %c25 = arith.constant 25 : index
    %c0_82 = arith.constant 0 : index
    %99 = vector.load %arg5[%c25, %c0_82] : memref<176x32xbf16, #tpu.memory_space<vmem>>, vector<144x32xbf16>
    %100 = vector.extract_strided_slice %8 {offsets = [2, 0, 0], sizes = [1, 144, 1], strides = [1, 1, 1]} : vector<3x144x1xbf16> to vector<1x144x1xbf16>
    %101 = vector.shape_cast %100 : vector<1x144x1xbf16> to vector<144x1xbf16>
    %102 = vector.broadcast %101 : vector<144x1xbf16> to vector<144x32xbf16>
    %103 = arith.mulf %99, %102 : vector<144x32xbf16>
    %c0_83 = arith.constant 0 : index
    %c0_84 = arith.constant 0 : index
    %104 = vector.load %arg6[%c0_83, %c0_84] : memref<144x64xf32, #tpu.memory_space<vmem>>, vector<144x64xf32>
    %c8_85 = arith.constant 8 : index
    %c0_86 = arith.constant 0 : index
    %c0_87 = arith.constant 0 : index
    %105 = vector.load %arg2[%c8_85, %c0_86, %c0_87] : memref<9x32x64xbf16, #tpu.memory_space<vmem>>, vector<1x32x64xbf16>
    %106 = vector.shape_cast %105 : vector<1x32x64xbf16> to vector<32x64xbf16>
    %cst_88 = arith.constant dense<0.000000e+00> : vector<144x64xf32>
    %107 = tpu.matmul %103, %106, %cst_88 {dimension_numbers = #tpu.dot_dimension_numbers<[1], [0], [0], [1], [0, 0, 1, 1], [], []>} : vector<144x32xbf16>, vector<32x64xbf16>, vector<144x64xf32> -> vector<144x64xf32>
    %108 = arith.addf %104, %107 : vector<144x64xf32>
    %c0_89 = arith.constant 0 : index
    %c0_90 = arith.constant 0 : index
    %109 = vector.load %arg6[%c0_89, %c0_90] : memref<144x64xf32, #tpu.memory_space<vmem>>, vector<144x64xf32>
    tpu.vector_store %arg6[%c0_89, %c0_90], %108 {strides = array<i32>} : memref<144x64xf32, #tpu.memory_space<vmem>>, vector<144x64xf32>,
    %c0_91 = arith.constant 0 : index
    %c0_92 = arith.constant 0 : index
    %110 = vector.load %arg6[%c0_91, %c0_92] : memref<144x64xf32, #tpu.memory_space<vmem>>, vector<144x64xf32>
    %c0_93 = arith.constant 0 : index
    %c0_94 = arith.constant 0 : index
    %111 = vector.load %arg3[%c0_93, %c0_94] : memref<1x64xf32, #tpu.memory_space<vmem>>, vector<1x64xf32>
    %112 = vector.broadcast %111 : vector<1x64xf32> to vector<144x64xf32>
    %113 = arith.addf %110, %112 : vector<144x64xf32>
    %cst_95 = arith.constant 0.000000e+00 : f32
    %114 = vector.broadcast %cst_95 : f32 to vector<144x64xf32>
    %115 = arith.maximumf %113, %114 : vector<144x64xf32>
    %116 = vector.extract_strided_slice %115 {offsets = [0, 0], sizes = [64, 64], strides = [1, 1]} : vector<144x64xf32> to vector<64x64xf32>
    %c0_96 = arith.constant 0 : index
    %c0_97 = arith.constant 0 : index
    %c0_98 = arith.constant 0 : index
    %117 = vector.load %arg4[%c0_96, %c0_97, %c0_98] : memref<2x64x64xf32, #tpu.memory_space<vmem>>, vector<1x64x64xf32>
    %118 = vector.shape_cast %117 : vector<1x64x64xf32> to vector<64x64xf32>
    %119 = vector.shape_cast %116 : vector<64x64xf32> to vector<1x64x64xf32>
    tpu.vector_store %arg4[%c0_96, %c0_97, %c0_98], %119 {strides = array<i32>} : memref<2x64x64xf32, #tpu.memory_space<vmem>>, vector<1x64x64xf32>,
    %120 = vector.extract_strided_slice %115 {offsets = [80, 0], sizes = [64, 64], strides = [1, 1]} : vector<144x64xf32> to vector<64x64xf32>
    %c1_99 = arith.constant 1 : index
    %c0_100 = arith.constant 0 : index
    %c0_101 = arith.constant 0 : index
    %121 = vector.load %arg4[%c1_99, %c0_100, %c0_101] : memref<2x64x64xf32, #tpu.memory_space<vmem>>, vector<1x64x64xf32>
    %122 = vector.shape_cast %121 : vector<1x64x64xf32> to vector<64x64xf32>
    %123 = vector.shape_cast %120 : vector<64x64xf32> to vector<1x64x64xf32>
    tpu.vector_store %arg4[%c1_99, %c0_100, %c0_101], %123 {strides = array<i32>} : memref<2x64x64xf32, #tpu.memory_space<vmem>>, vector<1x64x64xf32>,
    return
  }
}

</mosaic_0001>

<llo_original>
// kernel: tpu_custom_call.1
$region0: #{tpu_custom_call.1}
  #allocation0 [shape = 'u32[]', space=smem, size = 0x4, offset = 0x4, fixed_abs, tag = 'smem constant byte address 0x4 - core index']
  #allocation1 [shape = 'u32[144,128]{1,0:T(1,128)}', space=vmem, size = 0x12000, scoped, tag = 'internal scratch']
  #allocation2 [shape = 'bf16[176,32]{1,0:T(8,128)(2,1)}', space=vmem, size = 0xb000, scoped, tag = 'scratch operand']
  #allocation3 [shape = 'f32[144,64]{1,0:T(8,128)}', space=vmem, size = 0x12000, scoped, tag = 'scratch operand']
  %s0 = inlined_call_operand.vmem [shape: bf16[2,64,32], index: 0, kind: input, shape index: {}]
  %s1 = inlined_call_operand.vmem [shape: bf16[3,144,1], index: 1, kind: input, shape index: {}]
  %s2 = inlined_call_operand.vmem [shape: bf16[9,32,64], index: 2, kind: input, shape index: {}]
  %s3 = inlined_call_operand.vmem [shape: f32[1,64], index: 3, kind: input, shape index: {}]
  %s4 = inlined_call_operand.hbm [shape: f32[2,64,64], index: 4, kind: output, shape index: {}]
  %s5 = sld [smem:[#allocation0]]
  $region26: #{tpu_custom_call.1} parent=0
    _
  %s7 = ssub.s32 1, %s5
  %s8 = scalar_select 0, %s7, %s5
  $region1: #{tpu_custom_call.1} parent=0
    #allocation4 [shape = 'u8[65536]{0}', space=vmem, size = 0x10000, scoped, tag = 'output window, operand 0, single buffered']
    #allocation5 [shape = 's32[1]{0}', space=sflag, size = 0x4, scoped, tag = 'scoped memory for tpu_custom_call.1']
    %9 = vsyncpa [#allocation5], 0
    // Predicated region
    $region2: #{tpu_custom_call.1} parent=1 // pred_check
      _
    $region3: #{tpu_custom_call.1} parent=1 // pred_check_branch
      %11 = sbr.rel (0) target = $region5
    $region4: #{tpu_custom_call.1} parent=1 // pred_region
      _
    $region5: #{tpu_custom_call.1} parent=1 // pred_fallthru
      _
    // Predicated region
    $region6: #{tpu_custom_call.1} parent=1 // pred_check
      _
    $region7: #{tpu_custom_call.1} parent=1 // pred_check_branch
      %13 = sbr.rel (0) target = $region9
    $region8: #{tpu_custom_call.1} parent=1 // pred_region
      _
    $region9: #{tpu_custom_call.1} parent=1 // pred_fallthru
      _
    // Predicated region
    $region10: #{tpu_custom_call.1} parent=1 // pred_check
      _
    $region11: #{tpu_custom_call.1} parent=1 // pred_check_branch
      %15 = sbr.rel (0) target = $region13
    $region12: #{tpu_custom_call.1} parent=1 // pred_region
      _
    $region13: #{tpu_custom_call.1} parent=1 // pred_fallthru
      _
    // Predicated region
    $region14: #{tpu_custom_call.1} parent=1 // pred_check
      _
    $region15: #{tpu_custom_call.1} parent=1 // pred_check_branch
      %17 = sbr.rel (0) target = $region17
    $region16: #{tpu_custom_call.1} parent=1 // pred_region
      _
    $region17: #{tpu_custom_call.1} parent=1 // pred_fallthru
      _
    %vm19 = vcmask 257024
    %20 = vst.msk [vmem:[#allocation2] sm:$0xf] %vm19, 0
    %21 = vst.msk [vmem:[#allocation2 + $0x4] sm:$0xf] %vm19, 0
    %22 = vst.msk [vmem:[#allocation2 + $0x8] sm:$0xf] %vm19, 0
    %23 = vst.msk [vmem:[#allocation2 + $0xc] sm:$0xf] %vm19, 0
    %24 = vst.msk [vmem:[#allocation2 + $0x10] sm:$0xf] %vm19, 0
    %25 = vst.msk [vmem:[#allocation2 + $0x14] sm:$0xf] %vm19, 0
    %26 = vst.msk [vmem:[#allocation2 + $0x18] sm:$0xf] %vm19, 0
    %27 = vst.msk [vmem:[#allocation2 + $0x1c] sm:$0xf] %vm19, 0
    %28 = vst.msk [vmem:[#allocation2 + $0x20] sm:$0xf] %vm19, 0
    %29 = vst.msk [vmem:[#allocation2 + $0x24] sm:$0xf] %vm19, 0
    %30 = vst.msk [vmem:[#allocation2 + $0x28] sm:$0xf] %vm19, 0
    %31 = vst.msk [vmem:[#allocation2 + $0x2c] sm:$0xf] %vm19, 0
    %32 = vst.msk [vmem:[#allocation2 + $0x30] sm:$0xf] %vm19, 0
    %33 = vst.msk [vmem:[#allocation2 + $0x34] sm:$0xf] %vm19, 0
    %34 = vst.msk [vmem:[#allocation2 + $0x38] sm:$0xf] %vm19, 0
    %35 = vst.msk [vmem:[#allocation2 + $0x3c] sm:$0xf] %vm19, 0
    %36 = vst.msk [vmem:[#allocation2 + $0x40] sm:$0xf] %vm19, 0
    %37 = vst.msk [vmem:[#allocation2 + $0x44] sm:$0xf] %vm19, 0
    %38 = vst.msk [vmem:[#allocation2 + $0x48] sm:$0xf] %vm19, 0
    %39 = vst.msk [vmem:[#allocation2 + $0x4c] sm:$0xf] %vm19, 0
    %40 = vst.msk [vmem:[#allocation2 + $0x50] sm:$0xf] %vm19, 0
    %41 = vst.msk [vmem:[#allocation2 + $0x54] sm:$0xf] %vm19, 0
    %v42 = vld [vmem:[%s0] sm:$0xf]
    %v43 = vld [vmem:[%s0 + $0x4] sm:$0xf]
    %v44 = vld [vmem:[%s0 + $0x8] sm:$0xf]
    %v45 = vld [vmem:[%s0 + $0xc] sm:$0xf]
    %v46 = vld [vmem:[%s0 + $0x10] sm:$0xf]
    %v47 = vld [vmem:[%s0 + $0x14] sm:$0xf]
    %v48 = vld [vmem:[%s0 + $0x18] sm:$0xf]
    %v49 = vld [vmem:[%s0 + $0x1c] sm:$0xf]
    %50 = vst.msk [vmem:[#allocation2 + $0x8] sm:$0xf] %vm19, %v42
    %51 = vst.msk [vmem:[#allocation2 + $0xc] sm:$0xf] %vm19, %v43
    %52 = vst.msk [vmem:[#allocation2 + $0x10] sm:$0xf] %vm19, %v44
    %53 = vst.msk [vmem:[#allocation2 + $0x14] sm:$0xf] %vm19, %v45
    %54 = vst.msk [vmem:[#allocation2 + $0x18] sm:$0xf] %vm19, %v46
    %55 = vst.msk [vmem:[#allocation2 + $0x1c] sm:$0xf] %vm19, %v47
    %56 = vst.msk [vmem:[#allocation2 + $0x20] sm:$0xf] %vm19, %v48
    %57 = vst.msk [vmem:[#allocation2 + $0x24] sm:$0xf] %vm19, %v49
    %s58 = scalar_lea.vmem %s0, 32
    %v59 = vld [vmem:[%s58] sm:$0xf]
    %v60 = vld [vmem:[%s58 + $0x4] sm:$0xf]
    %v61 = vld [vmem:[%s58 + $0x8] sm:$0xf]
    %v62 = vld [vmem:[%s58 + $0xc] sm:$0xf]
    %v63 = vld [vmem:[%s58 + $0x10] sm:$0xf]
    %v64 = vld [vmem:[%s58 + $0x14] sm:$0xf]
    %v65 = vld [vmem:[%s58 + $0x18] sm:$0xf]
    %v66 = vld [vmem:[%s58 + $0x1c] sm:$0xf]
    %67 = vst.msk [vmem:[#allocation2 + $0x30] sm:$0xf] %vm19, %v59
    %68 = vst.msk [vmem:[#allocation2 + $0x34] sm:$0xf] %vm19, %v60
    %69 = vst.msk [vmem:[#allocation2 + $0x38] sm:$0xf] %vm19, %v61
    %70 = vst.msk [vmem:[#allocation2 + $0x3c] sm:$0xf] %vm19, %v62
    %71 = vst.msk [vmem:[#allocation2 + $0x40] sm:$0xf] %vm19, %v63
    %72 = vst.msk [vmem:[#allocation2 + $0x44] sm:$0xf] %vm19, %v64
    %73 = vst.msk [vmem:[#allocation2 + $0x48] sm:$0xf] %vm19, %v65
    %74 = vst.msk [vmem:[#allocation2 + $0x4c] sm:$0xf] %vm19, %v66
    %v75 = vld [vmem:[%s1] sm:$0xf]
    %v76 = vld [vmem:[%s1 + $0x4] sm:$0xf]
    %v77 = vld [vmem:[%s1 + $0x8] sm:$0xf]
    %v78 = vld [vmem:[%s1 + $0xc] sm:$0xf]
    %v79 = vld [vmem:[%s1 + $0x10] sm:$0xf]
    %v80 = vld [vmem:[%s1 + $0x14] sm:$0xf]
    %v81 = vld [vmem:[%s1 + $0x18] sm:$0xf]
    %v82 = vld [vmem:[%s1 + $0x1c] sm:$0xf]
    %v83 = vld [vmem:[%s1 + $0x20] sm:$0xf]
    %v84 = vld [vmem:[%s1 + $0x24] sm:$0xf]
    %v85 = vld [vmem:[%s1 + $0x28] sm:$0xf]
    %v86 = vld [vmem:[%s1 + $0x2c] sm:$0xf]
    %v87 = vld [vmem:[%s1 + $0x30] sm:$0xf]
    %v88 = vld [vmem:[%s1 + $0x34] sm:$0xf]
    %v89 = vld [vmem:[%s1 + $0x38] sm:$0xf]
    %v90 = vld [vmem:[%s1 + $0x3c] sm:$0xf]
    %v91 = vld [vmem:[%s1 + $0x40] sm:$0xf]
    %v92 = vld [vmem:[%s1 + $0x44] sm:$0xf]
    %v93 = vld [vmem:[%s1 + $0x48] sm:$0xf]
    %v94 = vld [vmem:[%s1 + $0x4c] sm:$0xf]
    %v95 = vld [vmem:[%s1 + $0x50] sm:$0xf]
    %v96 = vld [vmem:[%s1 + $0x54] sm:$0xf]
    %v97 = vld [vmem:[%s1 + $0x58] sm:$0xf]
    %v98 = vld [vmem:[%s1 + $0x5c] sm:$0xf]
    %v99 = vld [vmem:[%s1 + $0x60] sm:$0xf]
    %v100 = vld [vmem:[%s1 + $0x64] sm:$0xf]
    %v101 = vld [vmem:[%s1 + $0x68] sm:$0xf]
    %v102 = vld [vmem:[%s1 + $0x6c] sm:$0xf]
    %v103 = vld [vmem:[%s1 + $0x70] sm:$0xf]
    %v104 = vld [vmem:[%s1 + $0x74] sm:$0xf]
    %v105 = vld [vmem:[%s1 + $0x78] sm:$0xf]
    %v106 = vld [vmem:[%s1 + $0x7c] sm:$0xf]
    %v107 = vld [vmem:[%s1 + $0x80] sm:$0xf]
    %v108 = vld [vmem:[%s1 + $0x84] sm:$0xf]
    %v109 = vld [vmem:[%s1 + $0x88] sm:$0xf]
    %v110 = vld [vmem:[%s1 + $0x8c] sm:$0xf]
    %v111 = vld [vmem:[%s1 + $0x90] sm:$0xf]
    %v112 = vld [vmem:[%s1 + $0x94] sm:$0xf]
    %v113 = vld [vmem:[%s1 + $0x98] sm:$0xf]
    %v114 = vld [vmem:[%s1 + $0x9c] sm:$0xf]
    %v115 = vld [vmem:[%s1 + $0xa0] sm:$0xf]
    %v116 = vld [vmem:[%s1 + $0xa4] sm:$0xf]
    %v117 = vld [vmem:[%s1 + $0xa8] sm:$0xf]
    %v118 = vld [vmem:[%s1 + $0xac] sm:$0xf]
    %v119 = vld [vmem:[%s1 + $0xb0] sm:$0xf]
    %v120 = vld [vmem:[%s1 + $0xb4] sm:$0xf]
    %v121 = vld [vmem:[%s1 + $0xb8] sm:$0xf]
    %v122 = vld [vmem:[%s1 + $0xbc] sm:$0xf]
    %v123 = vld [vmem:[%s1 + $0xc0] sm:$0xf]
    %v124 = vld [vmem:[%s1 + $0xc4] sm:$0xf]
    %v125 = vld [vmem:[%s1 + $0xc8] sm:$0xf]
    %v126 = vld [vmem:[%s1 + $0xcc] sm:$0xf]
    %v127 = vld [vmem:[%s1 + $0xd0] sm:$0xf]
    %v128 = vld [vmem:[%s1 + $0xd4] sm:$0xf]
    %vm129 = vcmask 523264
    %130 = vst.msk [vmem:[#allocation3] sm:$0xff] %vm129, 0.0
    %131 = vst.msk [vmem:[#allocation3 + $0x8] sm:$0xff] %vm129, 0.0
    %132 = vst.msk [vmem:[#allocation3 + $0x10] sm:$0xff] %vm129, 0.0
    %133 = vst.msk [vmem:[#allocation3 + $0x18] sm:$0xff] %vm129, 0.0
    %134 = vst.msk [vmem:[#allocation3 + $0x20] sm:$0xff] %vm129, 0.0
    %135 = vst.msk [vmem:[#allocation3 + $0x28] sm:$0xff] %vm129, 0.0
    %136 = vst.msk [vmem:[#allocation3 + $0x30] sm:$0xff] %vm129, 0.0
    %137 = vst.msk [vmem:[#allocation3 + $0x38] sm:$0xff] %vm129, 0.0
    %138 = vst.msk [vmem:[#allocation3 + $0x40] sm:$0xff] %vm129, 0.0
    %139 = vst.msk [vmem:[#allocation3 + $0x48] sm:$0xff] %vm129, 0.0
    %140 = vst.msk [vmem:[#allocation3 + $0x50] sm:$0xff] %vm129, 0.0
    %141 = vst.msk [vmem:[#allocation3 + $0x58] sm:$0xff] %vm129, 0.0
    %142 = vst.msk [vmem:[#allocation3 + $0x60] sm:$0xff] %vm129, 0.0
    %143 = vst.msk [vmem:[#allocation3 + $0x68] sm:$0xff] %vm129, 0.0
    %144 = vst.msk [vmem:[#allocation3 + $0x70] sm:$0xff] %vm129, 0.0
    %145 = vst.msk [vmem:[#allocation3 + $0x78] sm:$0xff] %vm129, 0.0
    %146 = vst.msk [vmem:[#allocation3 + $0x80] sm:$0xff] %vm129, 0.0
    %147 = vst.msk [vmem:[#allocation3 + $0x88] sm:$0xff] %vm129, 0.0
    %v148 = vld [vmem:[#allocation2] sm:$0x8]
    %v149 = vld [vmem:[#allocation2 + $0x4] sm:$0xf]
    %v150 = vld [vmem:[#allocation2 + $0x8] sm:$0xf]
    %v151 = vld [vmem:[#allocation2 + $0xc] sm:$0xf]
    %v152 = vld [vmem:[#allocation2 + $0x10] sm:$0xf]
    %v153 = vld [vmem:[#allocation2 + $0x14] sm:$0xf]
    %v154 = vld [vmem:[#allocation2 + $0x18] sm:$0xf]
    %v155 = vld [vmem:[#allocation2 + $0x1c] sm:$0xf]
    %v156 = vld [vmem:[#allocation2 + $0x20] sm:$0xf]
    %v157 = vld [vmem:[#allocation2 + $0x24] sm:$0xf]
    %v158 = vld [vmem:[#allocation2 + $0x28] sm:$0xf]
    %v159 = vld [vmem:[#allocation2 + $0x2c] sm:$0xf]
    %v160 = vld [vmem:[#allocation2 + $0x30] sm:$0xf]
    %v161 = vld [vmem:[#allocation2 + $0x34] sm:$0xf]
    %v162 = vld [vmem:[#allocation2 + $0x38] sm:$0xf]
    %v163 = vld [vmem:[#allocation2 + $0x3c] sm:$0xf]
    %v164 = vld [vmem:[#allocation2 + $0x40] sm:$0xf]
    %v165 = vld [vmem:[#allocation2 + $0x44] sm:$0xf]
    %v166 = vld [vmem:[#allocation2 + $0x48] sm:$0xf]
    %168 = vset.pattern.permute.xlu0 0
    %169 = vperm.xlu0 %168, %v75
    %v170 = vpop.permute.xlu0 %169
    %v173 = vunpack.c.l.s4 839922192
    %v174 = vunpack.c.0.s8 %v173
    %v175 = vlaneseq
    %v176 = vshrl.u32 %v175, 7
    %v177 = vsub.s32 %v174, %v176
    %v178 = vrot.slane %v170, %v177
    %180 = vset.pattern.permute.xlu0 0
    %181 = vperm.xlu0 %180, %v76
    %v182 = vpop.permute.xlu0 %181
    %v185 = vunpack.c.l.s4 839922192
    %v186 = vunpack.c.0.s8 %v185
    %v187 = vlaneseq
    %v188 = vshrl.u32 %v187, 7
    %v189 = vsub.s32 %v186, %v188
    %v190 = vrot.slane %v182, %v189
    %192 = vset.pattern.permute.xlu0 0
    %193 = vperm.xlu0 %192, %v77
    %v194 = vpop.permute.xlu0 %193
    %v197 = vunpack.c.l.s4 839922192
    %v198 = vunpack.c.0.s8 %v197
    %v199 = vlaneseq
    %v200 = vshrl.u32 %v199, 7
    %v201 = vsub.s32 %v198, %v200
    %v202 = vrot.slane %v194, %v201
    %204 = vset.pattern.permute.xlu0 0
    %205 = vperm.xlu0 %204, %v78
    %v206 = vpop.permute.xlu0 %205
    %v209 = vunpack.c.l.s4 839922192
    %v210 = vunpack.c.0.s8 %v209
    %v211 = vlaneseq
    %v212 = vshrl.u32 %v211, 7
    %v213 = vsub.s32 %v210, %v212
    %v214 = vrot.slane %v206, %v213
    %216 = vset.pattern.permute.xlu0 0
    %217 = vperm.xlu0 %216, %v79
    %v218 = vpop.permute.xlu0 %217
    %v221 = vunpack.c.l.s4 839922192
    %v222 = vunpack.c.0.s8 %v221
    %v223 = vlaneseq
    %v224 = vshrl.u32 %v223, 7
    %v225 = vsub.s32 %v222, %v224
    %v226 = vrot.slane %v218, %v225
    %228 = vset.pattern.permute.xlu0 0
    %229 = vperm.xlu0 %228, %v80
    %v230 = vpop.permute.xlu0 %229
    %v233 = vunpack.c.l.s4 839922192
    %v234 = vunpack.c.0.s8 %v233
    %v235 = vlaneseq
    %v236 = vshrl.u32 %v235, 7
    %v237 = vsub.s32 %v234, %v236
    %v238 = vrot.slane %v230, %v237
    %240 = vset.pattern.permute.xlu0 0
    %241 = vperm.xlu0 %240, %v81
    %v242 = vpop.permute.xlu0 %241
    %v245 = vunpack.c.l.s4 839922192
    %v246 = vunpack.c.0.s8 %v245
    %v247 = vlaneseq
    %v248 = vshrl.u32 %v247, 7
    %v249 = vsub.s32 %v246, %v248
    %v250 = vrot.slane %v242, %v249
    %252 = vset.pattern.permute.xlu0 0
    %253 = vperm.xlu0 %252, %v82
    %v254 = vpop.permute.xlu0 %253
    %v257 = vunpack.c.l.s4 839922192
    %v258 = vunpack.c.0.s8 %v257
    %v259 = vlaneseq
    %v260 = vshrl.u32 %v259, 7
    %v261 = vsub.s32 %v258, %v260
    %v262 = vrot.slane %v254, %v261
    %264 = vset.pattern.permute.xlu0 0
    %265 = vperm.xlu0 %264, %v83
    %v266 = vpop.permute.xlu0 %265
    %v269 = vunpack.c.l.s4 839922192
    %v270 = vunpack.c.0.s8 %v269
    %v271 = vlaneseq
    %v272 = vshrl.u32 %v271, 7
    %v273 = vsub.s32 %v270, %v272
    %v274 = vrot.slane %v266, %v273
    %276 = vset.pattern.permute.xlu0 0
    %277 = vperm.xlu0 %276, %v84
    %v278 = vpop.permute.xlu0 %277
    %v281 = vunpack.c.l.s4 839922192
    %v282 = vunpack.c.0.s8 %v281
    %v283 = vlaneseq
    %v284 = vshrl.u32 %v283, 7
    %v285 = vsub.s32 %v282, %v284
    %v286 = vrot.slane %v278, %v285
    %288 = vset.pattern.permute.xlu0 0
    %289 = vperm.xlu0 %288, %v85
    %v290 = vpop.permute.xlu0 %289
    %v293 = vunpack.c.l.s4 839922192
    %v294 = vunpack.c.0.s8 %v293
    %v295 = vlaneseq
    %v296 = vshrl.u32 %v295, 7
    %v297 = vsub.s32 %v294, %v296
    %v298 = vrot.slane %v290, %v297
    %300 = vset.pattern.permute.xlu0 0
    %301 = vperm.xlu0 %300, %v86
    %v302 = vpop.permute.xlu0 %301
    %v305 = vunpack.c.l.s4 839922192
    %v306 = vunpack.c.0.s8 %v305
    %v307 = vlaneseq
    %v308 = vshrl.u32 %v307, 7
    %v309 = vsub.s32 %v306, %v308
    %v310 = vrot.slane %v302, %v309
    %312 = vset.pattern.permute.xlu0 0
    %313 = vperm.xlu0 %312, %v87
    %v314 = vpop.permute.xlu0 %313
    %v317 = vunpack.c.l.s4 839922192
    %v318 = vunpack.c.0.s8 %v317
    %v319 = vlaneseq
    %v320 = vshrl.u32 %v319, 7
    %v321 = vsub.s32 %v318, %v320
    %v322 = vrot.slane %v314, %v321
    %324 = vset.pattern.permute.xlu0 0
    %325 = vperm.xlu0 %324, %v88
    %v326 = vpop.permute.xlu0 %325
    %v329 = vunpack.c.l.s4 839922192
    %v330 = vunpack.c.0.s8 %v329
    %v331 = vlaneseq
    %v332 = vshrl.u32 %v331, 7
    %v333 = vsub.s32 %v330, %v332
    %v334 = vrot.slane %v326, %v333
    %336 = vset.pattern.permute.xlu0 0
    %337 = vperm.xlu0 %336, %v89
    %v338 = vpop.permute.xlu0 %337
    %v341 = vunpack.c.l.s4 839922192
    %v342 = vunpack.c.0.s8 %v341
    %v343 = vlaneseq
    %v344 = vshrl.u32 %v343, 7
    %v345 = vsub.s32 %v342, %v344
    %v346 = vrot.slane %v338, %v345
    %348 = vset.pattern.permute.xlu0 0
    %349 = vperm.xlu0 %348, %v90
    %v350 = vpop.permute.xlu0 %349
    %v353 = vunpack.c.l.s4 839922192
    %v354 = vunpack.c.0.s8 %v353
    %v355 = vlaneseq
    %v356 = vshrl.u32 %v355, 7
    %v357 = vsub.s32 %v354, %v356
    %v358 = vrot.slane %v350, %v357
    %360 = vset.pattern.permute.xlu0 0
    %361 = vperm.xlu0 %360, %v91
    %v362 = vpop.permute.xlu0 %361
    %v365 = vunpack.c.l.s4 839922192
    %v366 = vunpack.c.0.s8 %v365
    %v367 = vlaneseq
    %v368 = vshrl.u32 %v367, 7
    %v369 = vsub.s32 %v366, %v368
    %v370 = vrot.slane %v362, %v369
    %372 = vset.pattern.permute.xlu0 0
    %373 = vperm.xlu0 %372, %v92
    %v374 = vpop.permute.xlu0 %373
    %v377 = vunpack.c.l.s4 839922192
    %v378 = vunpack.c.0.s8 %v377
    %v379 = vlaneseq
    %v380 = vshrl.u32 %v379, 7
    %v381 = vsub.s32 %v378, %v380
    %v382 = vrot.slane %v374, %v381
    %vm383 = vsmask.f32 3328
    %vm384 = vsmask.f32 7440
    %vm385 = vmor %vm383, %vm384
    %v387 = vshll.u32 %v178, 16
    %v389 = vrot.slane %v387, 5
    %v390 = vshrl.u32 %v178, 16
    %v392 = vrot.slane %v390, 4
    %v393 = vor.u32 %v392, %v389
    %v394 = vrot.slane %v393, 4
    %v396 = vshll.u32 %v190, 16
    %v398 = vrot.slane %v396, 5
    %v399 = vsel %vm385, %v394, %v398
    %v400 = vshrl.u32 %v190, 16
    %v402 = vrot.slane %v400, 4
    %v403 = vor.u32 %v402, %v398
    %v404 = vrot.slane %v403, 4
    %v406 = vshll.u32 %v202, 16
    %v408 = vrot.slane %v406, 5
    %v409 = vsel %vm385, %v404, %v408
    %v410 = vshrl.u32 %v202, 16
    %v412 = vrot.slane %v410, 4
    %v413 = vor.u32 %v412, %v408
    %v414 = vrot.slane %v413, 4
    %v416 = vshll.u32 %v214, 16
    %v418 = vrot.slane %v416, 5
    %v419 = vsel %vm385, %v414, %v418
    %v420 = vshrl.u32 %v214, 16
    %v422 = vrot.slane %v420, 4
    %v423 = vor.u32 %v422, %v418
    %v424 = vrot.slane %v423, 4
    %v426 = vshll.u32 %v226, 16
    %v428 = vrot.slane %v426, 5
    %v429 = vsel %vm385, %v424, %v428
    %v430 = vshrl.u32 %v226, 16
    %v432 = vrot.slane %v430, 4
    %v433 = vor.u32 %v432, %v428
    %v434 = vrot.slane %v433, 4
    %v436 = vshll.u32 %v238, 16
    %v438 = vrot.slane %v436, 5
    %v439 = vsel %vm385, %v434, %v438
    %v440 = vshrl.u32 %v238, 16
    %v442 = vrot.slane %v440, 4
    %v443 = vor.u32 %v442, %v438
    %v444 = vrot.slane %v443, 4
    %v446 = vshll.u32 %v250, 16
    %v448 = vrot.slane %v446, 5
    %v449 = vsel %vm385, %v444, %v448
    %v450 = vshrl.u32 %v250, 16
    %v452 = vrot.slane %v450, 4
    %v453 = vor.u32 %v452, %v448
    %v454 = vrot.slane %v453, 4
    %v456 = vshll.u32 %v262, 16
    %v458 = vrot.slane %v456, 5
    %v459 = vsel %vm385, %v454, %v458
    %v460 = vshrl.u32 %v262, 16
    %v462 = vrot.slane %v460, 4
    %v463 = vor.u32 %v462, %v458
    %v464 = vrot.slane %v463, 4
    %v466 = vshll.u32 %v274, 16
    %v468 = vrot.slane %v466, 5
    %v469 = vsel %vm385, %v464, %v468
    %v470 = vshrl.u32 %v274, 16
    %v472 = vrot.slane %v470, 4
    %v473 = vor.u32 %v472, %v468
    %v474 = vrot.slane %v473, 4
    %v476 = vshll.u32 %v286, 16
    %v478 = vrot.slane %v476, 5
    %v479 = vsel %vm385, %v474, %v478
    %v480 = vshrl.u32 %v286, 16
    %v482 = vrot.slane %v480, 4
    %v483 = vor.u32 %v482, %v478
    %v484 = vrot.slane %v483, 4
    %v486 = vshll.u32 %v298, 16
    %v488 = vrot.slane %v486, 5
    %v489 = vsel %vm385, %v484, %v488
    %v490 = vshrl.u32 %v298, 16
    %v492 = vrot.slane %v490, 4
    %v493 = vor.u32 %v492, %v488
    %v494 = vrot.slane %v493, 4
    %v496 = vshll.u32 %v310, 16
    %v498 = vrot.slane %v496, 5
    %v499 = vsel %vm385, %v494, %v498
    %v500 = vshrl.u32 %v310, 16
    %v502 = vrot.slane %v500, 4
    %v503 = vor.u32 %v502, %v498
    %v504 = vrot.slane %v503, 4
    %v506 = vshll.u32 %v322, 16
    %v508 = vrot.slane %v506, 5
    %v509 = vsel %vm385, %v504, %v508
    %v510 = vshrl.u32 %v322, 16
    %v512 = vrot.slane %v510, 4
    %v513 = vor.u32 %v512, %v508
    %v514 = vrot.slane %v513, 4
    %v516 = vshll.u32 %v334, 16
    %v518 = vrot.slane %v516, 5
    %v519 = vsel %vm385, %v514, %v518
    %v520 = vshrl.u32 %v334, 16
    %v522 = vrot.slane %v520, 4
    %v523 = vor.u32 %v522, %v518
    %v524 = vrot.slane %v523, 4
    %v526 = vshll.u32 %v346, 16
    %v528 = vrot.slane %v526, 5
    %v529 = vsel %vm385, %v524, %v528
    %v530 = vshrl.u32 %v346, 16
    %v532 = vrot.slane %v530, 4
    %v533 = vor.u32 %v532, %v528
    %v534 = vrot.slane %v533, 4
    %v536 = vshll.u32 %v358, 16
    %v538 = vrot.slane %v536, 5
    %v539 = vsel %vm385, %v534, %v538
    %v540 = vshrl.u32 %v358, 16
    %v542 = vrot.slane %v540, 4
    %v543 = vor.u32 %v542, %v538
    %v544 = vrot.slane %v543, 4
    %v546 = vshll.u32 %v370, 16
    %v548 = vrot.slane %v546, 5
    %v549 = vsel %vm385, %v544, %v548
    %v550 = vshrl.u32 %v370, 16
    %v552 = vrot.slane %v550, 4
    %v553 = vor.u32 %v552, %v548
    %v554 = vrot.slane %v553, 4
    %v556 = vshll.u32 %v382, 16
    %v558 = vrot.slane %v556, 5
    %v559 = vsel %vm385, %v554, %v558
    %v560 = vshrl.u32 %v382, 16
    %v562 = vrot.slane %v560, 4
    %v563 = vor.u32 %v562, %v558
    %v564 = vrot.slane %v563, 4
    %v584 = vmul.bf16 %v148, %v389
    %v585 = vmul.bf16 %v149, %v399
    %v586 = vmul.bf16 %v150, %v409
    %v587 = vmul.bf16 %v151, %v419
    %v588 = vmul.bf16 %v152, %v429
    %v589 = vmul.bf16 %v153, %v439
    %v590 = vmul.bf16 %v154, %v449
    %v591 = vmul.bf16 %v155, %v459
    %v592 = vmul.bf16 %v156, %v469
    %v593 = vmul.bf16 %v157, %v479
    %v594 = vmul.bf16 %v158, %v489
    %v595 = vmul.bf16 %v159, %v499
    %v596 = vmul.bf16 %v160, %v509
    %v597 = vmul.bf16 %v161, %v519
    %v598 = vmul.bf16 %v162, %v529
    %v599 = vmul.bf16 %v163, %v539
    %v600 = vmul.bf16 %v164, %v549
    %v601 = vmul.bf16 %v165, %v559
    %v602 = vmul.bf16 %v166, %v564
    %v603 = vld [vmem:[#allocation3] sm:$0xff]
    %v604 = vld [vmem:[#allocation3 + $0x8] sm:$0xff]
    %v605 = vld [vmem:[#allocation3 + $0x10] sm:$0xff]
    %v606 = vld [vmem:[#allocation3 + $0x18] sm:$0xff]
    %v607 = vld [vmem:[#allocation3 + $0x20] sm:$0xff]
    %v608 = vld [vmem:[#allocation3 + $0x28] sm:$0xff]
    %v609 = vld [vmem:[#allocation3 + $0x30] sm:$0xff]
    %v610 = vld [vmem:[#allocation3 + $0x38] sm:$0xff]
    %v611 = vld [vmem:[#allocation3 + $0x40] sm:$0xff]
    %v612 = vld [vmem:[#allocation3 + $0x48] sm:$0xff]
    %v613 = vld [vmem:[#allocation3 + $0x50] sm:$0xff]
    %v614 = vld [vmem:[#allocation3 + $0x58] sm:$0xff]
    %v615 = vld [vmem:[#allocation3 + $0x60] sm:$0xff]
    %v616 = vld [vmem:[#allocation3 + $0x68] sm:$0xff]
    %v617 = vld [vmem:[#allocation3 + $0x70] sm:$0xff]
    %v618 = vld [vmem:[#allocation3 + $0x78] sm:$0xff]
    %v619 = vld [vmem:[#allocation3 + $0x80] sm:$0xff]
    %v620 = vld [vmem:[#allocation3 + $0x88] sm:$0xff]
    %v621 = vld [vmem:[%s2] sm:$0xf]
    %v622 = vld [vmem:[%s2 + $0x4] sm:$0xf]
    %v623 = vld [vmem:[%s2 + $0x8] sm:$0xf]
    %v624 = vld [vmem:[%s2 + $0xc] sm:$0xf]
    %v644 = vunpack.c.l.b16 %v584
    %v645 = vunpack.c.l.b16 %v585
    %v646 = vunpack.c.l.b16 %v586
    %v647 = vunpack.c.l.b16 %v587
    %v648 = vunpack.c.l.b16 %v588
    %v649 = vunpack.c.l.b16 %v589
    %v650 = vunpack.c.l.b16 %v590
    %v651 = vunpack.c.l.b16 %v591
    %v652 = vunpack.c.l.b16 %v592
    %v653 = vunpack.c.l.b16 %v593
    %v654 = vunpack.c.l.b16 %v594
    %v655 = vunpack.c.l.b16 %v595
    %v656 = vunpack.c.l.b16 %v596
    %v657 = vunpack.c.l.b16 %v597
    %v658 = vunpack.c.l.b16 %v598
    %v659 = vunpack.c.l.b16 %v599
    %v660 = vunpack.c.l.b16 %v600
    %v661 = vunpack.c.l.b16 %v601
    %v662 = vunpack.c.l.b16 %v602
    %v663 = vpack.c.b16 %v645, %v644
    %v664 = vpack.c.b16 %v647, %v646
    %v665 = vpack.c.b16 %v649, %v648
    %v666 = vpack.c.b16 %v651, %v650
    %v667 = vpack.c.b16 %v653, %v652
    %v668 = vpack.c.b16 %v655, %v654
    %v669 = vpack.c.b16 %v657, %v656
    %v670 = vpack.c.b16 %v659, %v658
    %v671 = vpack.c.b16 %v661, %v660
    %v672 = vpack.c.b16 %v662, %v662
    %vm673 = vsmask.f32 4352
    %v675 = vshrl.u32 %v663, 16
    %v677 = vrot.slane %v675, 3
    %v678 = vshll.u32 %v663, 16
    %v680 = vrot.slane %v678, 4
    %v681 = vor.u32 %v677, %v680
    %v683 = vshrl.u32 %v664, 16
    %v685 = vrot.slane %v683, 3
    %v686 = vshll.u32 %v664, 16
    %v688 = vrot.slane %v686, 4
    %v689 = vor.u32 %v685, %v688
    %v690 = vsel %vm673, %v681, %v689
    %v692 = vshrl.u32 %v665, 16
    %v694 = vrot.slane %v692, 3
    %v695 = vshll.u32 %v665, 16
    %v697 = vrot.slane %v695, 4
    %v698 = vor.u32 %v694, %v697
    %v699 = vsel %vm673, %v689, %v698
    %v701 = vshrl.u32 %v666, 16
    %v703 = vrot.slane %v701, 3
    %v704 = vshll.u32 %v666, 16
    %v706 = vrot.slane %v704, 4
    %v707 = vor.u32 %v703, %v706
    %v708 = vsel %vm673, %v698, %v707
    %v710 = vshrl.u32 %v667, 16
    %v712 = vrot.slane %v710, 3
    %v713 = vshll.u32 %v667, 16
    %v715 = vrot.slane %v713, 4
    %v716 = vor.u32 %v712, %v715
    %v717 = vsel %vm673, %v707, %v716
    %v719 = vshrl.u32 %v668, 16
    %v721 = vrot.slane %v719, 3
    %v722 = vshll.u32 %v668, 16
    %v724 = vrot.slane %v722, 4
    %v725 = vor.u32 %v721, %v724
    %v726 = vsel %vm673, %v716, %v725
    %v728 = vshrl.u32 %v669, 16
    %v730 = vrot.slane %v728, 3
    %v731 = vshll.u32 %v669, 16
    %v733 = vrot.slane %v731, 4
    %v734 = vor.u32 %v730, %v733
    %v735 = vsel %vm673, %v725, %v734
    %v737 = vshrl.u32 %v670, 16
    %v739 = vrot.slane %v737, 3
    %v740 = vshll.u32 %v670, 16
    %v742 = vrot.slane %v740, 4
    %v743 = vor.u32 %v739, %v742
    %v744 = vsel %vm673, %v734, %v743
    %v746 = vshrl.u32 %v671, 16
    %v748 = vrot.slane %v746, 3
    %v749 = vshll.u32 %v671, 16
    %v751 = vrot.slane %v749, 4
    %v752 = vor.u32 %v748, %v751
    %v753 = vsel %vm673, %v743, %v752
    %v755 = vshrl.u32 %v672, 16
    %v757 = vrot.slane %v755, 3
    %v758 = vshll.u32 %v672, 16
    %v760 = vrot.slane %v758, 4
    %v761 = vor.u32 %v757, %v760
    %v762 = vsel %vm673, %v752, %v761
    %v767 = vunpack.c.l.b16 %v621
    %v768 = vunpack.c.l.b16 %v622
    %v769 = vunpack.c.l.b16 %v623
    %v770 = vunpack.c.l.b16 %v624
    %v771 = vpack.c.b16 %v768, %v767
    %v772 = vpack.c.b16 %v770, %v769
    %vm775 = vcmask 261120
    %v777 = vsel %vm775, %v690, 0
    %v780 = vsel %vm775, %v699, 0
    %v783 = vsel %vm775, %v708, 0
    %v786 = vsel %vm775, %v717, 0
    %v789 = vsel %vm775, %v726, 0
    %v792 = vsel %vm775, %v735, 0
    %v795 = vsel %vm775, %v744, 0
    %v798 = vsel %vm775, %v753, 0
    %v801 = vsel %vm775, %v762, 0
    %803 = vmatprep.subr.bf16.mxu0 0
    %804 = vmatpush1.bf16.msra.mxu0 0
    %805 = vmatprep.subr.bf16.mxu0 0
    %806 = vmatpush1.bf16.msra.mxu0 0
    %807 = vmatprep.subr.bf16.mxu0 0
    %808 = vmatpush1.bf16.msra.mxu0 0
    %809 = vmatprep.subr.bf16.mxu0 0
    %810 = vmatpush1.bf16.msra.mxu0 0
    %811 = vmatprep.subr.bf16.mxu0 0
    %812 = vmatpush1.bf16.msra.mxu0 0
    %813 = vmatprep.subr.bf16.mxu0 0
    %814 = vmatpush1.bf16.msra.mxu0 0
    %815 = vmatprep.subr.bf16.mxu0 0
    %816 = vmatpush1.bf16.msra.mxu0 %v772
    %817 = vmatprep.subr.bf16.mxu0 0
    %818 = vmatpush1.bf16.msra.mxu0 %v771
    %819 = vmatprep.subr.bf16.mxu0 0
    %820 = vmatpush2.bf16.msra.mxu0 0
    %821 = vmatprep.subr.bf16.mxu0 0
    %822 = vmatpush2.bf16.msra.mxu0 0
    %823 = vmatprep.subr.bf16.mxu0 0
    %824 = vmatpush2.bf16.msra.mxu0 0
    %825 = vmatprep.subr.bf16.mxu0 0
    %826 = vmatpush2.bf16.msra.mxu0 0
    %827 = vmatprep.subr.bf16.mxu0 0
    %828 = vmatpush2.bf16.msra.mxu0 0
    %829 = vmatprep.subr.bf16.mxu0 0
    %830 = vmatpush2.bf16.msra.mxu0 0
    %831 = vmatprep.subr.bf16.mxu0 0
    %832 = vmatpush2.bf16.msra.mxu0 0
    %833 = vmatprep.subr.bf16.mxu0 0
    %834 = vmatpush2.bf16.msra.mxu0 0
    %835 = vmatprep.mubr.bf16.mxu0 0
    %836 = vmatmul.mubr.bf16.gmra.mxu0 %v777
    %v837 = vpop.f32.mrf.mxu0
    %v838 = vadd.f32 0.0, %v837
    %v839 = vpop.f32.mrf.mxu0
    %v840 = vpop.f32.mrf.mxu0
    %v841 = vadd.f32 0.0, %v840
    %v842 = vpop.f32.mrf.mxu0
    %843 = vmatprep.mubr.bf16.mxu0 0
    %844 = vmatmul.mubr.bf16.gmra.mxu0 %v780
    %v845 = vpop.f32.mrf.mxu0
    %v846 = vadd.f32 0.0, %v845
    %v847 = vpop.f32.mrf.mxu0
    %v848 = vpop.f32.mrf.mxu0
    %v849 = vadd.f32 0.0, %v848
    %v850 = vpop.f32.mrf.mxu0
    %851 = vmatprep.mubr.bf16.mxu0 0
    %852 = vmatmul.mubr.bf16.gmra.mxu0 %v783
    %v853 = vpop.f32.mrf.mxu0
    %v854 = vadd.f32 0.0, %v853
    %v855 = vpop.f32.mrf.mxu0
    %v856 = vpop.f32.mrf.mxu0
    %v857 = vadd.f32 0.0, %v856
    %v858 = vpop.f32.mrf.mxu0
    %859 = vmatprep.mubr.bf16.mxu0 0
    %860 = vmatmul.mubr.bf16.gmra.mxu0 %v786
    %v861 = vpop.f32.mrf.mxu0
    %v862 = vadd.f32 0.0, %v861
    %v863 = vpop.f32.mrf.mxu0
    %v864 = vpop.f32.mrf.mxu0
    %v865 = vadd.f32 0.0, %v864
    %v866 = vpop.f32.mrf.mxu0
    %867 = vmatprep.mubr.bf16.mxu0 0
    %868 = vmatmul.mubr.bf16.gmra.mxu0 %v789
    %v869 = vpop.f32.mrf.mxu0
    %v870 = vadd.f32 0.0, %v869
    %v871 = vpop.f32.mrf.mxu0
    %v872 = vpop.f32.mrf.mxu0
    %v873 = vadd.f32 0.0, %v872
    %v874 = vpop.f32.mrf.mxu0
    %875 = vmatprep.mubr.bf16.mxu0 0
    %876 = vmatmul.mubr.bf16.gmra.mxu0 %v792
    %v877 = vpop.f32.mrf.mxu0
    %v878 = vadd.f32 0.0, %v877
    %v879 = vpop.f32.mrf.mxu0
    %v880 = vpop.f32.mrf.mxu0
    %v881 = vadd.f32 0.0, %v880
    %v882 = vpop.f32.mrf.mxu0
    %883 = vmatprep.mubr.bf16.mxu0 0
    %884 = vmatmul.mubr.bf16.gmra.mxu0 %v795
    %v885 = vpop.f32.mrf.mxu0
    %v886 = vadd.f32 0.0, %v885
    %v887 = vpop.f32.mrf.mxu0
    %v888 = vpop.f32.mrf.mxu0
    %v889 = vadd.f32 0.0, %v888
    %v890 = vpop.f32.mrf.mxu0
    %891 = vmatprep.mubr.bf16.mxu0 0
    %892 = vmatmul.mubr.bf16.gmra.mxu0 %v798
    %v893 = vpop.f32.mrf.mxu0
    %v894 = vadd.f32 0.0, %v893
    %v895 = vpop.f32.mrf.mxu0
    %v896 = vpop.f32.mrf.mxu0
    %v897 = vadd.f32 0.0, %v896
    %v898 = vpop.f32.mrf.mxu0
    %899 = vmatprep.mubr.bf16.mxu0 0
    %900 = vmatmul.mubr.bf16.gmra.mxu0 %v801
    %v901 = vpop.f32.mrf.mxu0
    %v902 = vadd.f32 0.0, %v901
    %v903 = vpop.f32.mrf.mxu0
    %v904 = vpop.f32.mrf.mxu0
    %v905 = vadd.f32 0.0, %v904
    %v906 = vpop.f32.mrf.mxu0
    %907 = vdwg.mxu0
    %v908 = vadd.f32 %v603, %v838
    %v909 = vadd.f32 %v604, %v841
    %v910 = vadd.f32 %v605, %v846
    %v911 = vadd.f32 %v606, %v849
    %v912 = vadd.f32 %v607, %v854
    %v913 = vadd.f32 %v608, %v857
    %v914 = vadd.f32 %v609, %v862
    %v915 = vadd.f32 %v610, %v865
    %v916 = vadd.f32 %v611, %v870
    %v917 = vadd.f32 %v612, %v873
    %v918 = vadd.f32 %v613, %v878
    %v919 = vadd.f32 %v614, %v881
    %v920 = vadd.f32 %v615, %v886
    %v921 = vadd.f32 %v616, %v889
    %v922 = vadd.f32 %v617, %v894
    %v923 = vadd.f32 %v618, %v897
    %v924 = vadd.f32 %v619, %v902
    %v925 = vadd.f32 %v620, %v905
    %926 = vst.msk [vmem:[#allocation3] sm:$0xff] %vm129, %v908
    %927 = vst.msk [vmem:[#allocation3 + $0x8] sm:$0xff] %vm129, %v909
    %928 = vst.msk [vmem:[#allocation3 + $0x10] sm:$0xff] %vm129, %v910
    %929 = vst.msk [vmem:[#allocation3 + $0x18] sm:$0xff] %vm129, %v911
    %930 = vst.msk [vmem:[#allocation3 + $0x20] sm:$0xff] %vm129, %v912
    %931 = vst.msk [vmem:[#allocation3 + $0x28] sm:$0xff] %vm129, %v913
    %932 = vst.msk [vmem:[#allocation3 + $0x30] sm:$0xff] %vm129, %v914
    %933 = vst.msk [vmem:[#allocation3 + $0x38] sm:$0xff] %vm129, %v915
    %934 = vst.msk [vmem:[#allocation3 + $0x40] sm:$0xff] %vm129, %v916
    %935 = vst.msk [vmem:[#allocation3 + $0x48] sm:$0xff] %vm129, %v917
    %936 = vst.msk [vmem:[#allocation3 + $0x50] sm:$0xff] %vm129, %v918
    %937 = vst.msk [vmem:[#allocation3 + $0x58] sm:$0xff] %vm129, %v919
    %938 = vst.msk [vmem:[#allocation3 + $0x60] sm:$0xff] %vm129, %v920
    %939 = vst.msk [vmem:[#allocation3 + $0x68] sm:$0xff] %vm129, %v921
    %940 = vst.msk [vmem:[#allocation3 + $0x70] sm:$0xff] %vm129, %v922
    %941 = vst.msk [vmem:[#allocation3 + $0x78] sm:$0xff] %vm129, %v923
    %942 = vst.msk [vmem:[#allocation3 + $0x80] sm:$0xff] %vm129, %v924
    %943 = vst.msk [vmem:[#allocation3 + $0x88] sm:$0xff] %vm129, %v925
    %v944 = vld [vmem:[#allocation2 + $0x4] sm:$0xf]
    %v945 = vld [vmem:[#allocation2 + $0x8] sm:$0xf]
    %v946 = vld [vmem:[#allocation2 + $0xc] sm:$0xf]
    %v947 = vld [vmem:[#allocation2 + $0x10] sm:$0xf]
    %v948 = vld [vmem:[#allocation2 + $0x14] sm:$0xf]
    %v949 = vld [vmem:[#allocation2 + $0x18] sm:$0xf]
    %v950 = vld [vmem:[#allocation2 + $0x1c] sm:$0xf]
    %v951 = vld [vmem:[#allocation2 + $0x20] sm:$0xf]
    %v952 = vld [vmem:[#allocation2 + $0x24] sm:$0xf]
    %v953 = vld [vmem:[#allocation2 + $0x28] sm:$0xf]
    %v954 = vld [vmem:[#allocation2 + $0x2c] sm:$0xf]
    %v955 = vld [vmem:[#allocation2 + $0x30] sm:$0xf]
    %v956 = vld [vmem:[#allocation2 + $0x34] sm:$0xf]
    %v957 = vld [vmem:[#allocation2 + $0x38] sm:$0xf]
    %v958 = vld [vmem:[#allocation2 + $0x3c] sm:$0xf]
    %v959 = vld [vmem:[#allocation2 + $0x40] sm:$0xf]
    %v960 = vld [vmem:[#allocation2 + $0x44] sm:$0xf]
    %v961 = vld [vmem:[#allocation2 + $0x48] sm:$0xf]
    %963 = vset.pattern.permute.xlu0 0
    %964 = vperm.xlu0 %963, %v93
    %v965 = vpop.permute.xlu0 %964
    %v968 = vunpack.c.l.s4 839922192
    %v969 = vunpack.c.0.s8 %v968
    %v970 = vlaneseq
    %v971 = vshrl.u32 %v970, 7
    %v972 = vsub.s32 %v969, %v971
    %v973 = vrot.slane %v965, %v972
    %975 = vset.pattern.permute.xlu0 0
    %976 = vperm.xlu0 %975, %v94
    %v977 = vpop.permute.xlu0 %976
    %v980 = vunpack.c.l.s4 839922192
    %v981 = vunpack.c.0.s8 %v980
    %v982 = vlaneseq
    %v983 = vshrl.u32 %v982, 7
    %v984 = vsub.s32 %v981, %v983
    %v985 = vrot.slane %v977, %v984
    %987 = vset.pattern.permute.xlu0 0
    %988 = vperm.xlu0 %987, %v95
    %v989 = vpop.permute.xlu0 %988
    %v992 = vunpack.c.l.s4 839922192
    %v993 = vunpack.c.0.s8 %v992
    %v994 = vlaneseq
    %v995 = vshrl.u32 %v994, 7
    %v996 = vsub.s32 %v993, %v995
    %v997 = vrot.slane %v989, %v996
    %999 = vset.pattern.permute.xlu0 0
    %1000 = vperm.xlu0 %999, %v96
    %v1001 = vpop.permute.xlu0 %1000
    %v1004 = vunpack.c.l.s4 839922192
    %v1005 = vunpack.c.0.s8 %v1004
    %v1006 = vlaneseq
    %v1007 = vshrl.u32 %v1006, 7
    %v1008 = vsub.s32 %v1005, %v1007
    %v1009 = vrot.slane %v1001, %v1008
    %1011 = vset.pattern.permute.xlu0 0
    %1012 = vperm.xlu0 %1011, %v97
    %v1013 = vpop.permute.xlu0 %1012
    %v1016 = vunpack.c.l.s4 839922192
    %v1017 = vunpack.c.0.s8 %v1016
    %v1018 = vlaneseq
    %v1019 = vshrl.u32 %v1018, 7
    %v1020 = vsub.s32 %v1017, %v1019
    %v1021 = vrot.slane %v1013, %v1020
    %1023 = vset.pattern.permute.xlu0 0
    %1024 = vperm.xlu0 %1023, %v98
    %v1025 = vpop.permute.xlu0 %1024
    %v1028 = vunpack.c.l.s4 839922192
    %v1029 = vunpack.c.0.s8 %v1028
    %v1030 = vlaneseq
    %v1031 = vshrl.u32 %v1030, 7
    %v1032 = vsub.s32 %v1029, %v1031
    %v1033 = vrot.slane %v1025, %v1032
    %1035 = vset.pattern.permute.xlu0 0
    %1036 = vperm.xlu0 %1035, %v99
    %v1037 = vpop.permute.xlu0 %1036
    %v1040 = vunpack.c.l.s4 839922192
    %v1041 = vunpack.c.0.s8 %v1040
    %v1042 = vlaneseq
    %v1043 = vshrl.u32 %v1042, 7
    %v1044 = vsub.s32 %v1041, %v1043
    %v1045 = vrot.slane %v1037, %v1044
    %1047 = vset.pattern.permute.xlu0 0
    %1048 = vperm.xlu0 %1047, %v100
    %v1049 = vpop.permute.xlu0 %1048
    %v1052 = vunpack.c.l.s4 839922192
    %v1053 = vunpack.c.0.s8 %v1052
    %v1054 = vlaneseq
    %v1055 = vshrl.u32 %v1054, 7
    %v1056 = vsub.s32 %v1053, %v1055
    %v1057 = vrot.slane %v1049, %v1056
    %1059 = vset.pattern.permute.xlu0 0
    %1060 = vperm.xlu0 %1059, %v101
    %v1061 = vpop.permute.xlu0 %1060
    %v1064 = vunpack.c.l.s4 839922192
    %v1065 = vunpack.c.0.s8 %v1064
    %v1066 = vlaneseq
    %v1067 = vshrl.u32 %v1066, 7
    %v1068 = vsub.s32 %v1065, %v1067
    %v1069 = vrot.slane %v1061, %v1068
    %1071 = vset.pattern.permute.xlu0 0
    %1072 = vperm.xlu0 %1071, %v102
    %v1073 = vpop.permute.xlu0 %1072
    %v1076 = vunpack.c.l.s4 839922192
    %v1077 = vunpack.c.0.s8 %v1076
    %v1078 = vlaneseq
    %v1079 = vshrl.u32 %v1078, 7
    %v1080 = vsub.s32 %v1077, %v1079
    %v1081 = vrot.slane %v1073, %v1080
    %1083 = vset.pattern.permute.xlu0 0
    %1084 = vperm.xlu0 %1083, %v103
    %v1085 = vpop.permute.xlu0 %1084
    %v1088 = vunpack.c.l.s4 839922192
    %v1089 = vunpack.c.0.s8 %v1088
    %v1090 = vlaneseq
    %v1091 = vshrl.u32 %v1090, 7
    %v1092 = vsub.s32 %v1089, %v1091
    %v1093 = vrot.slane %v1085, %v1092
    %1095 = vset.pattern.permute.xlu0 0
    %1096 = vperm.xlu0 %1095, %v104
    %v1097 = vpop.permute.xlu0 %1096
    %v1100 = vunpack.c.l.s4 839922192
    %v1101 = vunpack.c.0.s8 %v1100
    %v1102 = vlaneseq
    %v1103 = vshrl.u32 %v1102, 7
    %v1104 = vsub.s32 %v1101, %v1103
    %v1105 = vrot.slane %v1097, %v1104
    %1107 = vset.pattern.permute.xlu0 0
    %1108 = vperm.xlu0 %1107, %v105
    %v1109 = vpop.permute.xlu0 %1108
    %v1112 = vunpack.c.l.s4 839922192
    %v1113 = vunpack.c.0.s8 %v1112
    %v1114 = vlaneseq
    %v1115 = vshrl.u32 %v1114, 7
    %v1116 = vsub.s32 %v1113, %v1115
    %v1117 = vrot.slane %v1109, %v1116
    %1119 = vset.pattern.permute.xlu0 0
    %1120 = vperm.xlu0 %1119, %v106
    %v1121 = vpop.permute.xlu0 %1120
    %v1124 = vunpack.c.l.s4 839922192
    %v1125 = vunpack.c.0.s8 %v1124
    %v1126 = vlaneseq
    %v1127 = vshrl.u32 %v1126, 7
    %v1128 = vsub.s32 %v1125, %v1127
    %v1129 = vrot.slane %v1121, %v1128
    %1131 = vset.pattern.permute.xlu0 0
    %1132 = vperm.xlu0 %1131, %v107
    %v1133 = vpop.permute.xlu0 %1132
    %v1136 = vunpack.c.l.s4 839922192
    %v1137 = vunpack.c.0.s8 %v1136
    %v1138 = vlaneseq
    %v1139 = vshrl.u32 %v1138, 7
    %v1140 = vsub.s32 %v1137, %v1139
    %v1141 = vrot.slane %v1133, %v1140
    %1143 = vset.pattern.permute.xlu0 0
    %1144 = vperm.xlu0 %1143, %v108
    %v1145 = vpop.permute.xlu0 %1144
    %v1148 = vunpack.c.l.s4 839922192
    %v1149 = vunpack.c.0.s8 %v1148
    %v1150 = vlaneseq
    %v1151 = vshrl.u32 %v1150, 7
    %v1152 = vsub.s32 %v1149, %v1151
    %v1153 = vrot.slane %v1145, %v1152
    %1155 = vset.pattern.permute.xlu0 0
    %1156 = vperm.xlu0 %1155, %v109
    %v1157 = vpop.permute.xlu0 %1156
    %v1160 = vunpack.c.l.s4 839922192
    %v1161 = vunpack.c.0.s8 %v1160
    %v1162 = vlaneseq
    %v1163 = vshrl.u32 %v1162, 7
    %v1164 = vsub.s32 %v1161, %v1163
    %v1165 = vrot.slane %v1157, %v1164
    %1167 = vset.pattern.permute.xlu0 0
    %1168 = vperm.xlu0 %1167, %v110
    %v1169 = vpop.permute.xlu0 %1168
    %v1172 = vunpack.c.l.s4 839922192
    %v1173 = vunpack.c.0.s8 %v1172
    %v1174 = vlaneseq
    %v1175 = vshrl.u32 %v1174, 7
    %v1176 = vsub.s32 %v1173, %v1175
    %v1177 = vrot.slane %v1169, %v1176
    %v1178 = vmul.bf16 %v944, %v973
    %v1179 = vmul.bf16 %v945, %v985
    %v1180 = vmul.bf16 %v946, %v997
    %v1181 = vmul.bf16 %v947, %v1009
    %v1182 = vmul.bf16 %v948, %v1021
    %v1183 = vmul.bf16 %v949, %v1033
    %v1184 = vmul.bf16 %v950, %v1045
    %v1185 = vmul.bf16 %v951, %v1057
    %v1186 = vmul.bf16 %v952, %v1069
    %v1187 = vmul.bf16 %v953, %v1081
    %v1188 = vmul.bf16 %v954, %v1093
    %v1189 = vmul.bf16 %v955, %v1105
    %v1190 = vmul.bf16 %v956, %v1117
    %v1191 = vmul.bf16 %v957, %v1129
    %v1192 = vmul.bf16 %v958, %v1141
    %v1193 = vmul.bf16 %v959, %v1153
    %v1194 = vmul.bf16 %v960, %v1165
    %v1195 = vmul.bf16 %v961, %v1177
    %v1196 = vld [vmem:[#allocation3] sm:$0xff]
    %v1197 = vld [vmem:[#allocation3 + $0x8] sm:$0xff]
    %v1198 = vld [vmem:[#allocation3 + $0x10] sm:$0xff]
    %v1199 = vld [vmem:[#allocation3 + $0x18] sm:$0xff]
    %v1200 = vld [vmem:[#allocation3 + $0x20] sm:$0xff]
    %v1201 = vld [vmem:[#allocation3 + $0x28] sm:$0xff]
    %v1202 = vld [vmem:[#allocation3 + $0x30] sm:$0xff]
    %v1203 = vld [vmem:[#allocation3 + $0x38] sm:$0xff]
    %v1204 = vld [vmem:[#allocation3 + $0x40] sm:$0xff]
    %v1205 = vld [vmem:[#allocation3 + $0x48] sm:$0xff]
    %v1206 = vld [vmem:[#allocation3 + $0x50] sm:$0xff]
    %v1207 = vld [vmem:[#allocation3 + $0x58] sm:$0xff]
    %v1208 = vld [vmem:[#allocation3 + $0x60] sm:$0xff]
    %v1209 = vld [vmem:[#allocation3 + $0x68] sm:$0xff]
    %v1210 = vld [vmem:[#allocation3 + $0x70] sm:$0xff]
    %v1211 = vld [vmem:[#allocation3 + $0x78] sm:$0xff]
    %v1212 = vld [vmem:[#allocation3 + $0x80] sm:$0xff]
    %v1213 = vld [vmem:[#allocation3 + $0x88] sm:$0xff]
    %s1214 = scalar_lea.vmem %s2, 16
    %v1215 = vld [vmem:[%s1214] sm:$0xf]
    %v1216 = vld [vmem:[%s1214 + $0x4] sm:$0xf]
    %v1217 = vld [vmem:[%s1214 + $0x8] sm:$0xf]
    %v1218 = vld [vmem:[%s1214 + $0xc] sm:$0xf]
    %v1237 = vunpack.c.l.b16 %v1178
    %v1238 = vunpack.c.l.b16 %v1179
    %v1239 = vunpack.c.l.b16 %v1180
    %v1240 = vunpack.c.l.b16 %v1181
    %v1241 = vunpack.c.l.b16 %v1182
    %v1242 = vunpack.c.l.b16 %v1183
    %v1243 = vunpack.c.l.b16 %v1184
    %v1244 = vunpack.c.l.b16 %v1185
    %v1245 = vunpack.c.l.b16 %v1186
    %v1246 = vunpack.c.l.b16 %v1187
    %v1247 = vunpack.c.l.b16 %v1188
    %v1248 = vunpack.c.l.b16 %v1189
    %v1249 = vunpack.c.l.b16 %v1190
    %v1250 = vunpack.c.l.b16 %v1191
    %v1251 = vunpack.c.l.b16 %v1192
    %v1252 = vunpack.c.l.b16 %v1193
    %v1253 = vunpack.c.l.b16 %v1194
    %v1254 = vunpack.c.l.b16 %v1195
    %v1255 = vpack.c.b16 %v1238, %v1237
    %v1256 = vpack.c.b16 %v1240, %v1239
    %v1257 = vpack.c.b16 %v1242, %v1241
    %v1258 = vpack.c.b16 %v1244, %v1243
    %v1259 = vpack.c.b16 %v1246, %v1245
    %v1260 = vpack.c.b16 %v1248, %v1247
    %v1261 = vpack.c.b16 %v1250, %v1249
    %v1262 = vpack.c.b16 %v1252, %v1251
    %v1263 = vpack.c.b16 %v1254, %v1253
    %v1268 = vunpack.c.l.b16 %v1215
    %v1269 = vunpack.c.l.b16 %v1216
    %v1270 = vunpack.c.l.b16 %v1217
    %v1271 = vunpack.c.l.b16 %v1218
    %v1272 = vpack.c.b16 %v1269, %v1268
    %v1273 = vpack.c.b16 %v1271, %v1270
    %v1277 = vsel %vm775, %v1255, 0
    %v1280 = vsel %vm775, %v1256, 0
    %v1283 = vsel %vm775, %v1257, 0
    %v1286 = vsel %vm775, %v1258, 0
    %v1289 = vsel %vm775, %v1259, 0
    %v1292 = vsel %vm775, %v1260, 0
    %v1295 = vsel %vm775, %v1261, 0
    %v1298 = vsel %vm775, %v1262, 0
    %v1301 = vsel %vm775, %v1263, 0
    %1303 = vmatprep.subr.bf16.mxu0 0
    %1304 = vmatpush1.bf16.msra.mxu0 0
    %1305 = vmatprep.subr.bf16.mxu0 0
    %1306 = vmatpush1.bf16.msra.mxu0 0
    %1307 = vmatprep.subr.bf16.mxu0 0
    %1308 = vmatpush1.bf16.msra.mxu0 0
    %1309 = vmatprep.subr.bf16.mxu0 0
    %1310 = vmatpush1.bf16.msra.mxu0 0
    %1311 = vmatprep.subr.bf16.mxu0 0
    %1312 = vmatpush1.bf16.msra.mxu0 0
    %1313 = vmatprep.subr.bf16.mxu0 0
    %1314 = vmatpush1.bf16.msra.mxu0 0
    %1315 = vmatprep.subr.bf16.mxu0 0
    %1316 = vmatpush1.bf16.msra.mxu0 %v1273
    %1317 = vmatprep.subr.bf16.mxu0 0
    %1318 = vmatpush1.bf16.msra.mxu0 %v1272
    %1319 = vmatprep.subr.bf16.mxu0 0
    %1320 = vmatpush2.bf16.msra.mxu0 0
    %1321 = vmatprep.subr.bf16.mxu0 0
    %1322 = vmatpush2.bf16.msra.mxu0 0
    %1323 = vmatprep.subr.bf16.mxu0 0
    %1324 = vmatpush2.bf16.msra.mxu0 0
    %1325 = vmatprep.subr.bf16.mxu0 0
    %1326 = vmatpush2.bf16.msra.mxu0 0
    %1327 = vmatprep.subr.bf16.mxu0 0
    %1328 = vmatpush2.bf16.msra.mxu0 0
    %1329 = vmatprep.subr.bf16.mxu0 0
    %1330 = vmatpush2.bf16.msra.mxu0 0
    %1331 = vmatprep.subr.bf16.mxu0 0
    %1332 = vmatpush2.bf16.msra.mxu0 0
    %1333 = vmatprep.subr.bf16.mxu0 0
    %1334 = vmatpush2.bf16.msra.mxu0 0
    %1335 = vmatprep.mubr.bf16.mxu0 0
    %1336 = vmatmul.mubr.bf16.gmra.mxu0 %v1277
    %v1337 = vpop.f32.mrf.mxu0
    %v1338 = vadd.f32 0.0, %v1337
    %v1339 = vpop.f32.mrf.mxu0
    %v1340 = vpop.f32.mrf.mxu0
    %v1341 = vadd.f32 0.0, %v1340
    %v1342 = vpop.f32.mrf.mxu0
    %1343 = vmatprep.mubr.bf16.mxu0 0
    %1344 = vmatmul.mubr.bf16.gmra.mxu0 %v1280
    %v1345 = vpop.f32.mrf.mxu0
    %v1346 = vadd.f32 0.0, %v1345
    %v1347 = vpop.f32.mrf.mxu0
    %v1348 = vpop.f32.mrf.mxu0
    %v1349 = vadd.f32 0.0, %v1348
    %v1350 = vpop.f32.mrf.mxu0
    %1351 = vmatprep.mubr.bf16.mxu0 0
    %1352 = vmatmul.mubr.bf16.gmra.mxu0 %v1283
    %v1353 = vpop.f32.mrf.mxu0
    %v1354 = vadd.f32 0.0, %v1353
    %v1355 = vpop.f32.mrf.mxu0
    %v1356 = vpop.f32.mrf.mxu0
    %v1357 = vadd.f32 0.0, %v1356
    %v1358 = vpop.f32.mrf.mxu0
    %1359 = vmatprep.mubr.bf16.mxu0 0
    %1360 = vmatmul.mubr.bf16.gmra.mxu0 %v1286
    %v1361 = vpop.f32.mrf.mxu0
    %v1362 = vadd.f32 0.0, %v1361
    %v1363 = vpop.f32.mrf.mxu0
    %v1364 = vpop.f32.mrf.mxu0
    %v1365 = vadd.f32 0.0, %v1364
    %v1366 = vpop.f32.mrf.mxu0
    %1367 = vmatprep.mubr.bf16.mxu0 0
    %1368 = vmatmul.mubr.bf16.gmra.mxu0 %v1289
    %v1369 = vpop.f32.mrf.mxu0
    %v1370 = vadd.f32 0.0, %v1369
    %v1371 = vpop.f32.mrf.mxu0
    %v1372 = vpop.f32.mrf.mxu0
    %v1373 = vadd.f32 0.0, %v1372
    %v1374 = vpop.f32.mrf.mxu0
    %1375 = vmatprep.mubr.bf16.mxu0 0
    %1376 = vmatmul.mubr.bf16.gmra.mxu0 %v1292
    %v1377 = vpop.f32.mrf.mxu0
    %v1378 = vadd.f32 0.0, %v1377
    %v1379 = vpop.f32.mrf.mxu0
    %v1380 = vpop.f32.mrf.mxu0
    %v1381 = vadd.f32 0.0, %v1380
    %v1382 = vpop.f32.mrf.mxu0
    %1383 = vmatprep.mubr.bf16.mxu0 0
    %1384 = vmatmul.mubr.bf16.gmra.mxu0 %v1295
    %v1385 = vpop.f32.mrf.mxu0
    %v1386 = vadd.f32 0.0, %v1385
    %v1387 = vpop.f32.mrf.mxu0
    %v1388 = vpop.f32.mrf.mxu0
    %v1389 = vadd.f32 0.0, %v1388
    %v1390 = vpop.f32.mrf.mxu0
    %1391 = vmatprep.mubr.bf16.mxu0 0
    %1392 = vmatmul.mubr.bf16.gmra.mxu0 %v1298
    %v1393 = vpop.f32.mrf.mxu0
    %v1394 = vadd.f32 0.0, %v1393
    %v1395 = vpop.f32.mrf.mxu0
    %v1396 = vpop.f32.mrf.mxu0
    %v1397 = vadd.f32 0.0, %v1396
    %v1398 = vpop.f32.mrf.mxu0
    %1399 = vmatprep.mubr.bf16.mxu0 0
    %1400 = vmatmul.mubr.bf16.gmra.mxu0 %v1301
    %v1401 = vpop.f32.mrf.mxu0
    %v1402 = vadd.f32 0.0, %v1401
    %v1403 = vpop.f32.mrf.mxu0
    %v1404 = vpop.f32.mrf.mxu0
    %v1405 = vadd.f32 0.0, %v1404
    %v1406 = vpop.f32.mrf.mxu0
    %1407 = vdwg.mxu0
    %v1408 = vadd.f32 %v1196, %v1338
    %v1409 = vadd.f32 %v1197, %v1341
    %v1410 = vadd.f32 %v1198, %v1346
    %v1411 = vadd.f32 %v1199, %v1349
    %v1412 = vadd.f32 %v1200, %v1354
    %v1413 = vadd.f32 %v1201, %v1357
    %v1414 = vadd.f32 %v1202, %v1362
    %v1415 = vadd.f32 %v1203, %v1365
    %v1416 = vadd.f32 %v1204, %v1370
    %v1417 = vadd.f32 %v1205, %v1373
    %v1418 = vadd.f32 %v1206, %v1378
    %v1419 = vadd.f32 %v1207, %v1381
    %v1420 = vadd.f32 %v1208, %v1386
    %v1421 = vadd.f32 %v1209, %v1389
    %v1422 = vadd.f32 %v1210, %v1394
    %v1423 = vadd.f32 %v1211, %v1397
    %v1424 = vadd.f32 %v1212, %v1402
    %v1425 = vadd.f32 %v1213, %v1405
    %1426 = vst.msk [vmem:[#allocation3] sm:$0xff] %vm129, %v1408
    %1427 = vst.msk [vmem:[#allocation3 + $0x8] sm:$0xff] %vm129, %v1409
    %1428 = vst.msk [vmem:[#allocation3 + $0x10] sm:$0xff] %vm129, %v1410
    %1429 = vst.msk [vmem:[#allocation3 + $0x18] sm:$0xff] %vm129, %v1411
    %1430 = vst.msk [vmem:[#allocation3 + $0x20] sm:$0xff] %vm129, %v1412
    %1431 = vst.msk [vmem:[#allocation3 + $0x28] sm:$0xff] %vm129, %v1413
    %1432 = vst.msk [vmem:[#allocation3 + $0x30] sm:$0xff] %vm129, %v1414
    %1433 = vst.msk [vmem:[#allocation3 + $0x38] sm:$0xff] %vm129, %v1415
    %1434 = vst.msk [vmem:[#allocation3 + $0x40] sm:$0xff] %vm129, %v1416
    %1435 = vst.msk [vmem:[#allocation3 + $0x48] sm:$0xff] %vm129, %v1417
    %1436 = vst.msk [vmem:[#allocation3 + $0x50] sm:$0xff] %vm129, %v1418
    %1437 = vst.msk [vmem:[#allocation3 + $0x58] sm:$0xff] %vm129, %v1419
    %1438 = vst.msk [vmem:[#allocation3 + $0x60] sm:$0xff] %vm129, %v1420
    %1439 = vst.msk [vmem:[#allocation3 + $0x68] sm:$0xff] %vm129, %v1421
    %1440 = vst.msk [vmem:[#allocation3 + $0x70] sm:$0xff] %vm129, %v1422
    %1441 = vst.msk [vmem:[#allocation3 + $0x78] sm:$0xff] %vm129, %v1423
    %1442 = vst.msk [vmem:[#allocation3 + $0x80] sm:$0xff] %vm129, %v1424
    %1443 = vst.msk [vmem:[#allocation3 + $0x88] sm:$0xff] %vm129, %v1425
    %v1444 = vld [vmem:[#allocation2 + $0x4] sm:$0xf]
    %v1445 = vld [vmem:[#allocation2 + $0x8] sm:$0xf]
    %v1446 = vld [vmem:[#allocation2 + $0xc] sm:$0xf]
    %v1447 = vld [vmem:[#allocation2 + $0x10] sm:$0xf]
    %v1448 = vld [vmem:[#allocation2 + $0x14] sm:$0xf]
    %v1449 = vld [vmem:[#allocation2 + $0x18] sm:$0xf]
    %v1450 = vld [vmem:[#allocation2 + $0x1c] sm:$0xf]
    %v1451 = vld [vmem:[#allocation2 + $0x20] sm:$0xf]
    %v1452 = vld [vmem:[#allocation2 + $0x24] sm:$0xf]
    %v1453 = vld [vmem:[#allocation2 + $0x28] sm:$0xf]
    %v1454 = vld [vmem:[#allocation2 + $0x2c] sm:$0xf]
    %v1455 = vld [vmem:[#allocation2 + $0x30] sm:$0xf]
    %v1456 = vld [vmem:[#allocation2 + $0x34] sm:$0xf]
    %v1457 = vld [vmem:[#allocation2 + $0x38] sm:$0xf]
    %v1458 = vld [vmem:[#allocation2 + $0x3c] sm:$0xf]
    %v1459 = vld [vmem:[#allocation2 + $0x40] sm:$0xf]
    %v1460 = vld [vmem:[#allocation2 + $0x44] sm:$0xf]
    %v1461 = vld [vmem:[#allocation2 + $0x48] sm:$0xf]
    %v1462 = vld [vmem:[#allocation2 + $0x4c] sm:$0x1]
    %1464 = vset.pattern.permute.xlu0 0
    %1465 = vperm.xlu0 %1464, %v111
    %v1466 = vpop.permute.xlu0 %1465
    %v1469 = vunpack.c.l.s4 839922192
    %v1470 = vunpack.c.0.s8 %v1469
    %v1471 = vlaneseq
    %v1472 = vshrl.u32 %v1471, 7
    %v1473 = vsub.s32 %v1470, %v1472
    %v1474 = vrot.slane %v1466, %v1473
    %1476 = vset.pattern.permute.xlu0 0
    %1477 = vperm.xlu0 %1476, %v112
    %v1478 = vpop.permute.xlu0 %1477
    %v1481 = vunpack.c.l.s4 839922192
    %v1482 = vunpack.c.0.s8 %v1481
    %v1483 = vlaneseq
    %v1484 = vshrl.u32 %v1483, 7
    %v1485 = vsub.s32 %v1482, %v1484
    %v1486 = vrot.slane %v1478, %v1485
    %1488 = vset.pattern.permute.xlu0 0
    %1489 = vperm.xlu0 %1488, %v113
    %v1490 = vpop.permute.xlu0 %1489
    %v1493 = vunpack.c.l.s4 839922192
    %v1494 = vunpack.c.0.s8 %v1493
    %v1495 = vlaneseq
    %v1496 = vshrl.u32 %v1495, 7
    %v1497 = vsub.s32 %v1494, %v1496
    %v1498 = vrot.slane %v1490, %v1497
    %1500 = vset.pattern.permute.xlu0 0
    %1501 = vperm.xlu0 %1500, %v114
    %v1502 = vpop.permute.xlu0 %1501
    %v1505 = vunpack.c.l.s4 839922192
    %v1506 = vunpack.c.0.s8 %v1505
    %v1507 = vlaneseq
    %v1508 = vshrl.u32 %v1507, 7
    %v1509 = vsub.s32 %v1506, %v1508
    %v1510 = vrot.slane %v1502, %v1509
    %1512 = vset.pattern.permute.xlu0 0
    %1513 = vperm.xlu0 %1512, %v115
    %v1514 = vpop.permute.xlu0 %1513
    %v1517 = vunpack.c.l.s4 839922192
    %v1518 = vunpack.c.0.s8 %v1517
    %v1519 = vlaneseq
    %v1520 = vshrl.u32 %v1519, 7
    %v1521 = vsub.s32 %v1518, %v1520
    %v1522 = vrot.slane %v1514, %v1521
    %1524 = vset.pattern.permute.xlu0 0
    %1525 = vperm.xlu0 %1524, %v116
    %v1526 = vpop.permute.xlu0 %1525
    %v1529 = vunpack.c.l.s4 839922192
    %v1530 = vunpack.c.0.s8 %v1529
    %v1531 = vlaneseq
    %v1532 = vshrl.u32 %v1531, 7
    %v1533 = vsub.s32 %v1530, %v1532
    %v1534 = vrot.slane %v1526, %v1533
    %1536 = vset.pattern.permute.xlu0 0
    %1537 = vperm.xlu0 %1536, %v117
    %v1538 = vpop.permute.xlu0 %1537
    %v1541 = vunpack.c.l.s4 839922192
    %v1542 = vunpack.c.0.s8 %v1541
    %v1543 = vlaneseq
    %v1544 = vshrl.u32 %v1543, 7
    %v1545 = vsub.s32 %v1542, %v1544
    %v1546 = vrot.slane %v1538, %v1545
    %1548 = vset.pattern.permute.xlu0 0
    %1549 = vperm.xlu0 %1548, %v118
    %v1550 = vpop.permute.xlu0 %1549
    %v1553 = vunpack.c.l.s4 839922192
    %v1554 = vunpack.c.0.s8 %v1553
    %v1555 = vlaneseq
    %v1556 = vshrl.u32 %v1555, 7
    %v1557 = vsub.s32 %v1554, %v1556
    %v1558 = vrot.slane %v1550, %v1557
    %1560 = vset.pattern.permute.xlu0 0
    %1561 = vperm.xlu0 %1560, %v119
    %v1562 = vpop.permute.xlu0 %1561
    %v1565 = vunpack.c.l.s4 839922192
    %v1566 = vunpack.c.0.s8 %v1565
    %v1567 = vlaneseq
    %v1568 = vshrl.u32 %v1567, 7
    %v1569 = vsub.s32 %v1566, %v1568
    %v1570 = vrot.slane %v1562, %v1569
    %1572 = vset.pattern.permute.xlu0 0
    %1573 = vperm.xlu0 %1572, %v120
    %v1574 = vpop.permute.xlu0 %1573
    %v1577 = vunpack.c.l.s4 839922192
    %v1578 = vunpack.c.0.s8 %v1577
    %v1579 = vlaneseq
    %v1580 = vshrl.u32 %v1579, 7
    %v1581 = vsub.s32 %v1578, %v1580
    %v1582 = vrot.slane %v1574, %v1581
    %1584 = vset.pattern.permute.xlu0 0
    %1585 = vperm.xlu0 %1584, %v121
    %v1586 = vpop.permute.xlu0 %1585
    %v1589 = vunpack.c.l.s4 839922192
    %v1590 = vunpack.c.0.s8 %v1589
    %v1591 = vlaneseq
    %v1592 = vshrl.u32 %v1591, 7
    %v1593 = vsub.s32 %v1590, %v1592
    %v1594 = vrot.slane %v1586, %v1593
    %1596 = vset.pattern.permute.xlu0 0
    %1597 = vperm.xlu0 %1596, %v122
    %v1598 = vpop.permute.xlu0 %1597
    %v1601 = vunpack.c.l.s4 839922192
    %v1602 = vunpack.c.0.s8 %v1601
    %v1603 = vlaneseq
    %v1604 = vshrl.u32 %v1603, 7
    %v1605 = vsub.s32 %v1602, %v1604
    %v1606 = vrot.slane %v1598, %v1605
    %1608 = vset.pattern.permute.xlu0 0
    %1609 = vperm.xlu0 %1608, %v123
    %v1610 = vpop.permute.xlu0 %1609
    %v1613 = vunpack.c.l.s4 839922192
    %v1614 = vunpack.c.0.s8 %v1613
    %v1615 = vlaneseq
    %v1616 = vshrl.u32 %v1615, 7
    %v1617 = vsub.s32 %v1614, %v1616
    %v1618 = vrot.slane %v1610, %v1617
    %1620 = vset.pattern.permute.xlu0 0
    %1621 = vperm.xlu0 %1620, %v124
    %v1622 = vpop.permute.xlu0 %1621
    %v1625 = vunpack.c.l.s4 839922192
    %v1626 = vunpack.c.0.s8 %v1625
    %v1627 = vlaneseq
    %v1628 = vshrl.u32 %v1627, 7
    %v1629 = vsub.s32 %v1626, %v1628
    %v1630 = vrot.slane %v1622, %v1629
    %1632 = vset.pattern.permute.xlu0 0
    %1633 = vperm.xlu0 %1632, %v125
    %v1634 = vpop.permute.xlu0 %1633
    %v1637 = vunpack.c.l.s4 839922192
    %v1638 = vunpack.c.0.s8 %v1637
    %v1639 = vlaneseq
    %v1640 = vshrl.u32 %v1639, 7
    %v1641 = vsub.s32 %v1638, %v1640
    %v1642 = vrot.slane %v1634, %v1641
    %1644 = vset.pattern.permute.xlu0 0
    %1645 = vperm.xlu0 %1644, %v126
    %v1646 = vpop.permute.xlu0 %1645
    %v1649 = vunpack.c.l.s4 839922192
    %v1650 = vunpack.c.0.s8 %v1649
    %v1651 = vlaneseq
    %v1652 = vshrl.u32 %v1651, 7
    %v1653 = vsub.s32 %v1650, %v1652
    %v1654 = vrot.slane %v1646, %v1653
    %1656 = vset.pattern.permute.xlu0 0
    %1657 = vperm.xlu0 %1656, %v127
    %v1658 = vpop.permute.xlu0 %1657
    %v1661 = vunpack.c.l.s4 839922192
    %v1662 = vunpack.c.0.s8 %v1661
    %v1663 = vlaneseq
    %v1664 = vshrl.u32 %v1663, 7
    %v1665 = vsub.s32 %v1662, %v1664
    %v1666 = vrot.slane %v1658, %v1665
    %1668 = vset.pattern.permute.xlu0 0
    %1669 = vperm.xlu0 %1668, %v128
    %v1670 = vpop.permute.xlu0 %1669
    %v1673 = vunpack.c.l.s4 839922192
    %v1674 = vunpack.c.0.s8 %v1673
    %v1675 = vlaneseq
    %v1676 = vshrl.u32 %v1675, 7
    %v1677 = vsub.s32 %v1674, %v1676
    %v1678 = vrot.slane %v1670, %v1677
    %vm1679 = vsmask.f32 256
    %vm1680 = vsmask.f32 4368
    %vm1681 = vmor %vm1679, %vm1680
    %v1683 = vshrl.u32 %v1474, 16
    %v1685 = vrot.slane %v1683, 7
    %v1686 = vshll.u32 %v1474, 16
    %v1688 = vor.u32 %v1685, %v1686
    %v1689 = vrot.slane %v1685, 4
    %v1691 = vshrl.u32 %v1486, 16
    %v1693 = vrot.slane %v1691, 7
    %v1694 = vshll.u32 %v1486, 16
    %v1696 = vor.u32 %v1693, %v1694
    %v1697 = vsel %vm1681, %v1689, %v1696
    %v1698 = vrot.slane %v1693, 4
    %v1700 = vshrl.u32 %v1498, 16
    %v1702 = vrot.slane %v1700, 7
    %v1703 = vshll.u32 %v1498, 16
    %v1705 = vor.u32 %v1702, %v1703
    %v1706 = vsel %vm1681, %v1698, %v1705
    %v1707 = vrot.slane %v1702, 4
    %v1709 = vshrl.u32 %v1510, 16
    %v1711 = vrot.slane %v1709, 7
    %v1712 = vshll.u32 %v1510, 16
    %v1714 = vor.u32 %v1711, %v1712
    %v1715 = vsel %vm1681, %v1707, %v1714
    %v1716 = vrot.slane %v1711, 4
    %v1718 = vshrl.u32 %v1522, 16
    %v1720 = vrot.slane %v1718, 7
    %v1721 = vshll.u32 %v1522, 16
    %v1723 = vor.u32 %v1720, %v1721
    %v1724 = vsel %vm1681, %v1716, %v1723
    %v1725 = vrot.slane %v1720, 4
    %v1727 = vshrl.u32 %v1534, 16
    %v1729 = vrot.slane %v1727, 7
    %v1730 = vshll.u32 %v1534, 16
    %v1732 = vor.u32 %v1729, %v1730
    %v1733 = vsel %vm1681, %v1725, %v1732
    %v1734 = vrot.slane %v1729, 4
    %v1736 = vshrl.u32 %v1546, 16
    %v1738 = vrot.slane %v1736, 7
    %v1739 = vshll.u32 %v1546, 16
    %v1741 = vor.u32 %v1738, %v1739
    %v1742 = vsel %vm1681, %v1734, %v1741
    %v1743 = vrot.slane %v1738, 4
    %v1745 = vshrl.u32 %v1558, 16
    %v1747 = vrot.slane %v1745, 7
    %v1748 = vshll.u32 %v1558, 16
    %v1750 = vor.u32 %v1747, %v1748
    %v1751 = vsel %vm1681, %v1743, %v1750
    %v1752 = vrot.slane %v1747, 4
    %v1754 = vshrl.u32 %v1570, 16
    %v1756 = vrot.slane %v1754, 7
    %v1757 = vshll.u32 %v1570, 16
    %v1759 = vor.u32 %v1756, %v1757
    %v1760 = vsel %vm1681, %v1752, %v1759
    %v1761 = vrot.slane %v1756, 4
    %v1763 = vshrl.u32 %v1582, 16
    %v1765 = vrot.slane %v1763, 7
    %v1766 = vshll.u32 %v1582, 16
    %v1768 = vor.u32 %v1765, %v1766
    %v1769 = vsel %vm1681, %v1761, %v1768
    %v1770 = vrot.slane %v1765, 4
    %v1772 = vshrl.u32 %v1594, 16
    %v1774 = vrot.slane %v1772, 7
    %v1775 = vshll.u32 %v1594, 16
    %v1777 = vor.u32 %v1774, %v1775
    %v1778 = vsel %vm1681, %v1770, %v1777
    %v1779 = vrot.slane %v1774, 4
    %v1781 = vshrl.u32 %v1606, 16
    %v1783 = vrot.slane %v1781, 7
    %v1784 = vshll.u32 %v1606, 16
    %v1786 = vor.u32 %v1783, %v1784
    %v1787 = vsel %vm1681, %v1779, %v1786
    %v1788 = vrot.slane %v1783, 4
    %v1790 = vshrl.u32 %v1618, 16
    %v1792 = vrot.slane %v1790, 7
    %v1793 = vshll.u32 %v1618, 16
    %v1795 = vor.u32 %v1792, %v1793
    %v1796 = vsel %vm1681, %v1788, %v1795
    %v1797 = vrot.slane %v1792, 4
    %v1799 = vshrl.u32 %v1630, 16
    %v1801 = vrot.slane %v1799, 7
    %v1802 = vshll.u32 %v1630, 16
    %v1804 = vor.u32 %v1801, %v1802
    %v1805 = vsel %vm1681, %v1797, %v1804
    %v1806 = vrot.slane %v1801, 4
    %v1808 = vshrl.u32 %v1642, 16
    %v1810 = vrot.slane %v1808, 7
    %v1811 = vshll.u32 %v1642, 16
    %v1813 = vor.u32 %v1810, %v1811
    %v1814 = vsel %vm1681, %v1806, %v1813
    %v1815 = vrot.slane %v1810, 4
    %v1817 = vshrl.u32 %v1654, 16
    %v1819 = vrot.slane %v1817, 7
    %v1820 = vshll.u32 %v1654, 16
    %v1822 = vor.u32 %v1819, %v1820
    %v1823 = vsel %vm1681, %v1815, %v1822
    %v1824 = vrot.slane %v1819, 4
    %v1826 = vshrl.u32 %v1666, 16
    %v1828 = vrot.slane %v1826, 7
    %v1829 = vshll.u32 %v1666, 16
    %v1831 = vor.u32 %v1828, %v1829
    %v1832 = vsel %vm1681, %v1824, %v1831
    %v1833 = vrot.slane %v1828, 4
    %v1835 = vshrl.u32 %v1678, 16
    %v1837 = vrot.slane %v1835, 7
    %v1838 = vshll.u32 %v1678, 16
    %v1840 = vor.u32 %v1837, %v1838
    %v1841 = vsel %vm1681, %v1833, %v1840
    %v1842 = vrot.slane %v1837, 4
    %v1862 = vmul.bf16 %v1444, %v1688
    %v1863 = vmul.bf16 %v1445, %v1697
    %v1864 = vmul.bf16 %v1446, %v1706
    %v1865 = vmul.bf16 %v1447, %v1715
    %v1866 = vmul.bf16 %v1448, %v1724
    %v1867 = vmul.bf16 %v1449, %v1733
    %v1868 = vmul.bf16 %v1450, %v1742
    %v1869 = vmul.bf16 %v1451, %v1751
    %v1870 = vmul.bf16 %v1452, %v1760
    %v1871 = vmul.bf16 %v1453, %v1769
    %v1872 = vmul.bf16 %v1454, %v1778
    %v1873 = vmul.bf16 %v1455, %v1787
    %v1874 = vmul.bf16 %v1456, %v1796
    %v1875 = vmul.bf16 %v1457, %v1805
    %v1876 = vmul.bf16 %v1458, %v1814
    %v1877 = vmul.bf16 %v1459, %v1823
    %v1878 = vmul.bf16 %v1460, %v1832
    %v1879 = vmul.bf16 %v1461, %v1841
    %v1880 = vmul.bf16 %v1462, %v1842
    %v1881 = vld [vmem:[#allocation3] sm:$0xff]
    %v1882 = vld [vmem:[#allocation3 + $0x8] sm:$0xff]
    %v1883 = vld [vmem:[#allocation3 + $0x10] sm:$0xff]
    %v1884 = vld [vmem:[#allocation3 + $0x18] sm:$0xff]
    %v1885 = vld [vmem:[#allocation3 + $0x20] sm:$0xff]
    %v1886 = vld [vmem:[#allocation3 + $0x28] sm:$0xff]
    %v1887 = vld [vmem:[#allocation3 + $0x30] sm:$0xff]
    %v1888 = vld [vmem:[#allocation3 + $0x38] sm:$0xff]
    %v1889 = vld [vmem:[#allocation3 + $0x40] sm:$0xff]
    %v1890 = vld [vmem:[#allocation3 + $0x48] sm:$0xff]
    %v1891 = vld [vmem:[#allocation3 + $0x50] sm:$0xff]
    %v1892 = vld [vmem:[#allocation3 + $0x58] sm:$0xff]
    %v1893 = vld [vmem:[#allocation3 + $0x60] sm:$0xff]
    %v1894 = vld [vmem:[#allocation3 + $0x68] sm:$0xff]
    %v1895 = vld [vmem:[#allocation3 + $0x70] sm:$0xff]
    %v1896 = vld [vmem:[#allocation3 + $0x78] sm:$0xff]
    %v1897 = vld [vmem:[#allocation3 + $0x80] sm:$0xff]
    %v1898 = vld [vmem:[#allocation3 + $0x88] sm:$0xff]
    %s1899 = scalar_lea.vmem %s2, 32
    %v1900 = vld [vmem:[%s1899] sm:$0xf]
    %v1901 = vld [vmem:[%s1899 + $0x4] sm:$0xf]
    %v1902 = vld [vmem:[%s1899 + $0x8] sm:$0xf]
    %v1903 = vld [vmem:[%s1899 + $0xc] sm:$0xf]
    %v1923 = vunpack.c.l.b16 %v1862
    %v1924 = vunpack.c.l.b16 %v1863
    %v1925 = vunpack.c.l.b16 %v1864
    %v1926 = vunpack.c.l.b16 %v1865
    %v1927 = vunpack.c.l.b16 %v1866
    %v1928 = vunpack.c.l.b16 %v1867
    %v1929 = vunpack.c.l.b16 %v1868
    %v1930 = vunpack.c.l.b16 %v1869
    %v1931 = vunpack.c.l.b16 %v1870
    %v1932 = vunpack.c.l.b16 %v1871
    %v1933 = vunpack.c.l.b16 %v1872
    %v1934 = vunpack.c.l.b16 %v1873
    %v1935 = vunpack.c.l.b16 %v1874
    %v1936 = vunpack.c.l.b16 %v1875
    %v1937 = vunpack.c.l.b16 %v1876
    %v1938 = vunpack.c.l.b16 %v1877
    %v1939 = vunpack.c.l.b16 %v1878
    %v1940 = vunpack.c.l.b16 %v1879
    %v1941 = vunpack.c.l.b16 %v1880
    %v1942 = vpack.c.b16 %v1924, %v1923
    %v1943 = vpack.c.b16 %v1926, %v1925
    %v1944 = vpack.c.b16 %v1928, %v1927
    %v1945 = vpack.c.b16 %v1930, %v1929
    %v1946 = vpack.c.b16 %v1932, %v1931
    %v1947 = vpack.c.b16 %v1934, %v1933
    %v1948 = vpack.c.b16 %v1936, %v1935
    %v1949 = vpack.c.b16 %v1938, %v1937
    %v1950 = vpack.c.b16 %v1940, %v1939
    %v1951 = vpack.c.b16 %v1941, %v1941
    %vm1952 = vsmask.f32 7424
    %v1954 = vshrl.u32 %v1942, 16
    %v1956 = vshll.u32 %v1942, 16
    %v1958 = vrot.slane %v1956, 1
    %v1959 = vor.u32 %v1954, %v1958
    %v1961 = vshll.u32 %v1943, 16
    %v1963 = vrot.slane %v1961, 1
    %v1964 = vsel %vm1952, %v1959, %v1963
    %v1965 = vshrl.u32 %v1943, 16
    %v1967 = vor.u32 %v1965, %v1963
    %v1969 = vshll.u32 %v1944, 16
    %v1971 = vrot.slane %v1969, 1
    %v1972 = vsel %vm1952, %v1967, %v1971
    %v1973 = vshrl.u32 %v1944, 16
    %v1975 = vor.u32 %v1973, %v1971
    %v1977 = vshll.u32 %v1945, 16
    %v1979 = vrot.slane %v1977, 1
    %v1980 = vsel %vm1952, %v1975, %v1979
    %v1981 = vshrl.u32 %v1945, 16
    %v1983 = vor.u32 %v1981, %v1979
    %v1985 = vshll.u32 %v1946, 16
    %v1987 = vrot.slane %v1985, 1
    %v1988 = vsel %vm1952, %v1983, %v1987
    %v1989 = vshrl.u32 %v1946, 16
    %v1991 = vor.u32 %v1989, %v1987
    %v1993 = vshll.u32 %v1947, 16
    %v1995 = vrot.slane %v1993, 1
    %v1996 = vsel %vm1952, %v1991, %v1995
    %v1997 = vshrl.u32 %v1947, 16
    %v1999 = vor.u32 %v1997, %v1995
    %v2001 = vshll.u32 %v1948, 16
    %v2003 = vrot.slane %v2001, 1
    %v2004 = vsel %vm1952, %v1999, %v2003
    %v2005 = vshrl.u32 %v1948, 16
    %v2007 = vor.u32 %v2005, %v2003
    %v2009 = vshll.u32 %v1949, 16
    %v2011 = vrot.slane %v2009, 1
    %v2012 = vsel %vm1952, %v2007, %v2011
    %v2013 = vshrl.u32 %v1949, 16
    %v2015 = vor.u32 %v2013, %v2011
    %v2017 = vshll.u32 %v1950, 16
    %v2019 = vrot.slane %v2017, 1
    %v2020 = vsel %vm1952, %v2015, %v2019
    %v2021 = vshrl.u32 %v1950, 16
    %v2023 = vor.u32 %v2021, %v2019
    %v2025 = vshll.u32 %v1951, 16
    %v2027 = vrot.slane %v2025, 1
    %v2028 = vsel %vm1952, %v2023, %v2027
    %v2033 = vunpack.c.l.b16 %v1900
    %v2034 = vunpack.c.l.b16 %v1901
    %v2035 = vunpack.c.l.b16 %v1902
    %v2036 = vunpack.c.l.b16 %v1903
    %v2037 = vpack.c.b16 %v2034, %v2033
    %v2038 = vpack.c.b16 %v2036, %v2035
    %v2042 = vsel %vm775, %v1964, 0
    %v2045 = vsel %vm775, %v1972, 0
    %v2048 = vsel %vm775, %v1980, 0
    %v2051 = vsel %vm775, %v1988, 0
    %v2054 = vsel %vm775, %v1996, 0
    %v2057 = vsel %vm775, %v2004, 0
    %v2060 = vsel %vm775, %v2012, 0
    %v2063 = vsel %vm775, %v2020, 0
    %v2066 = vsel %vm775, %v2028, 0
    %2068 = vmatprep.subr.bf16.mxu0 0
    %2069 = vmatpush1.bf16.msra.mxu0 0
    %2070 = vmatprep.subr.bf16.mxu0 0
    %2071 = vmatpush1.bf16.msra.mxu0 0
    %2072 = vmatprep.subr.bf16.mxu0 0
    %2073 = vmatpush1.bf16.msra.mxu0 0
    %2074 = vmatprep.subr.bf16.mxu0 0
    %2075 = vmatpush1.bf16.msra.mxu0 0
    %2076 = vmatprep.subr.bf16.mxu0 0
    %2077 = vmatpush1.bf16.msra.mxu0 0
    %2078 = vmatprep.subr.bf16.mxu0 0
    %2079 = vmatpush1.bf16.msra.mxu0 0
    %2080 = vmatprep.subr.bf16.mxu0 0
    %2081 = vmatpush1.bf16.msra.mxu0 %v2038
    %2082 = vmatprep.subr.bf16.mxu0 0
    %2083 = vmatpush1.bf16.msra.mxu0 %v2037
    %2084 = vmatprep.subr.bf16.mxu0 0
    %2085 = vmatpush2.bf16.msra.mxu0 0
    %2086 = vmatprep.subr.bf16.mxu0 0
    %2087 = vmatpush2.bf16.msra.mxu0 0
    %2088 = vmatprep.subr.bf16.mxu0 0
    %2089 = vmatpush2.bf16.msra.mxu0 0
    %2090 = vmatprep.subr.bf16.mxu0 0
    %2091 = vmatpush2.bf16.msra.mxu0 0
    %2092 = vmatprep.subr.bf16.mxu0 0
    %2093 = vmatpush2.bf16.msra.mxu0 0
    %2094 = vmatprep.subr.bf16.mxu0 0
    %2095 = vmatpush2.bf16.msra.mxu0 0
    %2096 = vmatprep.subr.bf16.mxu0 0
    %2097 = vmatpush2.bf16.msra.mxu0 0
    %2098 = vmatprep.subr.bf16.mxu0 0
    %2099 = vmatpush2.bf16.msra.mxu0 0
    %2100 = vmatprep.mubr.bf16.mxu0 0
    %2101 = vmatmul.mubr.bf16.gmra.mxu0 %v2042
    %v2102 = vpop.f32.mrf.mxu0
    %v2103 = vadd.f32 0.0, %v2102
    %v2104 = vpop.f32.mrf.mxu0
    %v2105 = vpop.f32.mrf.mxu0
    %v2106 = vadd.f32 0.0, %v2105
    %v2107 = vpop.f32.mrf.mxu0
    %2108 = vmatprep.mubr.bf16.mxu0 0
    %2109 = vmatmul.mubr.bf16.gmra.mxu0 %v2045
    %v2110 = vpop.f32.mrf.mxu0
    %v2111 = vadd.f32 0.0, %v2110
    %v2112 = vpop.f32.mrf.mxu0
    %v2113 = vpop.f32.mrf.mxu0
    %v2114 = vadd.f32 0.0, %v2113
    %v2115 = vpop.f32.mrf.mxu0
    %2116 = vmatprep.mubr.bf16.mxu0 0
    %2117 = vmatmul.mubr.bf16.gmra.mxu0 %v2048
    %v2118 = vpop.f32.mrf.mxu0
    %v2119 = vadd.f32 0.0, %v2118
    %v2120 = vpop.f32.mrf.mxu0
    %v2121 = vpop.f32.mrf.mxu0
    %v2122 = vadd.f32 0.0, %v2121
    %v2123 = vpop.f32.mrf.mxu0
    %2124 = vmatprep.mubr.bf16.mxu0 0
    %2125 = vmatmul.mubr.bf16.gmra.mxu0 %v2051
    %v2126 = vpop.f32.mrf.mxu0
    %v2127 = vadd.f32 0.0, %v2126
    %v2128 = vpop.f32.mrf.mxu0
    %v2129 = vpop.f32.mrf.mxu0
    %v2130 = vadd.f32 0.0, %v2129
    %v2131 = vpop.f32.mrf.mxu0
    %2132 = vmatprep.mubr.bf16.mxu0 0
    %2133 = vmatmul.mubr.bf16.gmra.mxu0 %v2054
    %v2134 = vpop.f32.mrf.mxu0
    %v2135 = vadd.f32 0.0, %v2134
    %v2136 = vpop.f32.mrf.mxu0
    %v2137 = vpop.f32.mrf.mxu0
    %v2138 = vadd.f32 0.0, %v2137
    %v2139 = vpop.f32.mrf.mxu0
    %2140 = vmatprep.mubr.bf16.mxu0 0
    %2141 = vmatmul.mubr.bf16.gmra.mxu0 %v2057
    %v2142 = vpop.f32.mrf.mxu0
    %v2143 = vadd.f32 0.0, %v2142
    %v2144 = vpop.f32.mrf.mxu0
    %v2145 = vpop.f32.mrf.mxu0
    %v2146 = vadd.f32 0.0, %v2145
    %v2147 = vpop.f32.mrf.mxu0
    %2148 = vmatprep.mubr.bf16.mxu0 0
    %2149 = vmatmul.mubr.bf16.gmra.mxu0 %v2060
    %v2150 = vpop.f32.mrf.mxu0
    %v2151 = vadd.f32 0.0, %v2150
    %v2152 = vpop.f32.mrf.mxu0
    %v2153 = vpop.f32.mrf.mxu0
    %v2154 = vadd.f32 0.0, %v2153
    %v2155 = vpop.f32.mrf.mxu0
    %2156 = vmatprep.mubr.bf16.mxu0 0
    %2157 = vmatmul.mubr.bf16.gmra.mxu0 %v2063
    %v2158 = vpop.f32.mrf.mxu0
    %v2159 = vadd.f32 0.0, %v2158
    %v2160 = vpop.f32.mrf.mxu0
    %v2161 = vpop.f32.mrf.mxu0
    %v2162 = vadd.f32 0.0, %v2161
    %v2163 = vpop.f32.mrf.mxu0
    %2164 = vmatprep.mubr.bf16.mxu0 0
    %2165 = vmatmul.mubr.bf16.gmra.mxu0 %v2066
    %v2166 = vpop.f32.mrf.mxu0
    %v2167 = vadd.f32 0.0, %v2166
    %v2168 = vpop.f32.mrf.mxu0
    %v2169 = vpop.f32.mrf.mxu0
    %v2170 = vadd.f32 0.0, %v2169
    %v2171 = vpop.f32.mrf.mxu0
    %2172 = vdwg.mxu0
    %v2173 = vadd.f32 %v1881, %v2103
    %v2174 = vadd.f32 %v1882, %v2106
    %v2175 = vadd.f32 %v1883, %v2111
    %v2176 = vadd.f32 %v1884, %v2114
    %v2177 = vadd.f32 %v1885, %v2119
    %v2178 = vadd.f32 %v1886, %v2122
    %v2179 = vadd.f32 %v1887, %v2127
    %v2180 = vadd.f32 %v1888, %v2130
    %v2181 = vadd.f32 %v1889, %v2135
    %v2182 = vadd.f32 %v1890, %v2138
    %v2183 = vadd.f32 %v1891, %v2143
    %v2184 = vadd.f32 %v1892, %v2146
    %v2185 = vadd.f32 %v1893, %v2151
    %v2186 = vadd.f32 %v1894, %v2154
    %v2187 = vadd.f32 %v1895, %v2159
    %v2188 = vadd.f32 %v1896, %v2162
    %v2189 = vadd.f32 %v1897, %v2167
    %v2190 = vadd.f32 %v1898, %v2170
    %2191 = vst.msk [vmem:[#allocation3] sm:$0xff] %vm129, %v2173
    %2192 = vst.msk [vmem:[#allocation3 + $0x8] sm:$0xff] %vm129, %v2174
    %2193 = vst.msk [vmem:[#allocation3 + $0x10] sm:$0xff] %vm129, %v2175
    %2194 = vst.msk [vmem:[#allocation3 + $0x18] sm:$0xff] %vm129, %v2176
    %2195 = vst.msk [vmem:[#allocation3 + $0x20] sm:$0xff] %vm129, %v2177
    %2196 = vst.msk [vmem:[#allocation3 + $0x28] sm:$0xff] %vm129, %v2178
    %2197 = vst.msk [vmem:[#allocation3 + $0x30] sm:$0xff] %vm129, %v2179
    %2198 = vst.msk [vmem:[#allocation3 + $0x38] sm:$0xff] %vm129, %v2180
    %2199 = vst.msk [vmem:[#allocation3 + $0x40] sm:$0xff] %vm129, %v2181
    %2200 = vst.msk [vmem:[#allocation3 + $0x48] sm:$0xff] %vm129, %v2182
    %2201 = vst.msk [vmem:[#allocation3 + $0x50] sm:$0xff] %vm129, %v2183
    %2202 = vst.msk [vmem:[#allocation3 + $0x58] sm:$0xff] %vm129, %v2184
    %2203 = vst.msk [vmem:[#allocation3 + $0x60] sm:$0xff] %vm129, %v2185
    %2204 = vst.msk [vmem:[#allocation3 + $0x68] sm:$0xff] %vm129, %v2186
    %2205 = vst.msk [vmem:[#allocation3 + $0x70] sm:$0xff] %vm129, %v2187
    %2206 = vst.msk [vmem:[#allocation3 + $0x78] sm:$0xff] %vm129, %v2188
    %2207 = vst.msk [vmem:[#allocation3 + $0x80] sm:$0xff] %vm129, %v2189
    %2208 = vst.msk [vmem:[#allocation3 + $0x88] sm:$0xff] %vm129, %v2190
    %v2209 = vld [vmem:[#allocation2 + $0x4] sm:$0x8]
    %v2210 = vld [vmem:[#allocation2 + $0x8] sm:$0xf]
    %v2211 = vld [vmem:[#allocation2 + $0xc] sm:$0xf]
    %v2212 = vld [vmem:[#allocation2 + $0x10] sm:$0xf]
    %v2213 = vld [vmem:[#allocation2 + $0x14] sm:$0xf]
    %v2214 = vld [vmem:[#allocation2 + $0x18] sm:$0xf]
    %v2215 = vld [vmem:[#allocation2 + $0x1c] sm:$0xf]
    %v2216 = vld [vmem:[#allocation2 + $0x20] sm:$0xf]
    %v2217 = vld [vmem:[#allocation2 + $0x24] sm:$0xf]
    %v2218 = vld [vmem:[#allocation2 + $0x28] sm:$0xf]
    %v2219 = vld [vmem:[#allocation2 + $0x2c] sm:$0xf]
    %v2220 = vld [vmem:[#allocation2 + $0x30] sm:$0xf]
    %v2221 = vld [vmem:[#allocation2 + $0x34] sm:$0xf]
    %v2222 = vld [vmem:[#allocation2 + $0x38] sm:$0xf]
    %v2223 = vld [vmem:[#allocation2 + $0x3c] sm:$0xf]
    %v2224 = vld [vmem:[#allocation2 + $0x40] sm:$0xf]
    %v2225 = vld [vmem:[#allocation2 + $0x44] sm:$0xf]
    %v2226 = vld [vmem:[#allocation2 + $0x48] sm:$0xf]
    %v2227 = vld [vmem:[#allocation2 + $0x4c] sm:$0xf]
    %v2228 = vmul.bf16 %v2209, %v389
    %v2229 = vmul.bf16 %v2210, %v399
    %v2230 = vmul.bf16 %v2211, %v409
    %v2231 = vmul.bf16 %v2212, %v419
    %v2232 = vmul.bf16 %v2213, %v429
    %v2233 = vmul.bf16 %v2214, %v439
    %v2234 = vmul.bf16 %v2215, %v449
    %v2235 = vmul.bf16 %v2216, %v459
    %v2236 = vmul.bf16 %v2217, %v469
    %v2237 = vmul.bf16 %v2218, %v479
    %v2238 = vmul.bf16 %v2219, %v489
    %v2239 = vmul.bf16 %v2220, %v499
    %v2240 = vmul.bf16 %v2221, %v509
    %v2241 = vmul.bf16 %v2222, %v519
    %v2242 = vmul.bf16 %v2223, %v529
    %v2243 = vmul.bf16 %v2224, %v539
    %v2244 = vmul.bf16 %v2225, %v549
    %v2245 = vmul.bf16 %v2226, %v559
    %v2246 = vmul.bf16 %v2227, %v564
    %v2247 = vld [vmem:[#allocation3] sm:$0xff]
    %v2248 = vld [vmem:[#allocation3 + $0x8] sm:$0xff]
    %v2249 = vld [vmem:[#allocation3 + $0x10] sm:$0xff]
    %v2250 = vld [vmem:[#allocation3 + $0x18] sm:$0xff]
    %v2251 = vld [vmem:[#allocation3 + $0x20] sm:$0xff]
    %v2252 = vld [vmem:[#allocation3 + $0x28] sm:$0xff]
    %v2253 = vld [vmem:[#allocation3 + $0x30] sm:$0xff]
    %v2254 = vld [vmem:[#allocation3 + $0x38] sm:$0xff]
    %v2255 = vld [vmem:[#allocation3 + $0x40] sm:$0xff]
    %v2256 = vld [vmem:[#allocation3 + $0x48] sm:$0xff]
    %v2257 = vld [vmem:[#allocation3 + $0x50] sm:$0xff]
    %v2258 = vld [vmem:[#allocation3 + $0x58] sm:$0xff]
    %v2259 = vld [vmem:[#allocation3 + $0x60] sm:$0xff]
    %v2260 = vld [vmem:[#allocation3 + $0x68] sm:$0xff]
    %v2261 = vld [vmem:[#allocation3 + $0x70] sm:$0xff]
    %v2262 = vld [vmem:[#allocation3 + $0x78] sm:$0xff]
    %v2263 = vld [vmem:[#allocation3 + $0x80] sm:$0xff]
    %v2264 = vld [vmem:[#allocation3 + $0x88] sm:$0xff]
    %s2265 = scalar_lea.vmem %s2, 48
    %v2266 = vld [vmem:[%s2265] sm:$0xf]
    %v2267 = vld [vmem:[%s2265 + $0x4] sm:$0xf]
    %v2268 = vld [vmem:[%s2265 + $0x8] sm:$0xf]
    %v2269 = vld [vmem:[%s2265 + $0xc] sm:$0xf]
    %v2289 = vunpack.c.l.b16 %v2228
    %v2290 = vunpack.c.l.b16 %v2229
    %v2291 = vunpack.c.l.b16 %v2230
    %v2292 = vunpack.c.l.b16 %v2231
    %v2293 = vunpack.c.l.b16 %v2232
    %v2294 = vunpack.c.l.b16 %v2233
    %v2295 = vunpack.c.l.b16 %v2234
    %v2296 = vunpack.c.l.b16 %v2235
    %v2297 = vunpack.c.l.b16 %v2236
    %v2298 = vunpack.c.l.b16 %v2237
    %v2299 = vunpack.c.l.b16 %v2238
    %v2300 = vunpack.c.l.b16 %v2239
    %v2301 = vunpack.c.l.b16 %v2240
    %v2302 = vunpack.c.l.b16 %v2241
    %v2303 = vunpack.c.l.b16 %v2242
    %v2304 = vunpack.c.l.b16 %v2243
    %v2305 = vunpack.c.l.b16 %v2244
    %v2306 = vunpack.c.l.b16 %v2245
    %v2307 = vunpack.c.l.b16 %v2246
    %v2308 = vpack.c.b16 %v2290, %v2289
    %v2309 = vpack.c.b16 %v2292, %v2291
    %v2310 = vpack.c.b16 %v2294, %v2293
    %v2311 = vpack.c.b16 %v2296, %v2295
    %v2312 = vpack.c.b16 %v2298, %v2297
    %v2313 = vpack.c.b16 %v2300, %v2299
    %v2314 = vpack.c.b16 %v2302, %v2301
    %v2315 = vpack.c.b16 %v2304, %v2303
    %v2316 = vpack.c.b16 %v2306, %v2305
    %v2317 = vpack.c.b16 %v2307, %v2307
    %v2319 = vshrl.u32 %v2308, 16
    %v2321 = vrot.slane %v2319, 3
    %v2322 = vshll.u32 %v2308, 16
    %v2324 = vrot.slane %v2322, 4
    %v2325 = vor.u32 %v2321, %v2324
    %v2327 = vshrl.u32 %v2309, 16
    %v2329 = vrot.slane %v2327, 3
    %v2330 = vshll.u32 %v2309, 16
    %v2332 = vrot.slane %v2330, 4
    %v2333 = vor.u32 %v2329, %v2332
    %v2334 = vsel %vm673, %v2325, %v2333
    %v2336 = vshrl.u32 %v2310, 16
    %v2338 = vrot.slane %v2336, 3
    %v2339 = vshll.u32 %v2310, 16
    %v2341 = vrot.slane %v2339, 4
    %v2342 = vor.u32 %v2338, %v2341
    %v2343 = vsel %vm673, %v2333, %v2342
    %v2345 = vshrl.u32 %v2311, 16
    %v2347 = vrot.slane %v2345, 3
    %v2348 = vshll.u32 %v2311, 16
    %v2350 = vrot.slane %v2348, 4
    %v2351 = vor.u32 %v2347, %v2350
    %v2352 = vsel %vm673, %v2342, %v2351
    %v2354 = vshrl.u32 %v2312, 16
    %v2356 = vrot.slane %v2354, 3
    %v2357 = vshll.u32 %v2312, 16
    %v2359 = vrot.slane %v2357, 4
    %v2360 = vor.u32 %v2356, %v2359
    %v2361 = vsel %vm673, %v2351, %v2360
    %v2363 = vshrl.u32 %v2313, 16
    %v2365 = vrot.slane %v2363, 3
    %v2366 = vshll.u32 %v2313, 16
    %v2368 = vrot.slane %v2366, 4
    %v2369 = vor.u32 %v2365, %v2368
    %v2370 = vsel %vm673, %v2360, %v2369
    %v2372 = vshrl.u32 %v2314, 16
    %v2374 = vrot.slane %v2372, 3
    %v2375 = vshll.u32 %v2314, 16
    %v2377 = vrot.slane %v2375, 4
    %v2378 = vor.u32 %v2374, %v2377
    %v2379 = vsel %vm673, %v2369, %v2378
    %v2381 = vshrl.u32 %v2315, 16
    %v2383 = vrot.slane %v2381, 3
    %v2384 = vshll.u32 %v2315, 16
    %v2386 = vrot.slane %v2384, 4
    %v2387 = vor.u32 %v2383, %v2386
    %v2388 = vsel %vm673, %v2378, %v2387
    %v2390 = vshrl.u32 %v2316, 16
    %v2392 = vrot.slane %v2390, 3
    %v2393 = vshll.u32 %v2316, 16
    %v2395 = vrot.slane %v2393, 4
    %v2396 = vor.u32 %v2392, %v2395
    %v2397 = vsel %vm673, %v2387, %v2396
    %v2399 = vshrl.u32 %v2317, 16
    %v2401 = vrot.slane %v2399, 3
    %v2402 = vshll.u32 %v2317, 16
    %v2404 = vrot.slane %v2402, 4
    %v2405 = vor.u32 %v2401, %v2404
    %v2406 = vsel %vm673, %v2396, %v2405
    %v2411 = vunpack.c.l.b16 %v2266
    %v2412 = vunpack.c.l.b16 %v2267
    %v2413 = vunpack.c.l.b16 %v2268
    %v2414 = vunpack.c.l.b16 %v2269
    %v2415 = vpack.c.b16 %v2412, %v2411
    %v2416 = vpack.c.b16 %v2414, %v2413
    %v2420 = vsel %vm775, %v2334, 0
    %v2423 = vsel %vm775, %v2343, 0
    %v2426 = vsel %vm775, %v2352, 0
    %v2429 = vsel %vm775, %v2361, 0
    %v2432 = vsel %vm775, %v2370, 0
    %v2435 = vsel %vm775, %v2379, 0
    %v2438 = vsel %vm775, %v2388, 0
    %v2441 = vsel %vm775, %v2397, 0
    %v2444 = vsel %vm775, %v2406, 0
    %2446 = vmatprep.subr.bf16.mxu0 0
    %2447 = vmatpush1.bf16.msra.mxu0 0
    %2448 = vmatprep.subr.bf16.mxu0 0
    %2449 = vmatpush1.bf16.msra.mxu0 0
    %2450 = vmatprep.subr.bf16.mxu0 0
    %2451 = vmatpush1.bf16.msra.mxu0 0
    %2452 = vmatprep.subr.bf16.mxu0 0
    %2453 = vmatpush1.bf16.msra.mxu0 0
    %2454 = vmatprep.subr.bf16.mxu0 0
    %2455 = vmatpush1.bf16.msra.mxu0 0
    %2456 = vmatprep.subr.bf16.mxu0 0
    %2457 = vmatpush1.bf16.msra.mxu0 0
    %2458 = vmatprep.subr.bf16.mxu0 0
    %2459 = vmatpush1.bf16.msra.mxu0 %v2416
    %2460 = vmatprep.subr.bf16.mxu0 0
    %2461 = vmatpush1.bf16.msra.mxu0 %v2415
    %2462 = vmatprep.subr.bf16.mxu0 0
    %2463 = vmatpush2.bf16.msra.mxu0 0
    %2464 = vmatprep.subr.bf16.mxu0 0
    %2465 = vmatpush2.bf16.msra.mxu0 0
    %2466 = vmatprep.subr.bf16.mxu0 0
    %2467 = vmatpush2.bf16.msra.mxu0 0
    %2468 = vmatprep.subr.bf16.mxu0 0
    %2469 = vmatpush2.bf16.msra.mxu0 0
    %2470 = vmatprep.subr.bf16.mxu0 0
    %2471 = vmatpush2.bf16.msra.mxu0 0
    %2472 = vmatprep.subr.bf16.mxu0 0
    %2473 = vmatpush2.bf16.msra.mxu0 0
    %2474 = vmatprep.subr.bf16.mxu0 0
    %2475 = vmatpush2.bf16.msra.mxu0 0
    %2476 = vmatprep.subr.bf16.mxu0 0
    %2477 = vmatpush2.bf16.msra.mxu0 0
    %2478 = vmatprep.mubr.bf16.mxu0 0
    %2479 = vmatmul.mubr.bf16.gmra.mxu0 %v2420
    %v2480 = vpop.f32.mrf.mxu0
    %v2481 = vadd.f32 0.0, %v2480
    %v2482 = vpop.f32.mrf.mxu0
    %v2483 = vpop.f32.mrf.mxu0
    %v2484 = vadd.f32 0.0, %v2483
    %v2485 = vpop.f32.mrf.mxu0
    %2486 = vmatprep.mubr.bf16.mxu0 0
    %2487 = vmatmul.mubr.bf16.gmra.mxu0 %v2423
    %v2488 = vpop.f32.mrf.mxu0
    %v2489 = vadd.f32 0.0, %v2488
    %v2490 = vpop.f32.mrf.mxu0
    %v2491 = vpop.f32.mrf.mxu0
    %v2492 = vadd.f32 0.0, %v2491
    %v2493 = vpop.f32.mrf.mxu0
    %2494 = vmatprep.mubr.bf16.mxu0 0
    %2495 = vmatmul.mubr.bf16.gmra.mxu0 %v2426
    %v2496 = vpop.f32.mrf.mxu0
    %v2497 = vadd.f32 0.0, %v2496
    %v2498 = vpop.f32.mrf.mxu0
    %v2499 = vpop.f32.mrf.mxu0
    %v2500 = vadd.f32 0.0, %v2499
    %v2501 = vpop.f32.mrf.mxu0
    %2502 = vmatprep.mubr.bf16.mxu0 0
    %2503 = vmatmul.mubr.bf16.gmra.mxu0 %v2429
    %v2504 = vpop.f32.mrf.mxu0
    %v2505 = vadd.f32 0.0, %v2504
    %v2506 = vpop.f32.mrf.mxu0
    %v2507 = vpop.f32.mrf.mxu0
    %v2508 = vadd.f32 0.0, %v2507
    %v2509 = vpop.f32.mrf.mxu0
    %2510 = vmatprep.mubr.bf16.mxu0 0
    %2511 = vmatmul.mubr.bf16.gmra.mxu0 %v2432
    %v2512 = vpop.f32.mrf.mxu0
    %v2513 = vadd.f32 0.0, %v2512
    %v2514 = vpop.f32.mrf.mxu0
    %v2515 = vpop.f32.mrf.mxu0
    %v2516 = vadd.f32 0.0, %v2515
    %v2517 = vpop.f32.mrf.mxu0
    %2518 = vmatprep.mubr.bf16.mxu0 0
    %2519 = vmatmul.mubr.bf16.gmra.mxu0 %v2435
    %v2520 = vpop.f32.mrf.mxu0
    %v2521 = vadd.f32 0.0, %v2520
    %v2522 = vpop.f32.mrf.mxu0
    %v2523 = vpop.f32.mrf.mxu0
    %v2524 = vadd.f32 0.0, %v2523
    %v2525 = vpop.f32.mrf.mxu0
    %2526 = vmatprep.mubr.bf16.mxu0 0
    %2527 = vmatmul.mubr.bf16.gmra.mxu0 %v2438
    %v2528 = vpop.f32.mrf.mxu0
    %v2529 = vadd.f32 0.0, %v2528
    %v2530 = vpop.f32.mrf.mxu0
    %v2531 = vpop.f32.mrf.mxu0
    %v2532 = vadd.f32 0.0, %v2531
    %v2533 = vpop.f32.mrf.mxu0
    %2534 = vmatprep.mubr.bf16.mxu0 0
    %2535 = vmatmul.mubr.bf16.gmra.mxu0 %v2441
    %v2536 = vpop.f32.mrf.mxu0
    %v2537 = vadd.f32 0.0, %v2536
    %v2538 = vpop.f32.mrf.mxu0
    %v2539 = vpop.f32.mrf.mxu0
    %v2540 = vadd.f32 0.0, %v2539
    %v2541 = vpop.f32.mrf.mxu0
    %2542 = vmatprep.mubr.bf16.mxu0 0
    %2543 = vmatmul.mubr.bf16.gmra.mxu0 %v2444
    %v2544 = vpop.f32.mrf.mxu0
    %v2545 = vadd.f32 0.0, %v2544
    %v2546 = vpop.f32.mrf.mxu0
    %v2547 = vpop.f32.mrf.mxu0
    %v2548 = vadd.f32 0.0, %v2547
    %v2549 = vpop.f32.mrf.mxu0
    %2550 = vdwg.mxu0
    %v2551 = vadd.f32 %v2247, %v2481
    %v2552 = vadd.f32 %v2248, %v2484
    %v2553 = vadd.f32 %v2249, %v2489
    %v2554 = vadd.f32 %v2250, %v2492
    %v2555 = vadd.f32 %v2251, %v2497
    %v2556 = vadd.f32 %v2252, %v2500
    %v2557 = vadd.f32 %v2253, %v2505
    %v2558 = vadd.f32 %v2254, %v2508
    %v2559 = vadd.f32 %v2255, %v2513
    %v2560 = vadd.f32 %v2256, %v2516
    %v2561 = vadd.f32 %v2257, %v2521
    %v2562 = vadd.f32 %v2258, %v2524
    %v2563 = vadd.f32 %v2259, %v2529
    %v2564 = vadd.f32 %v2260, %v2532
    %v2565 = vadd.f32 %v2261, %v2537
    %v2566 = vadd.f32 %v2262, %v2540
    %v2567 = vadd.f32 %v2263, %v2545
    %v2568 = vadd.f32 %v2264, %v2548
    %2569 = vst.msk [vmem:[#allocation3] sm:$0xff] %vm129, %v2551
    %2570 = vst.msk [vmem:[#allocation3 + $0x8] sm:$0xff] %vm129, %v2552
    %2571 = vst.msk [vmem:[#allocation3 + $0x10] sm:$0xff] %vm129, %v2553
    %2572 = vst.msk [vmem:[#allocation3 + $0x18] sm:$0xff] %vm129, %v2554
    %2573 = vst.msk [vmem:[#allocation3 + $0x20] sm:$0xff] %vm129, %v2555
    %2574 = vst.msk [vmem:[#allocation3 + $0x28] sm:$0xff] %vm129, %v2556
    %2575 = vst.msk [vmem:[#allocation3 + $0x30] sm:$0xff] %vm129, %v2557
    %2576 = vst.msk [vmem:[#allocation3 + $0x38] sm:$0xff] %vm129, %v2558
    %2577 = vst.msk [vmem:[#allocation3 + $0x40] sm:$0xff] %vm129, %v2559
    %2578 = vst.msk [vmem:[#allocation3 + $0x48] sm:$0xff] %vm129, %v2560
    %2579 = vst.msk [vmem:[#allocation3 + $0x50] sm:$0xff] %vm129, %v2561
    %2580 = vst.msk [vmem:[#allocation3 + $0x58] sm:$0xff] %vm129, %v2562
    %2581 = vst.msk [vmem:[#allocation3 + $0x60] sm:$0xff] %vm129, %v2563
    %2582 = vst.msk [vmem:[#allocation3 + $0x68] sm:$0xff] %vm129, %v2564
    %2583 = vst.msk [vmem:[#allocation3 + $0x70] sm:$0xff] %vm129, %v2565
    %2584 = vst.msk [vmem:[#allocation3 + $0x78] sm:$0xff] %vm129, %v2566
    %2585 = vst.msk [vmem:[#allocation3 + $0x80] sm:$0xff] %vm129, %v2567
    %2586 = vst.msk [vmem:[#allocation3 + $0x88] sm:$0xff] %vm129, %v2568
    %v2587 = vld [vmem:[#allocation2 + $0x8] sm:$0xf]
    %v2588 = vld [vmem:[#allocation2 + $0xc] sm:$0xf]
    %v2589 = vld [vmem:[#allocation2 + $0x10] sm:$0xf]
    %v2590 = vld [vmem:[#allocation2 + $0x14] sm:$0xf]
    %v2591 = vld [vmem:[#allocation2 + $0x18] sm:$0xf]
    %v2592 = vld [vmem:[#allocation2 + $0x1c] sm:$0xf]
    %v2593 = vld [vmem:[#allocation2 + $0x20] sm:$0xf]
    %v2594 = vld [vmem:[#allocation2 + $0x24] sm:$0xf]
    %v2595 = vld [vmem:[#allocation2 + $0x28] sm:$0xf]
    %v2596 = vld [vmem:[#allocation2 + $0x2c] sm:$0xf]
    %v2597 = vld [vmem:[#allocation2 + $0x30] sm:$0xf]
    %v2598 = vld [vmem:[#allocation2 + $0x34] sm:$0xf]
    %v2599 = vld [vmem:[#allocation2 + $0x38] sm:$0xf]
    %v2600 = vld [vmem:[#allocation2 + $0x3c] sm:$0xf]
    %v2601 = vld [vmem:[#allocation2 + $0x40] sm:$0xf]
    %v2602 = vld [vmem:[#allocation2 + $0x44] sm:$0xf]
    %v2603 = vld [vmem:[#allocation2 + $0x48] sm:$0xf]
    %v2604 = vld [vmem:[#allocation2 + $0x4c] sm:$0xf]
    %v2605 = vmul.bf16 %v2587, %v973
    %v2606 = vmul.bf16 %v2588, %v985
    %v2607 = vmul.bf16 %v2589, %v997
    %v2608 = vmul.bf16 %v2590, %v1009
    %v2609 = vmul.bf16 %v2591, %v1021
    %v2610 = vmul.bf16 %v2592, %v1033
    %v2611 = vmul.bf16 %v2593, %v1045
    %v2612 = vmul.bf16 %v2594, %v1057
    %v2613 = vmul.bf16 %v2595, %v1069
    %v2614 = vmul.bf16 %v2596, %v1081
    %v2615 = vmul.bf16 %v2597, %v1093
    %v2616 = vmul.bf16 %v2598, %v1105
    %v2617 = vmul.bf16 %v2599, %v1117
    %v2618 = vmul.bf16 %v2600, %v1129
    %v2619 = vmul.bf16 %v2601, %v1141
    %v2620 = vmul.bf16 %v2602, %v1153
    %v2621 = vmul.bf16 %v2603, %v1165
    %v2622 = vmul.bf16 %v2604, %v1177
    %v2623 = vld [vmem:[#allocation3] sm:$0xff]
    %v2624 = vld [vmem:[#allocation3 + $0x8] sm:$0xff]
    %v2625 = vld [vmem:[#allocation3 + $0x10] sm:$0xff]
    %v2626 = vld [vmem:[#allocation3 + $0x18] sm:$0xff]
    %v2627 = vld [vmem:[#allocation3 + $0x20] sm:$0xff]
    %v2628 = vld [vmem:[#allocation3 + $0x28] sm:$0xff]
    %v2629 = vld [vmem:[#allocation3 + $0x30] sm:$0xff]
    %v2630 = vld [vmem:[#allocation3 + $0x38] sm:$0xff]
    %v2631 = vld [vmem:[#allocation3 + $0x40] sm:$0xff]
    %v2632 = vld [vmem:[#allocation3 + $0x48] sm:$0xff]
    %v2633 = vld [vmem:[#allocation3 + $0x50] sm:$0xff]
    %v2634 = vld [vmem:[#allocation3 + $0x58] sm:$0xff]
    %v2635 = vld [vmem:[#allocation3 + $0x60] sm:$0xff]
    %v2636 = vld [vmem:[#allocation3 + $0x68] sm:$0xff]
    %v2637 = vld [vmem:[#allocation3 + $0x70] sm:$0xff]
    %v2638 = vld [vmem:[#allocation3 + $0x78] sm:$0xff]
    %v2639 = vld [vmem:[#allocation3 + $0x80] sm:$0xff]
    %v2640 = vld [vmem:[#allocation3 + $0x88] sm:$0xff]
    %s2641 = scalar_lea.vmem %s2, 64
    %v2642 = vld [vmem:[%s2641] sm:$0xf]
    %v2643 = vld [vmem:[%s2641 + $0x4] sm:$0xf]
    %v2644 = vld [vmem:[%s2641 + $0x8] sm:$0xf]
    %v2645 = vld [vmem:[%s2641 + $0xc] sm:$0xf]
    %v2664 = vunpack.c.l.b16 %v2605
    %v2665 = vunpack.c.l.b16 %v2606
    %v2666 = vunpack.c.l.b16 %v2607
    %v2667 = vunpack.c.l.b16 %v2608
    %v2668 = vunpack.c.l.b16 %v2609
    %v2669 = vunpack.c.l.b16 %v2610
    %v2670 = vunpack.c.l.b16 %v2611
    %v2671 = vunpack.c.l.b16 %v2612
    %v2672 = vunpack.c.l.b16 %v2613
    %v2673 = vunpack.c.l.b16 %v2614
    %v2674 = vunpack.c.l.b16 %v2615
    %v2675 = vunpack.c.l.b16 %v2616
    %v2676 = vunpack.c.l.b16 %v2617
    %v2677 = vunpack.c.l.b16 %v2618
    %v2678 = vunpack.c.l.b16 %v2619
    %v2679 = vunpack.c.l.b16 %v2620
    %v2680 = vunpack.c.l.b16 %v2621
    %v2681 = vunpack.c.l.b16 %v2622
    %v2682 = vpack.c.b16 %v2665, %v2664
    %v2683 = vpack.c.b16 %v2667, %v2666
    %v2684 = vpack.c.b16 %v2669, %v2668
    %v2685 = vpack.c.b16 %v2671, %v2670
    %v2686 = vpack.c.b16 %v2673, %v2672
    %v2687 = vpack.c.b16 %v2675, %v2674
    %v2688 = vpack.c.b16 %v2677, %v2676
    %v2689 = vpack.c.b16 %v2679, %v2678
    %v2690 = vpack.c.b16 %v2681, %v2680
    %v2695 = vunpack.c.l.b16 %v2642
    %v2696 = vunpack.c.l.b16 %v2643
    %v2697 = vunpack.c.l.b16 %v2644
    %v2698 = vunpack.c.l.b16 %v2645
    %v2699 = vpack.c.b16 %v2696, %v2695
    %v2700 = vpack.c.b16 %v2698, %v2697
    %v2704 = vsel %vm775, %v2682, 0
    %v2707 = vsel %vm775, %v2683, 0
    %v2710 = vsel %vm775, %v2684, 0
    %v2713 = vsel %vm775, %v2685, 0
    %v2716 = vsel %vm775, %v2686, 0
    %v2719 = vsel %vm775, %v2687, 0
    %v2722 = vsel %vm775, %v2688, 0
    %v2725 = vsel %vm775, %v2689, 0
    %v2728 = vsel %vm775, %v2690, 0
    %2730 = vmatprep.subr.bf16.mxu0 0
    %2731 = vmatpush1.bf16.msra.mxu0 0
    %2732 = vmatprep.subr.bf16.mxu0 0
    %2733 = vmatpush1.bf16.msra.mxu0 0
    %2734 = vmatprep.subr.bf16.mxu0 0
    %2735 = vmatpush1.bf16.msra.mxu0 0
    %2736 = vmatprep.subr.bf16.mxu0 0
    %2737 = vmatpush1.bf16.msra.mxu0 0
    %2738 = vmatprep.subr.bf16.mxu0 0
    %2739 = vmatpush1.bf16.msra.mxu0 0
    %2740 = vmatprep.subr.bf16.mxu0 0
    %2741 = vmatpush1.bf16.msra.mxu0 0
    %2742 = vmatprep.subr.bf16.mxu0 0
    %2743 = vmatpush1.bf16.msra.mxu0 %v2700
    %2744 = vmatprep.subr.bf16.mxu0 0
    %2745 = vmatpush1.bf16.msra.mxu0 %v2699
    %2746 = vmatprep.subr.bf16.mxu0 0
    %2747 = vmatpush2.bf16.msra.mxu0 0
    %2748 = vmatprep.subr.bf16.mxu0 0
    %2749 = vmatpush2.bf16.msra.mxu0 0
    %2750 = vmatprep.subr.bf16.mxu0 0
    %2751 = vmatpush2.bf16.msra.mxu0 0
    %2752 = vmatprep.subr.bf16.mxu0 0
    %2753 = vmatpush2.bf16.msra.mxu0 0
    %2754 = vmatprep.subr.bf16.mxu0 0
    %2755 = vmatpush2.bf16.msra.mxu0 0
    %2756 = vmatprep.subr.bf16.mxu0 0
    %2757 = vmatpush2.bf16.msra.mxu0 0
    %2758 = vmatprep.subr.bf16.mxu0 0
    %2759 = vmatpush2.bf16.msra.mxu0 0
    %2760 = vmatprep.subr.bf16.mxu0 0
    %2761 = vmatpush2.bf16.msra.mxu0 0
    %2762 = vmatprep.mubr.bf16.mxu0 0
    %2763 = vmatmul.mubr.bf16.gmra.mxu0 %v2704
    %v2764 = vpop.f32.mrf.mxu0
    %v2765 = vadd.f32 0.0, %v2764
    %v2766 = vpop.f32.mrf.mxu0
    %v2767 = vpop.f32.mrf.mxu0
    %v2768 = vadd.f32 0.0, %v2767
    %v2769 = vpop.f32.mrf.mxu0
    %2770 = vmatprep.mubr.bf16.mxu0 0
    %2771 = vmatmul.mubr.bf16.gmra.mxu0 %v2707
    %v2772 = vpop.f32.mrf.mxu0
    %v2773 = vadd.f32 0.0, %v2772
    %v2774 = vpop.f32.mrf.mxu0
    %v2775 = vpop.f32.mrf.mxu0
    %v2776 = vadd.f32 0.0, %v2775
    %v2777 = vpop.f32.mrf.mxu0
    %2778 = vmatprep.mubr.bf16.mxu0 0
    %2779 = vmatmul.mubr.bf16.gmra.mxu0 %v2710
    %v2780 = vpop.f32.mrf.mxu0
    %v2781 = vadd.f32 0.0, %v2780
    %v2782 = vpop.f32.mrf.mxu0
    %v2783 = vpop.f32.mrf.mxu0
    %v2784 = vadd.f32 0.0, %v2783
    %v2785 = vpop.f32.mrf.mxu0
    %2786 = vmatprep.mubr.bf16.mxu0 0
    %2787 = vmatmul.mubr.bf16.gmra.mxu0 %v2713
    %v2788 = vpop.f32.mrf.mxu0
    %v2789 = vadd.f32 0.0, %v2788
    %v2790 = vpop.f32.mrf.mxu0
    %v2791 = vpop.f32.mrf.mxu0
    %v2792 = vadd.f32 0.0, %v2791
    %v2793 = vpop.f32.mrf.mxu0
    %2794 = vmatprep.mubr.bf16.mxu0 0
    %2795 = vmatmul.mubr.bf16.gmra.mxu0 %v2716
    %v2796 = vpop.f32.mrf.mxu0
    %v2797 = vadd.f32 0.0, %v2796
    %v2798 = vpop.f32.mrf.mxu0
    %v2799 = vpop.f32.mrf.mxu0
    %v2800 = vadd.f32 0.0, %v2799
    %v2801 = vpop.f32.mrf.mxu0
    %2802 = vmatprep.mubr.bf16.mxu0 0
    %2803 = vmatmul.mubr.bf16.gmra.mxu0 %v2719
    %v2804 = vpop.f32.mrf.mxu0
    %v2805 = vadd.f32 0.0, %v2804
    %v2806 = vpop.f32.mrf.mxu0
    %v2807 = vpop.f32.mrf.mxu0
    %v2808 = vadd.f32 0.0, %v2807
    %v2809 = vpop.f32.mrf.mxu0
    %2810 = vmatprep.mubr.bf16.mxu0 0
    %2811 = vmatmul.mubr.bf16.gmra.mxu0 %v2722
    %v2812 = vpop.f32.mrf.mxu0
    %v2813 = vadd.f32 0.0, %v2812
    %v2814 = vpop.f32.mrf.mxu0
    %v2815 = vpop.f32.mrf.mxu0
    %v2816 = vadd.f32 0.0, %v2815
    %v2817 = vpop.f32.mrf.mxu0
    %2818 = vmatprep.mubr.bf16.mxu0 0
    %2819 = vmatmul.mubr.bf16.gmra.mxu0 %v2725
    %v2820 = vpop.f32.mrf.mxu0
    %v2821 = vadd.f32 0.0, %v2820
    %v2822 = vpop.f32.mrf.mxu0
    %v2823 = vpop.f32.mrf.mxu0
    %v2824 = vadd.f32 0.0, %v2823
    %v2825 = vpop.f32.mrf.mxu0
    %2826 = vmatprep.mubr.bf16.mxu0 0
    %2827 = vmatmul.mubr.bf16.gmra.mxu0 %v2728
    %v2828 = vpop.f32.mrf.mxu0
    %v2829 = vadd.f32 0.0, %v2828
    %v2830 = vpop.f32.mrf.mxu0
    %v2831 = vpop.f32.mrf.mxu0
    %v2832 = vadd.f32 0.0, %v2831
    %v2833 = vpop.f32.mrf.mxu0
    %2834 = vdwg.mxu0
    %v2835 = vadd.f32 %v2623, %v2765
    %v2836 = vadd.f32 %v2624, %v2768
    %v2837 = vadd.f32 %v2625, %v2773
    %v2838 = vadd.f32 %v2626, %v2776
    %v2839 = vadd.f32 %v2627, %v2781
    %v2840 = vadd.f32 %v2628, %v2784
    %v2841 = vadd.f32 %v2629, %v2789
    %v2842 = vadd.f32 %v2630, %v2792
    %v2843 = vadd.f32 %v2631, %v2797
    %v2844 = vadd.f32 %v2632, %v2800
    %v2845 = vadd.f32 %v2633, %v2805
    %v2846 = vadd.f32 %v2634, %v2808
    %v2847 = vadd.f32 %v2635, %v2813
    %v2848 = vadd.f32 %v2636, %v2816
    %v2849 = vadd.f32 %v2637, %v2821
    %v2850 = vadd.f32 %v2638, %v2824
    %v2851 = vadd.f32 %v2639, %v2829
    %v2852 = vadd.f32 %v2640, %v2832
    %2853 = vst.msk [vmem:[#allocation3] sm:$0xff] %vm129, %v2835
    %2854 = vst.msk [vmem:[#allocation3 + $0x8] sm:$0xff] %vm129, %v2836
    %2855 = vst.msk [vmem:[#allocation3 + $0x10] sm:$0xff] %vm129, %v2837
    %2856 = vst.msk [vmem:[#allocation3 + $0x18] sm:$0xff] %vm129, %v2838
    %2857 = vst.msk [vmem:[#allocation3 + $0x20] sm:$0xff] %vm129, %v2839
    %2858 = vst.msk [vmem:[#allocation3 + $0x28] sm:$0xff] %vm129, %v2840
    %2859 = vst.msk [vmem:[#allocation3 + $0x30] sm:$0xff] %vm129, %v2841
    %2860 = vst.msk [vmem:[#allocation3 + $0x38] sm:$0xff] %vm129, %v2842
    %2861 = vst.msk [vmem:[#allocation3 + $0x40] sm:$0xff] %vm129, %v2843
    %2862 = vst.msk [vmem:[#allocation3 + $0x48] sm:$0xff] %vm129, %v2844
    %2863 = vst.msk [vmem:[#allocation3 + $0x50] sm:$0xff] %vm129, %v2845
    %2864 = vst.msk [vmem:[#allocation3 + $0x58] sm:$0xff] %vm129, %v2846
    %2865 = vst.msk [vmem:[#allocation3 + $0x60] sm:$0xff] %vm129, %v2847
    %2866 = vst.msk [vmem:[#allocation3 + $0x68] sm:$0xff] %vm129, %v2848
    %2867 = vst.msk [vmem:[#allocation3 + $0x70] sm:$0xff] %vm129, %v2849
    %2868 = vst.msk [vmem:[#allocation3 + $0x78] sm:$0xff] %vm129, %v2850
    %2869 = vst.msk [vmem:[#allocation3 + $0x80] sm:$0xff] %vm129, %v2851
    %2870 = vst.msk [vmem:[#allocation3 + $0x88] sm:$0xff] %vm129, %v2852
    %v2871 = vld [vmem:[#allocation2 + $0x8] sm:$0xf]
    %v2872 = vld [vmem:[#allocation2 + $0xc] sm:$0xf]
    %v2873 = vld [vmem:[#allocation2 + $0x10] sm:$0xf]
    %v2874 = vld [vmem:[#allocation2 + $0x14] sm:$0xf]
    %v2875 = vld [vmem:[#allocation2 + $0x18] sm:$0xf]
    %v2876 = vld [vmem:[#allocation2 + $0x1c] sm:$0xf]
    %v2877 = vld [vmem:[#allocation2 + $0x20] sm:$0xf]
    %v2878 = vld [vmem:[#allocation2 + $0x24] sm:$0xf]
    %v2879 = vld [vmem:[#allocation2 + $0x28] sm:$0xf]
    %v2880 = vld [vmem:[#allocation2 + $0x2c] sm:$0xf]
    %v2881 = vld [vmem:[#allocation2 + $0x30] sm:$0xf]
    %v2882 = vld [vmem:[#allocation2 + $0x34] sm:$0xf]
    %v2883 = vld [vmem:[#allocation2 + $0x38] sm:$0xf]
    %v2884 = vld [vmem:[#allocation2 + $0x3c] sm:$0xf]
    %v2885 = vld [vmem:[#allocation2 + $0x40] sm:$0xf]
    %v2886 = vld [vmem:[#allocation2 + $0x44] sm:$0xf]
    %v2887 = vld [vmem:[#allocation2 + $0x48] sm:$0xf]
    %v2888 = vld [vmem:[#allocation2 + $0x4c] sm:$0xf]
    %v2889 = vld [vmem:[#allocation2 + $0x50] sm:$0x1]
    %v2890 = vmul.bf16 %v2871, %v1688
    %v2891 = vmul.bf16 %v2872, %v1697
    %v2892 = vmul.bf16 %v2873, %v1706
    %v2893 = vmul.bf16 %v2874, %v1715
    %v2894 = vmul.bf16 %v2875, %v1724
    %v2895 = vmul.bf16 %v2876, %v1733
    %v2896 = vmul.bf16 %v2877, %v1742
    %v2897 = vmul.bf16 %v2878, %v1751
    %v2898 = vmul.bf16 %v2879, %v1760
    %v2899 = vmul.bf16 %v2880, %v1769
    %v2900 = vmul.bf16 %v2881, %v1778
    %v2901 = vmul.bf16 %v2882, %v1787
    %v2902 = vmul.bf16 %v2883, %v1796
    %v2903 = vmul.bf16 %v2884, %v1805
    %v2904 = vmul.bf16 %v2885, %v1814
    %v2905 = vmul.bf16 %v2886, %v1823
    %v2906 = vmul.bf16 %v2887, %v1832
    %v2907 = vmul.bf16 %v2888, %v1841
    %v2908 = vmul.bf16 %v2889, %v1842
    %v2909 = vld [vmem:[#allocation3] sm:$0xff]
    %v2910 = vld [vmem:[#allocation3 + $0x8] sm:$0xff]
    %v2911 = vld [vmem:[#allocation3 + $0x10] sm:$0xff]
    %v2912 = vld [vmem:[#allocation3 + $0x18] sm:$0xff]
    %v2913 = vld [vmem:[#allocation3 + $0x20] sm:$0xff]
    %v2914 = vld [vmem:[#allocation3 + $0x28] sm:$0xff]
    %v2915 = vld [vmem:[#allocation3 + $0x30] sm:$0xff]
    %v2916 = vld [vmem:[#allocation3 + $0x38] sm:$0xff]
    %v2917 = vld [vmem:[#allocation3 + $0x40] sm:$0xff]
    %v2918 = vld [vmem:[#allocation3 + $0x48] sm:$0xff]
    %v2919 = vld [vmem:[#allocation3 + $0x50] sm:$0xff]
    %v2920 = vld [vmem:[#allocation3 + $0x58] sm:$0xff]
    %v2921 = vld [vmem:[#allocation3 + $0x60] sm:$0xff]
    %v2922 = vld [vmem:[#allocation3 + $0x68] sm:$0xff]
    %v2923 = vld [vmem:[#allocation3 + $0x70] sm:$0xff]
    %v2924 = vld [vmem:[#allocation3 + $0x78] sm:$0xff]
    %v2925 = vld [vmem:[#allocation3 + $0x80] sm:$0xff]
    %v2926 = vld [vmem:[#allocation3 + $0x88] sm:$0xff]
    %s2927 = scalar_lea.vmem %s2, 80
    %v2928 = vld [vmem:[%s2927] sm:$0xf]
    %v2929 = vld [vmem:[%s2927 + $0x4] sm:$0xf]
    %v2930 = vld [vmem:[%s2927 + $0x8] sm:$0xf]
    %v2931 = vld [vmem:[%s2927 + $0xc] sm:$0xf]
    %v2951 = vunpack.c.l.b16 %v2890
    %v2952 = vunpack.c.l.b16 %v2891
    %v2953 = vunpack.c.l.b16 %v2892
    %v2954 = vunpack.c.l.b16 %v2893
    %v2955 = vunpack.c.l.b16 %v2894
    %v2956 = vunpack.c.l.b16 %v2895
    %v2957 = vunpack.c.l.b16 %v2896
    %v2958 = vunpack.c.l.b16 %v2897
    %v2959 = vunpack.c.l.b16 %v2898
    %v2960 = vunpack.c.l.b16 %v2899
    %v2961 = vunpack.c.l.b16 %v2900
    %v2962 = vunpack.c.l.b16 %v2901
    %v2963 = vunpack.c.l.b16 %v2902
    %v2964 = vunpack.c.l.b16 %v2903
    %v2965 = vunpack.c.l.b16 %v2904
    %v2966 = vunpack.c.l.b16 %v2905
    %v2967 = vunpack.c.l.b16 %v2906
    %v2968 = vunpack.c.l.b16 %v2907
    %v2969 = vunpack.c.l.b16 %v2908
    %v2970 = vpack.c.b16 %v2952, %v2951
    %v2971 = vpack.c.b16 %v2954, %v2953
    %v2972 = vpack.c.b16 %v2956, %v2955
    %v2973 = vpack.c.b16 %v2958, %v2957
    %v2974 = vpack.c.b16 %v2960, %v2959
    %v2975 = vpack.c.b16 %v2962, %v2961
    %v2976 = vpack.c.b16 %v2964, %v2963
    %v2977 = vpack.c.b16 %v2966, %v2965
    %v2978 = vpack.c.b16 %v2968, %v2967
    %v2979 = vpack.c.b16 %v2969, %v2969
    %v2981 = vshrl.u32 %v2970, 16
    %v2983 = vshll.u32 %v2970, 16
    %v2985 = vrot.slane %v2983, 1
    %v2986 = vor.u32 %v2981, %v2985
    %v2988 = vshll.u32 %v2971, 16
    %v2990 = vrot.slane %v2988, 1
    %v2991 = vsel %vm1952, %v2986, %v2990
    %v2992 = vshrl.u32 %v2971, 16
    %v2994 = vor.u32 %v2992, %v2990
    %v2996 = vshll.u32 %v2972, 16
    %v2998 = vrot.slane %v2996, 1
    %v2999 = vsel %vm1952, %v2994, %v2998
    %v3000 = vshrl.u32 %v2972, 16
    %v3002 = vor.u32 %v3000, %v2998
    %v3004 = vshll.u32 %v2973, 16
    %v3006 = vrot.slane %v3004, 1
    %v3007 = vsel %vm1952, %v3002, %v3006
    %v3008 = vshrl.u32 %v2973, 16
    %v3010 = vor.u32 %v3008, %v3006
    %v3012 = vshll.u32 %v2974, 16
    %v3014 = vrot.slane %v3012, 1
    %v3015 = vsel %vm1952, %v3010, %v3014
    %v3016 = vshrl.u32 %v2974, 16
    %v3018 = vor.u32 %v3016, %v3014
    %v3020 = vshll.u32 %v2975, 16
    %v3022 = vrot.slane %v3020, 1
    %v3023 = vsel %vm1952, %v3018, %v3022
    %v3024 = vshrl.u32 %v2975, 16
    %v3026 = vor.u32 %v3024, %v3022
    %v3028 = vshll.u32 %v2976, 16
    %v3030 = vrot.slane %v3028, 1
    %v3031 = vsel %vm1952, %v3026, %v3030
    %v3032 = vshrl.u32 %v2976, 16
    %v3034 = vor.u32 %v3032, %v3030
    %v3036 = vshll.u32 %v2977, 16
    %v3038 = vrot.slane %v3036, 1
    %v3039 = vsel %vm1952, %v3034, %v3038
    %v3040 = vshrl.u32 %v2977, 16
    %v3042 = vor.u32 %v3040, %v3038
    %v3044 = vshll.u32 %v2978, 16
    %v3046 = vrot.slane %v3044, 1
    %v3047 = vsel %vm1952, %v3042, %v3046
    %v3048 = vshrl.u32 %v2978, 16
    %v3050 = vor.u32 %v3048, %v3046
    %v3052 = vshll.u32 %v2979, 16
    %v3054 = vrot.slane %v3052, 1
    %v3055 = vsel %vm1952, %v3050, %v3054
    %v3060 = vunpack.c.l.b16 %v2928
    %v3061 = vunpack.c.l.b16 %v2929
    %v3062 = vunpack.c.l.b16 %v2930
    %v3063 = vunpack.c.l.b16 %v2931
    %v3064 = vpack.c.b16 %v3061, %v3060
    %v3065 = vpack.c.b16 %v3063, %v3062
    %v3069 = vsel %vm775, %v2991, 0
    %v3072 = vsel %vm775, %v2999, 0
    %v3075 = vsel %vm775, %v3007, 0
    %v3078 = vsel %vm775, %v3015, 0
    %v3081 = vsel %vm775, %v3023, 0
    %v3084 = vsel %vm775, %v3031, 0
    %v3087 = vsel %vm775, %v3039, 0
    %v3090 = vsel %vm775, %v3047, 0
    %v3093 = vsel %vm775, %v3055, 0
    %3095 = vmatprep.subr.bf16.mxu0 0
    %3096 = vmatpush1.bf16.msra.mxu0 0
    %3097 = vmatprep.subr.bf16.mxu0 0
    %3098 = vmatpush1.bf16.msra.mxu0 0
    %3099 = vmatprep.subr.bf16.mxu0 0
    %3100 = vmatpush1.bf16.msra.mxu0 0
    %3101 = vmatprep.subr.bf16.mxu0 0
    %3102 = vmatpush1.bf16.msra.mxu0 0
    %3103 = vmatprep.subr.bf16.mxu0 0
    %3104 = vmatpush1.bf16.msra.mxu0 0
    %3105 = vmatprep.subr.bf16.mxu0 0
    %3106 = vmatpush1.bf16.msra.mxu0 0
    %3107 = vmatprep.subr.bf16.mxu0 0
    %3108 = vmatpush1.bf16.msra.mxu0 %v3065
    %3109 = vmatprep.subr.bf16.mxu0 0
    %3110 = vmatpush1.bf16.msra.mxu0 %v3064
    %3111 = vmatprep.subr.bf16.mxu0 0
    %3112 = vmatpush2.bf16.msra.mxu0 0
    %3113 = vmatprep.subr.bf16.mxu0 0
    %3114 = vmatpush2.bf16.msra.mxu0 0
    %3115 = vmatprep.subr.bf16.mxu0 0
    %3116 = vmatpush2.bf16.msra.mxu0 0
    %3117 = vmatprep.subr.bf16.mxu0 0
    %3118 = vmatpush2.bf16.msra.mxu0 0
    %3119 = vmatprep.subr.bf16.mxu0 0
    %3120 = vmatpush2.bf16.msra.mxu0 0
    %3121 = vmatprep.subr.bf16.mxu0 0
    %3122 = vmatpush2.bf16.msra.mxu0 0
    %3123 = vmatprep.subr.bf16.mxu0 0
    %3124 = vmatpush2.bf16.msra.mxu0 0
    %3125 = vmatprep.subr.bf16.mxu0 0
    %3126 = vmatpush2.bf16.msra.mxu0 0
    %3127 = vmatprep.mubr.bf16.mxu0 0
    %3128 = vmatmul.mubr.bf16.gmra.mxu0 %v3069
    %v3129 = vpop.f32.mrf.mxu0
    %v3130 = vadd.f32 0.0, %v3129
    %v3131 = vpop.f32.mrf.mxu0
    %v3132 = vpop.f32.mrf.mxu0
    %v3133 = vadd.f32 0.0, %v3132
    %v3134 = vpop.f32.mrf.mxu0
    %3135 = vmatprep.mubr.bf16.mxu0 0
    %3136 = vmatmul.mubr.bf16.gmra.mxu0 %v3072
    %v3137 = vpop.f32.mrf.mxu0
    %v3138 = vadd.f32 0.0, %v3137
    %v3139 = vpop.f32.mrf.mxu0
    %v3140 = vpop.f32.mrf.mxu0
    %v3141 = vadd.f32 0.0, %v3140
    %v3142 = vpop.f32.mrf.mxu0
    %3143 = vmatprep.mubr.bf16.mxu0 0
    %3144 = vmatmul.mubr.bf16.gmra.mxu0 %v3075
    %v3145 = vpop.f32.mrf.mxu0
    %v3146 = vadd.f32 0.0, %v3145
    %v3147 = vpop.f32.mrf.mxu0
    %v3148 = vpop.f32.mrf.mxu0
    %v3149 = vadd.f32 0.0, %v3148
    %v3150 = vpop.f32.mrf.mxu0
    %3151 = vmatprep.mubr.bf16.mxu0 0
    %3152 = vmatmul.mubr.bf16.gmra.mxu0 %v3078
    %v3153 = vpop.f32.mrf.mxu0
    %v3154 = vadd.f32 0.0, %v3153
    %v3155 = vpop.f32.mrf.mxu0
    %v3156 = vpop.f32.mrf.mxu0
    %v3157 = vadd.f32 0.0, %v3156
    %v3158 = vpop.f32.mrf.mxu0
    %3159 = vmatprep.mubr.bf16.mxu0 0
    %3160 = vmatmul.mubr.bf16.gmra.mxu0 %v3081
    %v3161 = vpop.f32.mrf.mxu0
    %v3162 = vadd.f32 0.0, %v3161
    %v3163 = vpop.f32.mrf.mxu0
    %v3164 = vpop.f32.mrf.mxu0
    %v3165 = vadd.f32 0.0, %v3164
    %v3166 = vpop.f32.mrf.mxu0
    %3167 = vmatprep.mubr.bf16.mxu0 0
    %3168 = vmatmul.mubr.bf16.gmra.mxu0 %v3084
    %v3169 = vpop.f32.mrf.mxu0
    %v3170 = vadd.f32 0.0, %v3169
    %v3171 = vpop.f32.mrf.mxu0
    %v3172 = vpop.f32.mrf.mxu0
    %v3173 = vadd.f32 0.0, %v3172
    %v3174 = vpop.f32.mrf.mxu0
    %3175 = vmatprep.mubr.bf16.mxu0 0
    %3176 = vmatmul.mubr.bf16.gmra.mxu0 %v3087
    %v3177 = vpop.f32.mrf.mxu0
    %v3178 = vadd.f32 0.0, %v3177
    %v3179 = vpop.f32.mrf.mxu0
    %v3180 = vpop.f32.mrf.mxu0
    %v3181 = vadd.f32 0.0, %v3180
    %v3182 = vpop.f32.mrf.mxu0
    %3183 = vmatprep.mubr.bf16.mxu0 0
    %3184 = vmatmul.mubr.bf16.gmra.mxu0 %v3090
    %v3185 = vpop.f32.mrf.mxu0
    %v3186 = vadd.f32 0.0, %v3185
    %v3187 = vpop.f32.mrf.mxu0
    %v3188 = vpop.f32.mrf.mxu0
    %v3189 = vadd.f32 0.0, %v3188
    %v3190 = vpop.f32.mrf.mxu0
    %3191 = vmatprep.mubr.bf16.mxu0 0
    %3192 = vmatmul.mubr.bf16.gmra.mxu0 %v3093
    %v3193 = vpop.f32.mrf.mxu0
    %v3194 = vadd.f32 0.0, %v3193
    %v3195 = vpop.f32.mrf.mxu0
    %v3196 = vpop.f32.mrf.mxu0
    %v3197 = vadd.f32 0.0, %v3196
    %v3198 = vpop.f32.mrf.mxu0
    %3199 = vdwg.mxu0
    %v3200 = vadd.f32 %v2909, %v3130
    %v3201 = vadd.f32 %v2910, %v3133
    %v3202 = vadd.f32 %v2911, %v3138
    %v3203 = vadd.f32 %v2912, %v3141
    %v3204 = vadd.f32 %v2913, %v3146
    %v3205 = vadd.f32 %v2914, %v3149
    %v3206 = vadd.f32 %v2915, %v3154
    %v3207 = vadd.f32 %v2916, %v3157
    %v3208 = vadd.f32 %v2917, %v3162
    %v3209 = vadd.f32 %v2918, %v3165
    %v3210 = vadd.f32 %v2919, %v3170
    %v3211 = vadd.f32 %v2920, %v3173
    %v3212 = vadd.f32 %v2921, %v3178
    %v3213 = vadd.f32 %v2922, %v3181
    %v3214 = vadd.f32 %v2923, %v3186
    %v3215 = vadd.f32 %v2924, %v3189
    %v3216 = vadd.f32 %v2925, %v3194
    %v3217 = vadd.f32 %v2926, %v3197
    %3218 = vst.msk [vmem:[#allocation3] sm:$0xff] %vm129, %v3200
    %3219 = vst.msk [vmem:[#allocation3 + $0x8] sm:$0xff] %vm129, %v3201
    %3220 = vst.msk [vmem:[#allocation3 + $0x10] sm:$0xff] %vm129, %v3202
    %3221 = vst.msk [vmem:[#allocation3 + $0x18] sm:$0xff] %vm129, %v3203
    %3222 = vst.msk [vmem:[#allocation3 + $0x20] sm:$0xff] %vm129, %v3204
    %3223 = vst.msk [vmem:[#allocation3 + $0x28] sm:$0xff] %vm129, %v3205
    %3224 = vst.msk [vmem:[#allocation3 + $0x30] sm:$0xff] %vm129, %v3206
    %3225 = vst.msk [vmem:[#allocation3 + $0x38] sm:$0xff] %vm129, %v3207
    %3226 = vst.msk [vmem:[#allocation3 + $0x40] sm:$0xff] %vm129, %v3208
    %3227 = vst.msk [vmem:[#allocation3 + $0x48] sm:$0xff] %vm129, %v3209
    %3228 = vst.msk [vmem:[#allocation3 + $0x50] sm:$0xff] %vm129, %v3210
    %3229 = vst.msk [vmem:[#allocation3 + $0x58] sm:$0xff] %vm129, %v3211
    %3230 = vst.msk [vmem:[#allocation3 + $0x60] sm:$0xff] %vm129, %v3212
    %3231 = vst.msk [vmem:[#allocation3 + $0x68] sm:$0xff] %vm129, %v3213
    %3232 = vst.msk [vmem:[#allocation3 + $0x70] sm:$0xff] %vm129, %v3214
    %3233 = vst.msk [vmem:[#allocation3 + $0x78] sm:$0xff] %vm129, %v3215
    %3234 = vst.msk [vmem:[#allocation3 + $0x80] sm:$0xff] %vm129, %v3216
    %3235 = vst.msk [vmem:[#allocation3 + $0x88] sm:$0xff] %vm129, %v3217
    %v3236 = vld [vmem:[#allocation2 + $0x8] sm:$0x8]
    %v3237 = vld [vmem:[#allocation2 + $0xc] sm:$0xf]
    %v3238 = vld [vmem:[#allocation2 + $0x10] sm:$0xf]
    %v3239 = vld [vmem:[#allocation2 + $0x14] sm:$0xf]
    %v3240 = vld [vmem:[#allocation2 + $0x18] sm:$0xf]
    %v3241 = vld [vmem:[#allocation2 + $0x1c] sm:$0xf]
    %v3242 = vld [vmem:[#allocation2 + $0x20] sm:$0xf]
    %v3243 = vld [vmem:[#allocation2 + $0x24] sm:$0xf]
    %v3244 = vld [vmem:[#allocation2 + $0x28] sm:$0xf]
    %v3245 = vld [vmem:[#allocation2 + $0x2c] sm:$0xf]
    %v3246 = vld [vmem:[#allocation2 + $0x30] sm:$0xf]
    %v3247 = vld [vmem:[#allocation2 + $0x34] sm:$0xf]
    %v3248 = vld [vmem:[#allocation2 + $0x38] sm:$0xf]
    %v3249 = vld [vmem:[#allocation2 + $0x3c] sm:$0xf]
    %v3250 = vld [vmem:[#allocation2 + $0x40] sm:$0xf]
    %v3251 = vld [vmem:[#allocation2 + $0x44] sm:$0xf]
    %v3252 = vld [vmem:[#allocation2 + $0x48] sm:$0xf]
    %v3253 = vld [vmem:[#allocation2 + $0x4c] sm:$0xf]
    %v3254 = vld [vmem:[#allocation2 + $0x50] sm:$0xf]
    %v3255 = vmul.bf16 %v3236, %v389
    %v3256 = vmul.bf16 %v3237, %v399
    %v3257 = vmul.bf16 %v3238, %v409
    %v3258 = vmul.bf16 %v3239, %v419
    %v3259 = vmul.bf16 %v3240, %v429
    %v3260 = vmul.bf16 %v3241, %v439
    %v3261 = vmul.bf16 %v3242, %v449
    %v3262 = vmul.bf16 %v3243, %v459
    %v3263 = vmul.bf16 %v3244, %v469
    %v3264 = vmul.bf16 %v3245, %v479
    %v3265 = vmul.bf16 %v3246, %v489
    %v3266 = vmul.bf16 %v3247, %v499
    %v3267 = vmul.bf16 %v3248, %v509
    %v3268 = vmul.bf16 %v3249, %v519
    %v3269 = vmul.bf16 %v3250, %v529
    %v3270 = vmul.bf16 %v3251, %v539
    %v3271 = vmul.bf16 %v3252, %v549
    %v3272 = vmul.bf16 %v3253, %v559
    %v3273 = vmul.bf16 %v3254, %v564
    %v3274 = vld [vmem:[#allocation3] sm:$0xff]
    %v3275 = vld [vmem:[#allocation3 + $0x8] sm:$0xff]
    %v3276 = vld [vmem:[#allocation3 + $0x10] sm:$0xff]
    %v3277 = vld [vmem:[#allocation3 + $0x18] sm:$0xff]
    %v3278 = vld [vmem:[#allocation3 + $0x20] sm:$0xff]
    %v3279 = vld [vmem:[#allocation3 + $0x28] sm:$0xff]
    %v3280 = vld [vmem:[#allocation3 + $0x30] sm:$0xff]
    %v3281 = vld [vmem:[#allocation3 + $0x38] sm:$0xff]
    %v3282 = vld [vmem:[#allocation3 + $0x40] sm:$0xff]
    %v3283 = vld [vmem:[#allocation3 + $0x48] sm:$0xff]
    %v3284 = vld [vmem:[#allocation3 + $0x50] sm:$0xff]
    %v3285 = vld [vmem:[#allocation3 + $0x58] sm:$0xff]
    %v3286 = vld [vmem:[#allocation3 + $0x60] sm:$0xff]
    %v3287 = vld [vmem:[#allocation3 + $0x68] sm:$0xff]
    %v3288 = vld [vmem:[#allocation3 + $0x70] sm:$0xff]
    %v3289 = vld [vmem:[#allocation3 + $0x78] sm:$0xff]
    %v3290 = vld [vmem:[#allocation3 + $0x80] sm:$0xff]
    %v3291 = vld [vmem:[#allocation3 + $0x88] sm:$0xff]
    %s3292 = scalar_lea.vmem %s2, 96
    %v3293 = vld [vmem:[%s3292] sm:$0xf]
    %v3294 = vld [vmem:[%s3292 + $0x4] sm:$0xf]
    %v3295 = vld [vmem:[%s3292 + $0x8] sm:$0xf]
    %v3296 = vld [vmem:[%s3292 + $0xc] sm:$0xf]
    %v3316 = vunpack.c.l.b16 %v3255
    %v3317 = vunpack.c.l.b16 %v3256
    %v3318 = vunpack.c.l.b16 %v3257
    %v3319 = vunpack.c.l.b16 %v3258
    %v3320 = vunpack.c.l.b16 %v3259
    %v3321 = vunpack.c.l.b16 %v3260
    %v3322 = vunpack.c.l.b16 %v3261
    %v3323 = vunpack.c.l.b16 %v3262
    %v3324 = vunpack.c.l.b16 %v3263
    %v3325 = vunpack.c.l.b16 %v3264
    %v3326 = vunpack.c.l.b16 %v3265
    %v3327 = vunpack.c.l.b16 %v3266
    %v3328 = vunpack.c.l.b16 %v3267
    %v3329 = vunpack.c.l.b16 %v3268
    %v3330 = vunpack.c.l.b16 %v3269
    %v3331 = vunpack.c.l.b16 %v3270
    %v3332 = vunpack.c.l.b16 %v3271
    %v3333 = vunpack.c.l.b16 %v3272
    %v3334 = vunpack.c.l.b16 %v3273
    %v3335 = vpack.c.b16 %v3317, %v3316
    %v3336 = vpack.c.b16 %v3319, %v3318
    %v3337 = vpack.c.b16 %v3321, %v3320
    %v3338 = vpack.c.b16 %v3323, %v3322
    %v3339 = vpack.c.b16 %v3325, %v3324
    %v3340 = vpack.c.b16 %v3327, %v3326
    %v3341 = vpack.c.b16 %v3329, %v3328
    %v3342 = vpack.c.b16 %v3331, %v3330
    %v3343 = vpack.c.b16 %v3333, %v3332
    %v3344 = vpack.c.b16 %v3334, %v3334
    %v3346 = vshrl.u32 %v3335, 16
    %v3348 = vrot.slane %v3346, 3
    %v3349 = vshll.u32 %v3335, 16
    %v3351 = vrot.slane %v3349, 4
    %v3352 = vor.u32 %v3348, %v3351
    %v3354 = vshrl.u32 %v3336, 16
    %v3356 = vrot.slane %v3354, 3
    %v3357 = vshll.u32 %v3336, 16
    %v3359 = vrot.slane %v3357, 4
    %v3360 = vor.u32 %v3356, %v3359
    %v3361 = vsel %vm673, %v3352, %v3360
    %v3363 = vshrl.u32 %v3337, 16
    %v3365 = vrot.slane %v3363, 3
    %v3366 = vshll.u32 %v3337, 16
    %v3368 = vrot.slane %v3366, 4
    %v3369 = vor.u32 %v3365, %v3368
    %v3370 = vsel %vm673, %v3360, %v3369
    %v3372 = vshrl.u32 %v3338, 16
    %v3374 = vrot.slane %v3372, 3
    %v3375 = vshll.u32 %v3338, 16
    %v3377 = vrot.slane %v3375, 4
    %v3378 = vor.u32 %v3374, %v3377
    %v3379 = vsel %vm673, %v3369, %v3378
    %v3381 = vshrl.u32 %v3339, 16
    %v3383 = vrot.slane %v3381, 3
    %v3384 = vshll.u32 %v3339, 16
    %v3386 = vrot.slane %v3384, 4
    %v3387 = vor.u32 %v3383, %v3386
    %v3388 = vsel %vm673, %v3378, %v3387
    %v3390 = vshrl.u32 %v3340, 16
    %v3392 = vrot.slane %v3390, 3
    %v3393 = vshll.u32 %v3340, 16
    %v3395 = vrot.slane %v3393, 4
    %v3396 = vor.u32 %v3392, %v3395
    %v3397 = vsel %vm673, %v3387, %v3396
    %v3399 = vshrl.u32 %v3341, 16
    %v3401 = vrot.slane %v3399, 3
    %v3402 = vshll.u32 %v3341, 16
    %v3404 = vrot.slane %v3402, 4
    %v3405 = vor.u32 %v3401, %v3404
    %v3406 = vsel %vm673, %v3396, %v3405
    %v3408 = vshrl.u32 %v3342, 16
    %v3410 = vrot.slane %v3408, 3
    %v3411 = vshll.u32 %v3342, 16
    %v3413 = vrot.slane %v3411, 4
    %v3414 = vor.u32 %v3410, %v3413
    %v3415 = vsel %vm673, %v3405, %v3414
    %v3417 = vshrl.u32 %v3343, 16
    %v3419 = vrot.slane %v3417, 3
    %v3420 = vshll.u32 %v3343, 16
    %v3422 = vrot.slane %v3420, 4
    %v3423 = vor.u32 %v3419, %v3422
    %v3424 = vsel %vm673, %v3414, %v3423
    %v3426 = vshrl.u32 %v3344, 16
    %v3428 = vrot.slane %v3426, 3
    %v3429 = vshll.u32 %v3344, 16
    %v3431 = vrot.slane %v3429, 4
    %v3432 = vor.u32 %v3428, %v3431
    %v3433 = vsel %vm673, %v3423, %v3432
    %v3438 = vunpack.c.l.b16 %v3293
    %v3439 = vunpack.c.l.b16 %v3294
    %v3440 = vunpack.c.l.b16 %v3295
    %v3441 = vunpack.c.l.b16 %v3296
    %v3442 = vpack.c.b16 %v3439, %v3438
    %v3443 = vpack.c.b16 %v3441, %v3440
    %v3447 = vsel %vm775, %v3361, 0
    %v3450 = vsel %vm775, %v3370, 0
    %v3453 = vsel %vm775, %v3379, 0
    %v3456 = vsel %vm775, %v3388, 0
    %v3459 = vsel %vm775, %v3397, 0
    %v3462 = vsel %vm775, %v3406, 0
    %v3465 = vsel %vm775, %v3415, 0
    %v3468 = vsel %vm775, %v3424, 0
    %v3471 = vsel %vm775, %v3433, 0
    %3473 = vmatprep.subr.bf16.mxu0 0
    %3474 = vmatpush1.bf16.msra.mxu0 0
    %3475 = vmatprep.subr.bf16.mxu0 0
    %3476 = vmatpush1.bf16.msra.mxu0 0
    %3477 = vmatprep.subr.bf16.mxu0 0
    %3478 = vmatpush1.bf16.msra.mxu0 0
    %3479 = vmatprep.subr.bf16.mxu0 0
    %3480 = vmatpush1.bf16.msra.mxu0 0
    %3481 = vmatprep.subr.bf16.mxu0 0
    %3482 = vmatpush1.bf16.msra.mxu0 0
    %3483 = vmatprep.subr.bf16.mxu0 0
    %3484 = vmatpush1.bf16.msra.mxu0 0
    %3485 = vmatprep.subr.bf16.mxu0 0
    %3486 = vmatpush1.bf16.msra.mxu0 %v3443
    %3487 = vmatprep.subr.bf16.mxu0 0
    %3488 = vmatpush1.bf16.msra.mxu0 %v3442
    %3489 = vmatprep.subr.bf16.mxu0 0
    %3490 = vmatpush2.bf16.msra.mxu0 0
    %3491 = vmatprep.subr.bf16.mxu0 0
    %3492 = vmatpush2.bf16.msra.mxu0 0
    %3493 = vmatprep.subr.bf16.mxu0 0
    %3494 = vmatpush2.bf16.msra.mxu0 0
    %3495 = vmatprep.subr.bf16.mxu0 0
    %3496 = vmatpush2.bf16.msra.mxu0 0
    %3497 = vmatprep.subr.bf16.mxu0 0
    %3498 = vmatpush2.bf16.msra.mxu0 0
    %3499 = vmatprep.subr.bf16.mxu0 0
    %3500 = vmatpush2.bf16.msra.mxu0 0
    %3501 = vmatprep.subr.bf16.mxu0 0
    %3502 = vmatpush2.bf16.msra.mxu0 0
    %3503 = vmatprep.subr.bf16.mxu0 0
    %3504 = vmatpush2.bf16.msra.mxu0 0
    %3505 = vmatprep.mubr.bf16.mxu0 0
    %3506 = vmatmul.mubr.bf16.gmra.mxu0 %v3447
    %v3507 = vpop.f32.mrf.mxu0
    %v3508 = vadd.f32 0.0, %v3507
    %v3509 = vpop.f32.mrf.mxu0
    %v3510 = vpop.f32.mrf.mxu0
    %v3511 = vadd.f32 0.0, %v3510
    %v3512 = vpop.f32.mrf.mxu0
    %3513 = vmatprep.mubr.bf16.mxu0 0
    %3514 = vmatmul.mubr.bf16.gmra.mxu0 %v3450
    %v3515 = vpop.f32.mrf.mxu0
    %v3516 = vadd.f32 0.0, %v3515
    %v3517 = vpop.f32.mrf.mxu0
    %v3518 = vpop.f32.mrf.mxu0
    %v3519 = vadd.f32 0.0, %v3518
    %v3520 = vpop.f32.mrf.mxu0
    %3521 = vmatprep.mubr.bf16.mxu0 0
    %3522 = vmatmul.mubr.bf16.gmra.mxu0 %v3453
    %v3523 = vpop.f32.mrf.mxu0
    %v3524 = vadd.f32 0.0, %v3523
    %v3525 = vpop.f32.mrf.mxu0
    %v3526 = vpop.f32.mrf.mxu0
    %v3527 = vadd.f32 0.0, %v3526
    %v3528 = vpop.f32.mrf.mxu0
    %3529 = vmatprep.mubr.bf16.mxu0 0
    %3530 = vmatmul.mubr.bf16.gmra.mxu0 %v3456
    %v3531 = vpop.f32.mrf.mxu0
    %v3532 = vadd.f32 0.0, %v3531
    %v3533 = vpop.f32.mrf.mxu0
    %v3534 = vpop.f32.mrf.mxu0
    %v3535 = vadd.f32 0.0, %v3534
    %v3536 = vpop.f32.mrf.mxu0
    %3537 = vmatprep.mubr.bf16.mxu0 0
    %3538 = vmatmul.mubr.bf16.gmra.mxu0 %v3459
    %v3539 = vpop.f32.mrf.mxu0
    %v3540 = vadd.f32 0.0, %v3539
    %v3541 = vpop.f32.mrf.mxu0
    %v3542 = vpop.f32.mrf.mxu0
    %v3543 = vadd.f32 0.0, %v3542
    %v3544 = vpop.f32.mrf.mxu0
    %3545 = vmatprep.mubr.bf16.mxu0 0
    %3546 = vmatmul.mubr.bf16.gmra.mxu0 %v3462
    %v3547 = vpop.f32.mrf.mxu0
    %v3548 = vadd.f32 0.0, %v3547
    %v3549 = vpop.f32.mrf.mxu0
    %v3550 = vpop.f32.mrf.mxu0
    %v3551 = vadd.f32 0.0, %v3550
    %v3552 = vpop.f32.mrf.mxu0
    %3553 = vmatprep.mubr.bf16.mxu0 0
    %3554 = vmatmul.mubr.bf16.gmra.mxu0 %v3465
    %v3555 = vpop.f32.mrf.mxu0
    %v3556 = vadd.f32 0.0, %v3555
    %v3557 = vpop.f32.mrf.mxu0
    %v3558 = vpop.f32.mrf.mxu0
    %v3559 = vadd.f32 0.0, %v3558
    %v3560 = vpop.f32.mrf.mxu0
    %3561 = vmatprep.mubr.bf16.mxu0 0
    %3562 = vmatmul.mubr.bf16.gmra.mxu0 %v3468
    %v3563 = vpop.f32.mrf.mxu0
    %v3564 = vadd.f32 0.0, %v3563
    %v3565 = vpop.f32.mrf.mxu0
    %v3566 = vpop.f32.mrf.mxu0
    %v3567 = vadd.f32 0.0, %v3566
    %v3568 = vpop.f32.mrf.mxu0
    %3569 = vmatprep.mubr.bf16.mxu0 0
    %3570 = vmatmul.mubr.bf16.gmra.mxu0 %v3471
    %v3571 = vpop.f32.mrf.mxu0
    %v3572 = vadd.f32 0.0, %v3571
    %v3573 = vpop.f32.mrf.mxu0
    %v3574 = vpop.f32.mrf.mxu0
    %v3575 = vadd.f32 0.0, %v3574
    %v3576 = vpop.f32.mrf.mxu0
    %3577 = vdwg.mxu0
    %v3578 = vadd.f32 %v3274, %v3508
    %v3579 = vadd.f32 %v3275, %v3511
    %v3580 = vadd.f32 %v3276, %v3516
    %v3581 = vadd.f32 %v3277, %v3519
    %v3582 = vadd.f32 %v3278, %v3524
    %v3583 = vadd.f32 %v3279, %v3527
    %v3584 = vadd.f32 %v3280, %v3532
    %v3585 = vadd.f32 %v3281, %v3535
    %v3586 = vadd.f32 %v3282, %v3540
    %v3587 = vadd.f32 %v3283, %v3543
    %v3588 = vadd.f32 %v3284, %v3548
    %v3589 = vadd.f32 %v3285, %v3551
    %v3590 = vadd.f32 %v3286, %v3556
    %v3591 = vadd.f32 %v3287, %v3559
    %v3592 = vadd.f32 %v3288, %v3564
    %v3593 = vadd.f32 %v3289, %v3567
    %v3594 = vadd.f32 %v3290, %v3572
    %v3595 = vadd.f32 %v3291, %v3575
    %3596 = vst.msk [vmem:[#allocation3] sm:$0xff] %vm129, %v3578
    %3597 = vst.msk [vmem:[#allocation3 + $0x8] sm:$0xff] %vm129, %v3579
    %3598 = vst.msk [vmem:[#allocation3 + $0x10] sm:$0xff] %vm129, %v3580
    %3599 = vst.msk [vmem:[#allocation3 + $0x18] sm:$0xff] %vm129, %v3581
    %3600 = vst.msk [vmem:[#allocation3 + $0x20] sm:$0xff] %vm129, %v3582
    %3601 = vst.msk [vmem:[#allocation3 + $0x28] sm:$0xff] %vm129, %v3583
    %3602 = vst.msk [vmem:[#allocation3 + $0x30] sm:$0xff] %vm129, %v3584
    %3603 = vst.msk [vmem:[#allocation3 + $0x38] sm:$0xff] %vm129, %v3585
    %3604 = vst.msk [vmem:[#allocation3 + $0x40] sm:$0xff] %vm129, %v3586
    %3605 = vst.msk [vmem:[#allocation3 + $0x48] sm:$0xff] %vm129, %v3587
    %3606 = vst.msk [vmem:[#allocation3 + $0x50] sm:$0xff] %vm129, %v3588
    %3607 = vst.msk [vmem:[#allocation3 + $0x58] sm:$0xff] %vm129, %v3589
    %3608 = vst.msk [vmem:[#allocation3 + $0x60] sm:$0xff] %vm129, %v3590
    %3609 = vst.msk [vmem:[#allocation3 + $0x68] sm:$0xff] %vm129, %v3591
    %3610 = vst.msk [vmem:[#allocation3 + $0x70] sm:$0xff] %vm129, %v3592
    %3611 = vst.msk [vmem:[#allocation3 + $0x78] sm:$0xff] %vm129, %v3593
    %3612 = vst.msk [vmem:[#allocation3 + $0x80] sm:$0xff] %vm129, %v3594
    %3613 = vst.msk [vmem:[#allocation3 + $0x88] sm:$0xff] %vm129, %v3595
    %v3614 = vld [vmem:[#allocation2 + $0xc] sm:$0xf]
    %v3615 = vld [vmem:[#allocation2 + $0x10] sm:$0xf]
    %v3616 = vld [vmem:[#allocation2 + $0x14] sm:$0xf]
    %v3617 = vld [vmem:[#allocation2 + $0x18] sm:$0xf]
    %v3618 = vld [vmem:[#allocation2 + $0x1c] sm:$0xf]
    %v3619 = vld [vmem:[#allocation2 + $0x20] sm:$0xf]
    %v3620 = vld [vmem:[#allocation2 + $0x24] sm:$0xf]
    %v3621 = vld [vmem:[#allocation2 + $0x28] sm:$0xf]
    %v3622 = vld [vmem:[#allocation2 + $0x2c] sm:$0xf]
    %v3623 = vld [vmem:[#allocation2 + $0x30] sm:$0xf]
    %v3624 = vld [vmem:[#allocation2 + $0x34] sm:$0xf]
    %v3625 = vld [vmem:[#allocation2 + $0x38] sm:$0xf]
    %v3626 = vld [vmem:[#allocation2 + $0x3c] sm:$0xf]
    %v3627 = vld [vmem:[#allocation2 + $0x40] sm:$0xf]
    %v3628 = vld [vmem:[#allocation2 + $0x44] sm:$0xf]
    %v3629 = vld [vmem:[#allocation2 + $0x48] sm:$0xf]
    %v3630 = vld [vmem:[#allocation2 + $0x4c] sm:$0xf]
    %v3631 = vld [vmem:[#allocation2 + $0x50] sm:$0xf]
    %v3632 = vmul.bf16 %v3614, %v973
    %v3633 = vmul.bf16 %v3615, %v985
    %v3634 = vmul.bf16 %v3616, %v997
    %v3635 = vmul.bf16 %v3617, %v1009
    %v3636 = vmul.bf16 %v3618, %v1021
    %v3637 = vmul.bf16 %v3619, %v1033
    %v3638 = vmul.bf16 %v3620, %v1045
    %v3639 = vmul.bf16 %v3621, %v1057
    %v3640 = vmul.bf16 %v3622, %v1069
    %v3641 = vmul.bf16 %v3623, %v1081
    %v3642 = vmul.bf16 %v3624, %v1093
    %v3643 = vmul.bf16 %v3625, %v1105
    %v3644 = vmul.bf16 %v3626, %v1117
    %v3645 = vmul.bf16 %v3627, %v1129
    %v3646 = vmul.bf16 %v3628, %v1141
    %v3647 = vmul.bf16 %v3629, %v1153
    %v3648 = vmul.bf16 %v3630, %v1165
    %v3649 = vmul.bf16 %v3631, %v1177
    %v3650 = vld [vmem:[#allocation3] sm:$0xff]
    %v3651 = vld [vmem:[#allocation3 + $0x8] sm:$0xff]
    %v3652 = vld [vmem:[#allocation3 + $0x10] sm:$0xff]
    %v3653 = vld [vmem:[#allocation3 + $0x18] sm:$0xff]
    %v3654 = vld [vmem:[#allocation3 + $0x20] sm:$0xff]
    %v3655 = vld [vmem:[#allocation3 + $0x28] sm:$0xff]
    %v3656 = vld [vmem:[#allocation3 + $0x30] sm:$0xff]
    %v3657 = vld [vmem:[#allocation3 + $0x38] sm:$0xff]
    %v3658 = vld [vmem:[#allocation3 + $0x40] sm:$0xff]
    %v3659 = vld [vmem:[#allocation3 + $0x48] sm:$0xff]
    %v3660 = vld [vmem:[#allocation3 + $0x50] sm:$0xff]
    %v3661 = vld [vmem:[#allocation3 + $0x58] sm:$0xff]
    %v3662 = vld [vmem:[#allocation3 + $0x60] sm:$0xff]
    %v3663 = vld [vmem:[#allocation3 + $0x68] sm:$0xff]
    %v3664 = vld [vmem:[#allocation3 + $0x70] sm:$0xff]
    %v3665 = vld [vmem:[#allocation3 + $0x78] sm:$0xff]
    %v3666 = vld [vmem:[#allocation3 + $0x80] sm:$0xff]
    %v3667 = vld [vmem:[#allocation3 + $0x88] sm:$0xff]
    %s3668 = scalar_lea.vmem %s2, 112
    %v3669 = vld [vmem:[%s3668] sm:$0xf]
    %v3670 = vld [vmem:[%s3668 + $0x4] sm:$0xf]
    %v3671 = vld [vmem:[%s3668 + $0x8] sm:$0xf]
    %v3672 = vld [vmem:[%s3668 + $0xc] sm:$0xf]
    %v3691 = vunpack.c.l.b16 %v3632
    %v3692 = vunpack.c.l.b16 %v3633
    %v3693 = vunpack.c.l.b16 %v3634
    %v3694 = vunpack.c.l.b16 %v3635
    %v3695 = vunpack.c.l.b16 %v3636
    %v3696 = vunpack.c.l.b16 %v3637
    %v3697 = vunpack.c.l.b16 %v3638
    %v3698 = vunpack.c.l.b16 %v3639
    %v3699 = vunpack.c.l.b16 %v3640
    %v3700 = vunpack.c.l.b16 %v3641
    %v3701 = vunpack.c.l.b16 %v3642
    %v3702 = vunpack.c.l.b16 %v3643
    %v3703 = vunpack.c.l.b16 %v3644
    %v3704 = vunpack.c.l.b16 %v3645
    %v3705 = vunpack.c.l.b16 %v3646
    %v3706 = vunpack.c.l.b16 %v3647
    %v3707 = vunpack.c.l.b16 %v3648
    %v3708 = vunpack.c.l.b16 %v3649
    %v3709 = vpack.c.b16 %v3692, %v3691
    %v3710 = vpack.c.b16 %v3694, %v3693
    %v3711 = vpack.c.b16 %v3696, %v3695
    %v3712 = vpack.c.b16 %v3698, %v3697
    %v3713 = vpack.c.b16 %v3700, %v3699
    %v3714 = vpack.c.b16 %v3702, %v3701
    %v3715 = vpack.c.b16 %v3704, %v3703
    %v3716 = vpack.c.b16 %v3706, %v3705
    %v3717 = vpack.c.b16 %v3708, %v3707
    %v3722 = vunpack.c.l.b16 %v3669
    %v3723 = vunpack.c.l.b16 %v3670
    %v3724 = vunpack.c.l.b16 %v3671
    %v3725 = vunpack.c.l.b16 %v3672
    %v3726 = vpack.c.b16 %v3723, %v3722
    %v3727 = vpack.c.b16 %v3725, %v3724
    %v3731 = vsel %vm775, %v3709, 0
    %v3734 = vsel %vm775, %v3710, 0
    %v3737 = vsel %vm775, %v3711, 0
    %v3740 = vsel %vm775, %v3712, 0
    %v3743 = vsel %vm775, %v3713, 0
    %v3746 = vsel %vm775, %v3714, 0
    %v3749 = vsel %vm775, %v3715, 0
    %v3752 = vsel %vm775, %v3716, 0
    %v3755 = vsel %vm775, %v3717, 0
    %3757 = vmatprep.subr.bf16.mxu0 0
    %3758 = vmatpush1.bf16.msra.mxu0 0
    %3759 = vmatprep.subr.bf16.mxu0 0
    %3760 = vmatpush1.bf16.msra.mxu0 0
    %3761 = vmatprep.subr.bf16.mxu0 0
    %3762 = vmatpush1.bf16.msra.mxu0 0
    %3763 = vmatprep.subr.bf16.mxu0 0
    %3764 = vmatpush1.bf16.msra.mxu0 0
    %3765 = vmatprep.subr.bf16.mxu0 0
    %3766 = vmatpush1.bf16.msra.mxu0 0
    %3767 = vmatprep.subr.bf16.mxu0 0
    %3768 = vmatpush1.bf16.msra.mxu0 0
    %3769 = vmatprep.subr.bf16.mxu0 0
    %3770 = vmatpush1.bf16.msra.mxu0 %v3727
    %3771 = vmatprep.subr.bf16.mxu0 0
    %3772 = vmatpush1.bf16.msra.mxu0 %v3726
    %3773 = vmatprep.subr.bf16.mxu0 0
    %3774 = vmatpush2.bf16.msra.mxu0 0
    %3775 = vmatprep.subr.bf16.mxu0 0
    %3776 = vmatpush2.bf16.msra.mxu0 0
    %3777 = vmatprep.subr.bf16.mxu0 0
    %3778 = vmatpush2.bf16.msra.mxu0 0
    %3779 = vmatprep.subr.bf16.mxu0 0
    %3780 = vmatpush2.bf16.msra.mxu0 0
    %3781 = vmatprep.subr.bf16.mxu0 0
    %3782 = vmatpush2.bf16.msra.mxu0 0
    %3783 = vmatprep.subr.bf16.mxu0 0
    %3784 = vmatpush2.bf16.msra.mxu0 0
    %3785 = vmatprep.subr.bf16.mxu0 0
    %3786 = vmatpush2.bf16.msra.mxu0 0
    %3787 = vmatprep.subr.bf16.mxu0 0
    %3788 = vmatpush2.bf16.msra.mxu0 0
    %3789 = vmatprep.mubr.bf16.mxu0 0
    %3790 = vmatmul.mubr.bf16.gmra.mxu0 %v3731
    %v3791 = vpop.f32.mrf.mxu0
    %v3792 = vadd.f32 0.0, %v3791
    %v3793 = vpop.f32.mrf.mxu0
    %v3794 = vpop.f32.mrf.mxu0
    %v3795 = vadd.f32 0.0, %v3794
    %v3796 = vpop.f32.mrf.mxu0
    %3797 = vmatprep.mubr.bf16.mxu0 0
    %3798 = vmatmul.mubr.bf16.gmra.mxu0 %v3734
    %v3799 = vpop.f32.mrf.mxu0
    %v3800 = vadd.f32 0.0, %v3799
    %v3801 = vpop.f32.mrf.mxu0
    %v3802 = vpop.f32.mrf.mxu0
    %v3803 = vadd.f32 0.0, %v3802
    %v3804 = vpop.f32.mrf.mxu0
    %3805 = vmatprep.mubr.bf16.mxu0 0
    %3806 = vmatmul.mubr.bf16.gmra.mxu0 %v3737
    %v3807 = vpop.f32.mrf.mxu0
    %v3808 = vadd.f32 0.0, %v3807
    %v3809 = vpop.f32.mrf.mxu0
    %v3810 = vpop.f32.mrf.mxu0
    %v3811 = vadd.f32 0.0, %v3810
    %v3812 = vpop.f32.mrf.mxu0
    %3813 = vmatprep.mubr.bf16.mxu0 0
    %3814 = vmatmul.mubr.bf16.gmra.mxu0 %v3740
    %v3815 = vpop.f32.mrf.mxu0
    %v3816 = vadd.f32 0.0, %v3815
    %v3817 = vpop.f32.mrf.mxu0
    %v3818 = vpop.f32.mrf.mxu0
    %v3819 = vadd.f32 0.0, %v3818
    %v3820 = vpop.f32.mrf.mxu0
    %3821 = vmatprep.mubr.bf16.mxu0 0
    %3822 = vmatmul.mubr.bf16.gmra.mxu0 %v3743
    %v3823 = vpop.f32.mrf.mxu0
    %v3824 = vadd.f32 0.0, %v3823
    %v3825 = vpop.f32.mrf.mxu0
    %v3826 = vpop.f32.mrf.mxu0
    %v3827 = vadd.f32 0.0, %v3826
    %v3828 = vpop.f32.mrf.mxu0
    %3829 = vmatprep.mubr.bf16.mxu0 0
    %3830 = vmatmul.mubr.bf16.gmra.mxu0 %v3746
    %v3831 = vpop.f32.mrf.mxu0
    %v3832 = vadd.f32 0.0, %v3831
    %v3833 = vpop.f32.mrf.mxu0
    %v3834 = vpop.f32.mrf.mxu0
    %v3835 = vadd.f32 0.0, %v3834
    %v3836 = vpop.f32.mrf.mxu0
    %3837 = vmatprep.mubr.bf16.mxu0 0
    %3838 = vmatmul.mubr.bf16.gmra.mxu0 %v3749
    %v3839 = vpop.f32.mrf.mxu0
    %v3840 = vadd.f32 0.0, %v3839
    %v3841 = vpop.f32.mrf.mxu0
    %v3842 = vpop.f32.mrf.mxu0
    %v3843 = vadd.f32 0.0, %v3842
    %v3844 = vpop.f32.mrf.mxu0
    %3845 = vmatprep.mubr.bf16.mxu0 0
    %3846 = vmatmul.mubr.bf16.gmra.mxu0 %v3752
    %v3847 = vpop.f32.mrf.mxu0
    %v3848 = vadd.f32 0.0, %v3847
    %v3849 = vpop.f32.mrf.mxu0
    %v3850 = vpop.f32.mrf.mxu0
    %v3851 = vadd.f32 0.0, %v3850
    %v3852 = vpop.f32.mrf.mxu0
    %3853 = vmatprep.mubr.bf16.mxu0 0
    %3854 = vmatmul.mubr.bf16.gmra.mxu0 %v3755
    %v3855 = vpop.f32.mrf.mxu0
    %v3856 = vadd.f32 0.0, %v3855
    %v3857 = vpop.f32.mrf.mxu0
    %v3858 = vpop.f32.mrf.mxu0
    %v3859 = vadd.f32 0.0, %v3858
    %v3860 = vpop.f32.mrf.mxu0
    %3861 = vdwg.mxu0
    %v3862 = vadd.f32 %v3650, %v3792
    %v3863 = vadd.f32 %v3651, %v3795
    %v3864 = vadd.f32 %v3652, %v3800
    %v3865 = vadd.f32 %v3653, %v3803
    %v3866 = vadd.f32 %v3654, %v3808
    %v3867 = vadd.f32 %v3655, %v3811
    %v3868 = vadd.f32 %v3656, %v3816
    %v3869 = vadd.f32 %v3657, %v3819
    %v3870 = vadd.f32 %v3658, %v3824
    %v3871 = vadd.f32 %v3659, %v3827
    %v3872 = vadd.f32 %v3660, %v3832
    %v3873 = vadd.f32 %v3661, %v3835
    %v3874 = vadd.f32 %v3662, %v3840
    %v3875 = vadd.f32 %v3663, %v3843
    %v3876 = vadd.f32 %v3664, %v3848
    %v3877 = vadd.f32 %v3665, %v3851
    %v3878 = vadd.f32 %v3666, %v3856
    %v3879 = vadd.f32 %v3667, %v3859
    %3880 = vst.msk [vmem:[#allocation3] sm:$0xff] %vm129, %v3862
    %3881 = vst.msk [vmem:[#allocation3 + $0x8] sm:$0xff] %vm129, %v3863
    %3882 = vst.msk [vmem:[#allocation3 + $0x10] sm:$0xff] %vm129, %v3864
    %3883 = vst.msk [vmem:[#allocation3 + $0x18] sm:$0xff] %vm129, %v3865
    %3884 = vst.msk [vmem:[#allocation3 + $0x20] sm:$0xff] %vm129, %v3866
    %3885 = vst.msk [vmem:[#allocation3 + $0x28] sm:$0xff] %vm129, %v3867
    %3886 = vst.msk [vmem:[#allocation3 + $0x30] sm:$0xff] %vm129, %v3868
    %3887 = vst.msk [vmem:[#allocation3 + $0x38] sm:$0xff] %vm129, %v3869
    %3888 = vst.msk [vmem:[#allocation3 + $0x40] sm:$0xff] %vm129, %v3870
    %3889 = vst.msk [vmem:[#allocation3 + $0x48] sm:$0xff] %vm129, %v3871
    %3890 = vst.msk [vmem:[#allocation3 + $0x50] sm:$0xff] %vm129, %v3872
    %3891 = vst.msk [vmem:[#allocation3 + $0x58] sm:$0xff] %vm129, %v3873
    %3892 = vst.msk [vmem:[#allocation3 + $0x60] sm:$0xff] %vm129, %v3874
    %3893 = vst.msk [vmem:[#allocation3 + $0x68] sm:$0xff] %vm129, %v3875
    %3894 = vst.msk [vmem:[#allocation3 + $0x70] sm:$0xff] %vm129, %v3876
    %3895 = vst.msk [vmem:[#allocation3 + $0x78] sm:$0xff] %vm129, %v3877
    %3896 = vst.msk [vmem:[#allocation3 + $0x80] sm:$0xff] %vm129, %v3878
    %3897 = vst.msk [vmem:[#allocation3 + $0x88] sm:$0xff] %vm129, %v3879
    %v3898 = vld [vmem:[#allocation2 + $0xc] sm:$0xf]
    %v3899 = vld [vmem:[#allocation2 + $0x10] sm:$0xf]
    %v3900 = vld [vmem:[#allocation2 + $0x14] sm:$0xf]
    %v3901 = vld [vmem:[#allocation2 + $0x18] sm:$0xf]
    %v3902 = vld [vmem:[#allocation2 + $0x1c] sm:$0xf]
    %v3903 = vld [vmem:[#allocation2 + $0x20] sm:$0xf]
    %v3904 = vld [vmem:[#allocation2 + $0x24] sm:$0xf]
    %v3905 = vld [vmem:[#allocation2 + $0x28] sm:$0xf]
    %v3906 = vld [vmem:[#allocation2 + $0x2c] sm:$0xf]
    %v3907 = vld [vmem:[#allocation2 + $0x30] sm:$0xf]
    %v3908 = vld [vmem:[#allocation2 + $0x34] sm:$0xf]
    %v3909 = vld [vmem:[#allocation2 + $0x38] sm:$0xf]
    %v3910 = vld [vmem:[#allocation2 + $0x3c] sm:$0xf]
    %v3911 = vld [vmem:[#allocation2 + $0x40] sm:$0xf]
    %v3912 = vld [vmem:[#allocation2 + $0x44] sm:$0xf]
    %v3913 = vld [vmem:[#allocation2 + $0x48] sm:$0xf]
    %v3914 = vld [vmem:[#allocation2 + $0x4c] sm:$0xf]
    %v3915 = vld [vmem:[#allocation2 + $0x50] sm:$0xf]
    %v3916 = vld [vmem:[#allocation2 + $0x54] sm:$0x1]
    %v3917 = vmul.bf16 %v3898, %v1688
    %v3918 = vmul.bf16 %v3899, %v1697
    %v3919 = vmul.bf16 %v3900, %v1706
    %v3920 = vmul.bf16 %v3901, %v1715
    %v3921 = vmul.bf16 %v3902, %v1724
    %v3922 = vmul.bf16 %v3903, %v1733
    %v3923 = vmul.bf16 %v3904, %v1742
    %v3924 = vmul.bf16 %v3905, %v1751
    %v3925 = vmul.bf16 %v3906, %v1760
    %v3926 = vmul.bf16 %v3907, %v1769
    %v3927 = vmul.bf16 %v3908, %v1778
    %v3928 = vmul.bf16 %v3909, %v1787
    %v3929 = vmul.bf16 %v3910, %v1796
    %v3930 = vmul.bf16 %v3911, %v1805
    %v3931 = vmul.bf16 %v3912, %v1814
    %v3932 = vmul.bf16 %v3913, %v1823
    %v3933 = vmul.bf16 %v3914, %v1832
    %v3934 = vmul.bf16 %v3915, %v1841
    %v3935 = vmul.bf16 %v3916, %v1842
    %v3936 = vld [vmem:[#allocation3] sm:$0xff]
    %v3937 = vld [vmem:[#allocation3 + $0x8] sm:$0xff]
    %v3938 = vld [vmem:[#allocation3 + $0x10] sm:$0xff]
    %v3939 = vld [vmem:[#allocation3 + $0x18] sm:$0xff]
    %v3940 = vld [vmem:[#allocation3 + $0x20] sm:$0xff]
    %v3941 = vld [vmem:[#allocation3 + $0x28] sm:$0xff]
    %v3942 = vld [vmem:[#allocation3 + $0x30] sm:$0xff]
    %v3943 = vld [vmem:[#allocation3 + $0x38] sm:$0xff]
    %v3944 = vld [vmem:[#allocation3 + $0x40] sm:$0xff]
    %v3945 = vld [vmem:[#allocation3 + $0x48] sm:$0xff]
    %v3946 = vld [vmem:[#allocation3 + $0x50] sm:$0xff]
    %v3947 = vld [vmem:[#allocation3 + $0x58] sm:$0xff]
    %v3948 = vld [vmem:[#allocation3 + $0x60] sm:$0xff]
    %v3949 = vld [vmem:[#allocation3 + $0x68] sm:$0xff]
    %v3950 = vld [vmem:[#allocation3 + $0x70] sm:$0xff]
    %v3951 = vld [vmem:[#allocation3 + $0x78] sm:$0xff]
    %v3952 = vld [vmem:[#allocation3 + $0x80] sm:$0xff]
    %v3953 = vld [vmem:[#allocation3 + $0x88] sm:$0xff]
    %s3954 = scalar_lea.vmem %s2, 128
    %v3955 = vld [vmem:[%s3954] sm:$0xf]
    %v3956 = vld [vmem:[%s3954 + $0x4] sm:$0xf]
    %v3957 = vld [vmem:[%s3954 + $0x8] sm:$0xf]
    %v3958 = vld [vmem:[%s3954 + $0xc] sm:$0xf]
    %v3978 = vunpack.c.l.b16 %v3917
    %v3979 = vunpack.c.l.b16 %v3918
    %v3980 = vunpack.c.l.b16 %v3919
    %v3981 = vunpack.c.l.b16 %v3920
    %v3982 = vunpack.c.l.b16 %v3921
    %v3983 = vunpack.c.l.b16 %v3922
    %v3984 = vunpack.c.l.b16 %v3923
    %v3985 = vunpack.c.l.b16 %v3924
    %v3986 = vunpack.c.l.b16 %v3925
    %v3987 = vunpack.c.l.b16 %v3926
    %v3988 = vunpack.c.l.b16 %v3927
    %v3989 = vunpack.c.l.b16 %v3928
    %v3990 = vunpack.c.l.b16 %v3929
    %v3991 = vunpack.c.l.b16 %v3930
    %v3992 = vunpack.c.l.b16 %v3931
    %v3993 = vunpack.c.l.b16 %v3932
    %v3994 = vunpack.c.l.b16 %v3933
    %v3995 = vunpack.c.l.b16 %v3934
    %v3996 = vunpack.c.l.b16 %v3935
    %v3997 = vpack.c.b16 %v3979, %v3978
    %v3998 = vpack.c.b16 %v3981, %v3980
    %v3999 = vpack.c.b16 %v3983, %v3982
    %v4000 = vpack.c.b16 %v3985, %v3984
    %v4001 = vpack.c.b16 %v3987, %v3986
    %v4002 = vpack.c.b16 %v3989, %v3988
    %v4003 = vpack.c.b16 %v3991, %v3990
    %v4004 = vpack.c.b16 %v3993, %v3992
    %v4005 = vpack.c.b16 %v3995, %v3994
    %v4006 = vpack.c.b16 %v3996, %v3996
    %v4008 = vshrl.u32 %v3997, 16
    %v4010 = vshll.u32 %v3997, 16
    %v4012 = vrot.slane %v4010, 1
    %v4013 = vor.u32 %v4008, %v4012
    %v4015 = vshll.u32 %v3998, 16
    %v4017 = vrot.slane %v4015, 1
    %v4018 = vsel %vm1952, %v4013, %v4017
    %v4019 = vshrl.u32 %v3998, 16
    %v4021 = vor.u32 %v4019, %v4017
    %v4023 = vshll.u32 %v3999, 16
    %v4025 = vrot.slane %v4023, 1
    %v4026 = vsel %vm1952, %v4021, %v4025
    %v4027 = vshrl.u32 %v3999, 16
    %v4029 = vor.u32 %v4027, %v4025
    %v4031 = vshll.u32 %v4000, 16
    %v4033 = vrot.slane %v4031, 1
    %v4034 = vsel %vm1952, %v4029, %v4033
    %v4035 = vshrl.u32 %v4000, 16
    %v4037 = vor.u32 %v4035, %v4033
    %v4039 = vshll.u32 %v4001, 16
    %v4041 = vrot.slane %v4039, 1
    %v4042 = vsel %vm1952, %v4037, %v4041
    %v4043 = vshrl.u32 %v4001, 16
    %v4045 = vor.u32 %v4043, %v4041
    %v4047 = vshll.u32 %v4002, 16
    %v4049 = vrot.slane %v4047, 1
    %v4050 = vsel %vm1952, %v4045, %v4049
    %v4051 = vshrl.u32 %v4002, 16
    %v4053 = vor.u32 %v4051, %v4049
    %v4055 = vshll.u32 %v4003, 16
    %v4057 = vrot.slane %v4055, 1
    %v4058 = vsel %vm1952, %v4053, %v4057
    %v4059 = vshrl.u32 %v4003, 16
    %v4061 = vor.u32 %v4059, %v4057
    %v4063 = vshll.u32 %v4004, 16
    %v4065 = vrot.slane %v4063, 1
    %v4066 = vsel %vm1952, %v4061, %v4065
    %v4067 = vshrl.u32 %v4004, 16
    %v4069 = vor.u32 %v4067, %v4065
    %v4071 = vshll.u32 %v4005, 16
    %v4073 = vrot.slane %v4071, 1
    %v4074 = vsel %vm1952, %v4069, %v4073
    %v4075 = vshrl.u32 %v4005, 16
    %v4077 = vor.u32 %v4075, %v4073
    %v4079 = vshll.u32 %v4006, 16
    %v4081 = vrot.slane %v4079, 1
    %v4082 = vsel %vm1952, %v4077, %v4081
    %v4087 = vunpack.c.l.b16 %v3955
    %v4088 = vunpack.c.l.b16 %v3956
    %v4089 = vunpack.c.l.b16 %v3957
    %v4090 = vunpack.c.l.b16 %v3958
    %v4091 = vpack.c.b16 %v4088, %v4087
    %v4092 = vpack.c.b16 %v4090, %v4089
    %v4096 = vsel %vm775, %v4018, 0
    %v4099 = vsel %vm775, %v4026, 0
    %v4102 = vsel %vm775, %v4034, 0
    %v4105 = vsel %vm775, %v4042, 0
    %v4108 = vsel %vm775, %v4050, 0
    %v4111 = vsel %vm775, %v4058, 0
    %v4114 = vsel %vm775, %v4066, 0
    %v4117 = vsel %vm775, %v4074, 0
    %v4120 = vsel %vm775, %v4082, 0
    %4122 = vmatprep.subr.bf16.mxu0 0
    %4123 = vmatpush1.bf16.msra.mxu0 0
    %4124 = vmatprep.subr.bf16.mxu0 0
    %4125 = vmatpush1.bf16.msra.mxu0 0
    %4126 = vmatprep.subr.bf16.mxu0 0
    %4127 = vmatpush1.bf16.msra.mxu0 0
    %4128 = vmatprep.subr.bf16.mxu0 0
    %4129 = vmatpush1.bf16.msra.mxu0 0
    %4130 = vmatprep.subr.bf16.mxu0 0
    %4131 = vmatpush1.bf16.msra.mxu0 0
    %4132 = vmatprep.subr.bf16.mxu0 0
    %4133 = vmatpush1.bf16.msra.mxu0 0
    %4134 = vmatprep.subr.bf16.mxu0 0
    %4135 = vmatpush1.bf16.msra.mxu0 %v4092
    %4136 = vmatprep.subr.bf16.mxu0 0
    %4137 = vmatpush1.bf16.msra.mxu0 %v4091
    %4138 = vmatprep.subr.bf16.mxu0 0
    %4139 = vmatpush2.bf16.msra.mxu0 0
    %4140 = vmatprep.subr.bf16.mxu0 0
    %4141 = vmatpush2.bf16.msra.mxu0 0
    %4142 = vmatprep.subr.bf16.mxu0 0
    %4143 = vmatpush2.bf16.msra.mxu0 0
    %4144 = vmatprep.subr.bf16.mxu0 0
    %4145 = vmatpush2.bf16.msra.mxu0 0
    %4146 = vmatprep.subr.bf16.mxu0 0
    %4147 = vmatpush2.bf16.msra.mxu0 0
    %4148 = vmatprep.subr.bf16.mxu0 0
    %4149 = vmatpush2.bf16.msra.mxu0 0
    %4150 = vmatprep.subr.bf16.mxu0 0
    %4151 = vmatpush2.bf16.msra.mxu0 0
    %4152 = vmatprep.subr.bf16.mxu0 0
    %4153 = vmatpush2.bf16.msra.mxu0 0
    %4154 = vmatprep.mubr.bf16.mxu0 0
    %4155 = vmatmul.mubr.bf16.gmra.mxu0 %v4096
    %v4156 = vpop.f32.mrf.mxu0
    %v4157 = vadd.f32 0.0, %v4156
    %v4158 = vpop.f32.mrf.mxu0
    %v4159 = vpop.f32.mrf.mxu0
    %v4160 = vadd.f32 0.0, %v4159
    %v4161 = vpop.f32.mrf.mxu0
    %4162 = vmatprep.mubr.bf16.mxu0 0
    %4163 = vmatmul.mubr.bf16.gmra.mxu0 %v4099
    %v4164 = vpop.f32.mrf.mxu0
    %v4165 = vadd.f32 0.0, %v4164
    %v4166 = vpop.f32.mrf.mxu0
    %v4167 = vpop.f32.mrf.mxu0
    %v4168 = vadd.f32 0.0, %v4167
    %v4169 = vpop.f32.mrf.mxu0
    %4170 = vmatprep.mubr.bf16.mxu0 0
    %4171 = vmatmul.mubr.bf16.gmra.mxu0 %v4102
    %v4172 = vpop.f32.mrf.mxu0
    %v4173 = vadd.f32 0.0, %v4172
    %v4174 = vpop.f32.mrf.mxu0
    %v4175 = vpop.f32.mrf.mxu0
    %v4176 = vadd.f32 0.0, %v4175
    %v4177 = vpop.f32.mrf.mxu0
    %4178 = vmatprep.mubr.bf16.mxu0 0
    %4179 = vmatmul.mubr.bf16.gmra.mxu0 %v4105
    %v4180 = vpop.f32.mrf.mxu0
    %v4181 = vadd.f32 0.0, %v4180
    %v4182 = vpop.f32.mrf.mxu0
    %v4183 = vpop.f32.mrf.mxu0
    %v4184 = vadd.f32 0.0, %v4183
    %v4185 = vpop.f32.mrf.mxu0
    %4186 = vmatprep.mubr.bf16.mxu0 0
    %4187 = vmatmul.mubr.bf16.gmra.mxu0 %v4108
    %v4188 = vpop.f32.mrf.mxu0
    %v4189 = vadd.f32 0.0, %v4188
    %v4190 = vpop.f32.mrf.mxu0
    %v4191 = vpop.f32.mrf.mxu0
    %v4192 = vadd.f32 0.0, %v4191
    %v4193 = vpop.f32.mrf.mxu0
    %4194 = vmatprep.mubr.bf16.mxu0 0
    %4195 = vmatmul.mubr.bf16.gmra.mxu0 %v4111
    %v4196 = vpop.f32.mrf.mxu0
    %v4197 = vadd.f32 0.0, %v4196
    %v4198 = vpop.f32.mrf.mxu0
    %v4199 = vpop.f32.mrf.mxu0
    %v4200 = vadd.f32 0.0, %v4199
    %v4201 = vpop.f32.mrf.mxu0
    %4202 = vmatprep.mubr.bf16.mxu0 0
    %4203 = vmatmul.mubr.bf16.gmra.mxu0 %v4114
    %v4204 = vpop.f32.mrf.mxu0
    %v4205 = vadd.f32 0.0, %v4204
    %v4206 = vpop.f32.mrf.mxu0
    %v4207 = vpop.f32.mrf.mxu0
    %v4208 = vadd.f32 0.0, %v4207
    %v4209 = vpop.f32.mrf.mxu0
    %4210 = vmatprep.mubr.bf16.mxu0 0
    %4211 = vmatmul.mubr.bf16.gmra.mxu0 %v4117
    %v4212 = vpop.f32.mrf.mxu0
    %v4213 = vadd.f32 0.0, %v4212
    %v4214 = vpop.f32.mrf.mxu0
    %v4215 = vpop.f32.mrf.mxu0
    %v4216 = vadd.f32 0.0, %v4215
    %v4217 = vpop.f32.mrf.mxu0
    %4218 = vmatprep.mubr.bf16.mxu0 0
    %4219 = vmatmul.mubr.bf16.gmra.mxu0 %v4120
    %v4220 = vpop.f32.mrf.mxu0
    %v4221 = vadd.f32 0.0, %v4220
    %v4222 = vpop.f32.mrf.mxu0
    %v4223 = vpop.f32.mrf.mxu0
    %v4224 = vadd.f32 0.0, %v4223
    %v4225 = vpop.f32.mrf.mxu0
    %4226 = vdwg.mxu0
    %v4227 = vadd.f32 %v3936, %v4157
    %v4228 = vadd.f32 %v3937, %v4160
    %v4229 = vadd.f32 %v3938, %v4165
    %v4230 = vadd.f32 %v3939, %v4168
    %v4231 = vadd.f32 %v3940, %v4173
    %v4232 = vadd.f32 %v3941, %v4176
    %v4233 = vadd.f32 %v3942, %v4181
    %v4234 = vadd.f32 %v3943, %v4184
    %v4235 = vadd.f32 %v3944, %v4189
    %v4236 = vadd.f32 %v3945, %v4192
    %v4237 = vadd.f32 %v3946, %v4197
    %v4238 = vadd.f32 %v3947, %v4200
    %v4239 = vadd.f32 %v3948, %v4205
    %v4240 = vadd.f32 %v3949, %v4208
    %v4241 = vadd.f32 %v3950, %v4213
    %v4242 = vadd.f32 %v3951, %v4216
    %v4243 = vadd.f32 %v3952, %v4221
    %v4244 = vadd.f32 %v3953, %v4224
    %4245 = vst.msk [vmem:[#allocation3] sm:$0xff] %vm129, %v4227
    %4246 = vst.msk [vmem:[#allocation3 + $0x8] sm:$0xff] %vm129, %v4228
    %4247 = vst.msk [vmem:[#allocation3 + $0x10] sm:$0xff] %vm129, %v4229
    %4248 = vst.msk [vmem:[#allocation3 + $0x18] sm:$0xff] %vm129, %v4230
    %4249 = vst.msk [vmem:[#allocation3 + $0x20] sm:$0xff] %vm129, %v4231
    %4250 = vst.msk [vmem:[#allocation3 + $0x28] sm:$0xff] %vm129, %v4232
    %4251 = vst.msk [vmem:[#allocation3 + $0x30] sm:$0xff] %vm129, %v4233
    %4252 = vst.msk [vmem:[#allocation3 + $0x38] sm:$0xff] %vm129, %v4234
    %4253 = vst.msk [vmem:[#allocation3 + $0x40] sm:$0xff] %vm129, %v4235
    %4254 = vst.msk [vmem:[#allocation3 + $0x48] sm:$0xff] %vm129, %v4236
    %4255 = vst.msk [vmem:[#allocation3 + $0x50] sm:$0xff] %vm129, %v4237
    %4256 = vst.msk [vmem:[#allocation3 + $0x58] sm:$0xff] %vm129, %v4238
    %4257 = vst.msk [vmem:[#allocation3 + $0x60] sm:$0xff] %vm129, %v4239
    %4258 = vst.msk [vmem:[#allocation3 + $0x68] sm:$0xff] %vm129, %v4240
    %4259 = vst.msk [vmem:[#allocation3 + $0x70] sm:$0xff] %vm129, %v4241
    %4260 = vst.msk [vmem:[#allocation3 + $0x78] sm:$0xff] %vm129, %v4242
    %4261 = vst.msk [vmem:[#allocation3 + $0x80] sm:$0xff] %vm129, %v4243
    %4262 = vst.msk [vmem:[#allocation3 + $0x88] sm:$0xff] %vm129, %v4244
    %v4263 = vld [vmem:[#allocation3] sm:$0xff]
    %v4264 = vld [vmem:[#allocation3 + $0x8] sm:$0xff]
    %v4265 = vld [vmem:[#allocation3 + $0x10] sm:$0xff]
    %v4266 = vld [vmem:[#allocation3 + $0x18] sm:$0xff]
    %v4267 = vld [vmem:[#allocation3 + $0x20] sm:$0xff]
    %v4268 = vld [vmem:[#allocation3 + $0x28] sm:$0xff]
    %v4269 = vld [vmem:[#allocation3 + $0x30] sm:$0xff]
    %v4270 = vld [vmem:[#allocation3 + $0x38] sm:$0xff]
    %v4271 = vld [vmem:[#allocation3 + $0x50] sm:$0xff]
    %v4272 = vld [vmem:[#allocation3 + $0x58] sm:$0xff]
    %v4273 = vld [vmem:[#allocation3 + $0x60] sm:$0xff]
    %v4274 = vld [vmem:[#allocation3 + $0x68] sm:$0xff]
    %v4275 = vld [vmem:[#allocation3 + $0x70] sm:$0xff]
    %v4276 = vld [vmem:[#allocation3 + $0x78] sm:$0xff]
    %v4277 = vld [vmem:[#allocation3 + $0x80] sm:$0xff]
    %v4278 = vld [vmem:[#allocation3 + $0x88] sm:$0xff]
    %v4279 = vld [vmem:[%s3] sm:$0x1]
    %v4281 = vlaneseq
    %v4282 = vshrl.u32 %v4281, 7
    %v4283 = vsub.s32 0, %v4282
    %v4284 = vrot.slane %v4279, %v4283
    %v4286 = vadd.f32 %v4263, %v4284
    %v4287 = vadd.f32 %v4264, %v4284
    %v4288 = vadd.f32 %v4265, %v4284
    %v4289 = vadd.f32 %v4266, %v4284
    %v4290 = vadd.f32 %v4267, %v4284
    %v4291 = vadd.f32 %v4268, %v4284
    %v4292 = vadd.f32 %v4269, %v4284
    %v4293 = vadd.f32 %v4270, %v4284
    %v4294 = vadd.f32 %v4271, %v4284
    %v4295 = vadd.f32 %v4272, %v4284
    %v4296 = vadd.f32 %v4273, %v4284
    %v4297 = vadd.f32 %v4274, %v4284
    %v4298 = vadd.f32 %v4275, %v4284
    %v4299 = vadd.f32 %v4276, %v4284
    %v4300 = vadd.f32 %v4277, %v4284
    %v4301 = vadd.f32 %v4278, %v4284
    %v4302 = vmax.f32 %v4286, 0.0
    %v4303 = vmax.f32 %v4287, 0.0
    %v4304 = vmax.f32 %v4288, 0.0
    %v4305 = vmax.f32 %v4289, 0.0
    %v4306 = vmax.f32 %v4290, 0.0
    %v4307 = vmax.f32 %v4291, 0.0
    %v4308 = vmax.f32 %v4292, 0.0
    %v4309 = vmax.f32 %v4293, 0.0
    %v4310 = vmax.f32 %v4294, 0.0
    %v4311 = vmax.f32 %v4295, 0.0
    %v4312 = vmax.f32 %v4296, 0.0
    %v4313 = vmax.f32 %v4297, 0.0
    %v4314 = vmax.f32 %v4298, 0.0
    %v4315 = vmax.f32 %v4299, 0.0
    %v4316 = vmax.f32 %v4300, 0.0
    %v4317 = vmax.f32 %v4301, 0.0
    %4318 = vst.msk [vmem:[#allocation4] sm:$0xff] %vm129, %v4302
    %4319 = vst.msk [vmem:[#allocation4 + $0x8] sm:$0xff] %vm129, %v4303
    %4320 = vst.msk [vmem:[#allocation4 + $0x10] sm:$0xff] %vm129, %v4304
    %4321 = vst.msk [vmem:[#allocation4 + $0x18] sm:$0xff] %vm129, %v4305
    %4322 = vst.msk [vmem:[#allocation4 + $0x20] sm:$0xff] %vm129, %v4306
    %4323 = vst.msk [vmem:[#allocation4 + $0x28] sm:$0xff] %vm129, %v4307
    %4324 = vst.msk [vmem:[#allocation4 + $0x30] sm:$0xff] %vm129, %v4308
    %4325 = vst.msk [vmem:[#allocation4 + $0x38] sm:$0xff] %vm129, %v4309
    %s4326 = scalar_lea.vmem [#allocation4], 64
    %4327 = vst.msk [vmem:[%s4326] sm:$0xff] %vm129, %v4310
    %4328 = vst.msk [vmem:[%s4326 + $0x8] sm:$0xff] %vm129, %v4311
    %4329 = vst.msk [vmem:[%s4326 + $0x10] sm:$0xff] %vm129, %v4312
    %4330 = vst.msk [vmem:[%s4326 + $0x18] sm:$0xff] %vm129, %v4313
    %4331 = vst.msk [vmem:[%s4326 + $0x20] sm:$0xff] %vm129, %v4314
    %4332 = vst.msk [vmem:[%s4326 + $0x28] sm:$0xff] %vm129, %v4315
    %4333 = vst.msk [vmem:[%s4326 + $0x30] sm:$0xff] %vm129, %v4316
    %4334 = vst.msk [vmem:[%s4326 + $0x38] sm:$0xff] %vm129, %v4317
    // Predicated region
    $region18: #{tpu_custom_call.1} parent=1 // pred_check
      _
    $region19: #{tpu_custom_call.1} parent=1 // pred_check_branch
      %4336 = sbr.rel (0) target = $region21
    $region20: #{tpu_custom_call.1} parent=1 // pred_region
      %s4338 = ssub.s32 2048, 2048
      %4339 = vsyncadd [#allocation5], %s4338
      %s4340 = sshll.u32 [#allocation4], 4
      %s4341 = int_to_ptr.vmem [resolvable:$true] %s4340
      %4346 = dma.vmem_to_hbm [thread:$0]  %s4341, 2048, %s4, [#allocation5], 128, 128, 8
    $region21: #{tpu_custom_call.1} parent=1 // pred_fallthru
      _
    // Predicated region
    $region22: #{tpu_custom_call.1} parent=1 // pred_check
      _
    $region23: #{tpu_custom_call.1} parent=1 // pred_check_branch
      %4348 = sbr.rel (0) target = $region25
    $region24: #{tpu_custom_call.1} parent=1 // pred_region
      %4349 = dma.done [#allocation5], 2048
    $region25: #{tpu_custom_call.1} parent=1 // pred_fallthru
      _
    %4350 = vsyncpa [#allocation5], 1

</llo_original>
